<compile_context>
chip_gen: v6e
topology: v6e:2x2x1
jax: 0.10.0
libtpu: 0.0.40
codegen_flags: <defaults>
</compile_context>

<pallas_src>
import functools

import jax
import jax.numpy as jnp
import numpy as np
from jax.experimental import pallas as pl
from jax.experimental.pallas import tpu as pltpu


# -----------------------------------------------------------------------------
# Shared in-kernel MLP (Linear -> optional LayerNorm -> activation per layer).
# The first layer's weight is pre-split row-wise (one block per input part), so
# the kernel never materializes a concatenated input.  Inputs/weights are
# compute_dtype (bf16 fast path), accumulation and LN/activations are f32.
# -----------------------------------------------------------------------------
def _activate(h, act):
    if act == "relu":
        return jnp.maximum(h, 0.0)
    if act == "tanh":
        return jnp.tanh(h)
    raise ValueError(f"unsupported activation {act}")


def _layer_norm(h, gamma, beta, eps):
    mu = jnp.mean(h, axis=-1, keepdims=True)
    d = h - mu
    var = jnp.mean(d * d, axis=-1, keepdims=True)      # two-pass (matches reference)
    return d * jax.lax.rsqrt(var + eps) * gamma + beta


def _apply_mlp(parts, param_refs, num_layers, activations, layer_norm,
               compute_dtype, eps=1e-5):
    """parts: list of compute_dtype (rows, d_k) arrays; first-layer W split per part."""
    idx = 0
    h = jnp.dot(parts[0], param_refs[idx][...], preferred_element_type=jnp.float32)
    idx += 1
    for p in parts[1:]:
        h = h + jnp.dot(p, param_refs[idx][...], preferred_element_type=jnp.float32)
        idx += 1
    h = h + param_refs[idx][...]                         # f32 bias
    idx += 1
    if layer_norm:
        h = _layer_norm(h, param_refs[idx][...], param_refs[idx + 1][...], eps)
        idx += 2
    h = _activate(h, activations[0])

    for l in range(1, num_layers):
        w = param_refs[idx][...]                         # compute_dtype weight
        b = param_refs[idx + 1][...]                     # f32 bias
        idx += 2
        h = jnp.dot(h.astype(compute_dtype), w, preferred_element_type=jnp.float32) + b
        if layer_norm:
            h = _layer_norm(h, param_refs[idx][...], param_refs[idx + 1][...], eps)
            idx += 2
        h = _activate(h, activations[l])
    return h


def _flatten_mlp_params(params, part_dims, layer_norm, compute_dtype):
    """Flatten params; split first-layer W row-wise; weights in compute_dtype,
    bias/gamma/beta kept f32."""
    flat = []
    w0 = params[0]["w"]
    start = 0
    for d in part_dims:
        flat.append(w0[start:start + d, :].astype(compute_dtype))
        start += d
    flat.append(params[0]["b"].reshape(1, -1).astype(jnp.float32))
    if layer_norm:
        flat.append(params[0]["gamma"].reshape(1, -1).astype(jnp.float32))
        flat.append(params[0]["beta"].reshape(1, -1).astype(jnp.float32))
    for p in params[1:]:
        flat.append(p["w"].astype(compute_dtype))
        flat.append(p["b"].reshape(1, -1).astype(jnp.float32))
        if layer_norm:
            flat.append(p["gamma"].reshape(1, -1).astype(jnp.float32))
            flat.append(p["beta"].reshape(1, -1).astype(jnp.float32))
    return flat


# -----------------------------------------------------------------------------
# Kernel 1: fused scatter_add (over edge tiles) + node MLP + residual.
# grid = (N_pad/tile_n  [parallel],  E_pad/tile_e  [arbitrary, last])
# -----------------------------------------------------------------------------
def _make_node_kernel(num_layers, activations, layer_norm, n_params,
                      tile_n, compute_dtype, eps=1e-5):
    def kernel(dst_ref, edges_ref, nodes_ref, *rest):
        param_refs = rest[:n_params]
        out_ref = rest[n_params]
        acc_ref = rest[n_params + 1]

        j = pl.program_id(1)

        @pl.when(j == 0)
        def _():
            acc_ref[...] = jnp.zeros_like(acc_ref)

        # scatter-add this edge tile into the resident node-tile accumulator
        tile_e = dst_ref.shape[1]
        base = pl.program_id(0) * tile_n
        dst_local = dst_ref[...] - base                     # (1, tile_e) cheap offset
        row_ids = jax.lax.broadcasted_iota(jnp.int32, (tile_n, tile_e), 0)
        onehot = (row_ids == dst_local).astype(compute_dtype)       # single cast
        acc_ref[...] += jnp.dot(onehot, edges_ref[...],              # edges already cd
                                preferred_element_type=jnp.float32)

        @pl.when(j == pl.num_programs(1) - 1)
        def _():
            nodes_f32 = nodes_ref[...].astype(jnp.float32)  # residual (f32-exact)
            h = _apply_mlp([nodes_ref[...].astype(compute_dtype),
                            acc_ref[...].astype(compute_dtype)],
                           param_refs, num_layers, activations, layer_norm,
                           compute_dtype, eps)
            out_ref[...] = (h + nodes_f32).astype(out_ref.dtype)

    return kernel


# -----------------------------------------------------------------------------
# Kernel 2: fused nodes[src]/nodes[dst] gather + edge MLP + residual.
# grid = (E_pad/tile_e  [parallel]); gather is chunked over N (VMEM-bounded),
# src/dst one-hots stacked into one (2*tile_e, chunk) LHS -> single dot.
# -----------------------------------------------------------------------------
def _make_edge_kernel(num_layers, activations, layer_norm, n_params,
                      chunk, num_chunks, compute_dtype, eps=1e-5):
    def kernel(sd_ref, nodes_ref, edges_ref, *rest):
        param_refs = rest[:n_params]
        out_ref = rest[n_params]

        tile_e = edges_ref.shape[0]
        latent = nodes_ref.shape[1]

        idx = sd_ref[...]                                   # (2*tile_e, 1): [src; dst]
        col_ids = jax.lax.broadcasted_iota(jnp.int32, (2 * tile_e, chunk), 1)

        if num_chunks == 1:
            oh = (col_ids == idx).astype(compute_dtype)     # single cast
            gathered = jnp.dot(oh, nodes_ref[...], preferred_element_type=jnp.float32)
        else:
            def gather_chunk(c, acc):
                start = pl.multiple_of(c * chunk, chunk)
                tbl = nodes_ref[pl.ds(start, chunk), :]     # compute_dtype chunk
                oh = (col_ids == (idx - c * chunk)).astype(compute_dtype)
                return acc + jnp.dot(oh, tbl, preferred_element_type=jnp.float32)

            gathered = jax.lax.fori_loop(
                0, num_chunks, gather_chunk,
                jnp.zeros((2 * tile_e, latent), jnp.float32))

        x_src = gathered[:tile_e]
        x_dst = gathered[tile_e:]

        edges_f32 = edges_ref[...].astype(jnp.float32)      # residual comes from here
        h = _apply_mlp([x_src.astype(compute_dtype),
                        x_dst.astype(compute_dtype),
                        edges_ref[...]],                    # already compute_dtype
                       param_refs, num_layers, activations, layer_norm,
                       compute_dtype, eps)
        out_ref[...] = (h + edges_f32).astype(out_ref.dtype)

    return kernel


# -----------------------------------------------------------------------------
# Wrapper: InteractionGNNBlock forward
# -----------------------------------------------------------------------------
def _round_up(x, m):
    return ((x + m - 1) // m) * m


def _pad_rows(a, target):
    pad = target - a.shape[0]
    if pad == 0:
        return a
    return jnp.pad(a, ((0, pad), (0, 0)))


def interaction_gnn_block(nodes, edges, graph, node_params, edge_params,
                          node_acts, edge_acts, layer_norm,
                          *, tile_n=1024, tile_e=1024,
                          compute_dtype=jnp.bfloat16):
    n, latent = nodes.shape
    e = edges.shape[0]
    src = graph[0].astype(jnp.int32)
    dst = graph[1].astype(jnp.int32)

    # Clamp tiles to the (padded) problem and pad rows; padded edges get
    # src/dst = -1 so they never scatter/gather into valid rows, padded rows
    # are sliced off at the end.
    tile_n = min(tile_n, _round_up(n, 8))
    tile_e = min(tile_e, _round_up(e, 128))
    n_pad = _round_up(n, tile_n)
    e_pad = _round_up(e, tile_e)
    e_tiles = e_pad // tile_e

    nodes_p = _pad_rows(nodes, n_pad)                               # f32: streamed once
    edges_p = _pad_rows(edges, e_pad).astype(compute_dtype)         # re-streamed: bf16
    src_p = jnp.pad(src, (0, e_pad - e), constant_values=-1)
    dst_p = jnp.pad(dst, (0, e_pad - e), constant_values=-1)
    dst_row = dst_p.reshape(1, e_pad)
    # per-edge-tile stacked [src_tile; dst_tile] column -> one gather dot in-kernel
    sd_col = jnp.stack([src_p.reshape(e_tiles, tile_e),
                        dst_p.reshape(e_tiles, tile_e)],
                       axis=1).reshape(2 * e_pad, 1)

    vmem_limit = 32 * 1024 * 1024   # above v5e's 16 MiB scoped default, fits all gens

    # ---------------- fused scatter_add + node MLP + residual -----------------
    flat_node = _flatten_mlp_params(node_params, (latent, latent),
                                    layer_norm, compute_dtype)
    node_kernel = _make_node_kernel(len(node_params), node_acts, layer_norm,
                                    len(flat_node), tile_n, compute_dtype)
    node_param_specs = [pl.BlockSpec(p.shape, lambda i, j: (0, 0)) for p in flat_node]

    new_nodes_p = pl.pallas_call(
        node_kernel,
        out_shape=jax.ShapeDtypeStruct((n_pad, latent), nodes.dtype),
        grid=(n_pad // tile_n, e_tiles),
        in_specs=[
            pl.BlockSpec((1, tile_e), lambda i, j: (0, j)),          # dst indices
            pl.BlockSpec((tile_e, latent), lambda i, j: (j, 0)),     # edge features (cd)
            pl.BlockSpec((tile_n, latent), lambda i, j: (i, 0)),     # node features (f32)
        ] + node_param_specs,
        out_specs=pl.BlockSpec((tile_n, latent), lambda i, j: (i, 0)),
        scratch_shapes=[pltpu.VMEM((tile_n, latent), jnp.float32)],
        compiler_params=pltpu.CompilerParams(
            dimension_semantics=("parallel", "arbitrary"),
            vmem_limit_bytes=vmem_limit),
    )(dst_row, edges_p, nodes_p, *flat_node)

    # ---------------- fused gather + edge MLP + residual ----------------------
    num_chunks = n_pad // tile_n                      # gather chunk = tile_n rows
    node_table = new_nodes_p.astype(compute_dtype)    # halve resident table + DMA
    flat_edge = _flatten_mlp_params(edge_params, (latent, latent, latent),
                                    layer_norm, compute_dtype)
    edge_kernel = _make_edge_kernel(len(edge_params), edge_acts, layer_norm,
                                    len(flat_edge), tile_n, num_chunks, compute_dtype)
    edge_param_specs = [pl.BlockSpec(p.shape, lambda j: (0, 0)) for p in flat_edge]

    new_edges_p = pl.pallas_call(
        edge_kernel,
        out_shape=jax.ShapeDtypeStruct((e_pad, latent), edges.dtype),
        grid=(e_tiles,),
        in_specs=[
            pl.BlockSpec((2 * tile_e, 1), lambda j: (j, 0)),         # [src;dst] indices
            pl.BlockSpec((n_pad, latent), lambda j: (0, 0)),         # node table (cd)
            pl.BlockSpec((tile_e, latent), lambda j: (j, 0)),        # edge features (cd)
        ] + edge_param_specs,
        out_specs=pl.BlockSpec((tile_e, latent), lambda j: (j, 0)),
        compiler_params=pltpu.CompilerParams(
            dimension_semantics=("parallel",),
            vmem_limit_bytes=vmem_limit),
    )(sd_col, node_table, edges_p, *flat_edge)

    return new_nodes_p[:n], new_edges_p[:e]


# -----------------------------------------------------------------------------
# Parameter construction (deterministic, synthetic)
# -----------------------------------------------------------------------------
def make_mlp_params(key, in_dim, hidden_dim, out_dim, nb_layers, layer_norm):
    sizes = [in_dim] + [hidden_dim] * (nb_layers - 1) + [out_dim]
    params = []
    for l in range(nb_layers):
        key, kw, kb = jax.random.split(key, 3)
        fan_in = sizes[l]
        w = jax.random.normal(kw, (sizes[l], sizes[l + 1]), jnp.float32) / np.sqrt(fan_in)
        b = jax.random.normal(kb, (sizes[l + 1],), jnp.float32) * 0.01
        p = {"w": w, "b": b}
        if layer_norm:
            p["gamma"] = jnp.ones((sizes[l + 1],), jnp.float32)
            p["beta"] = jnp.zeros((sizes[l + 1],), jnp.float32)
        params.append(p)
    return params


# -----------------------------------------------------------------------------
# Pure-JAX reference (for sanity checks)
# -----------------------------------------------------------------------------
def _ref_mlp(x, params, activations, layer_norm, eps=1e-5):
    h = x
    for p, act in zip(params, activations):
        h = h @ p["w"] + p["b"]
        if layer_norm:
            mu = jnp.mean(h, axis=-1, keepdims=True)
            var = jnp.mean((h - mu) ** 2, axis=-1, keepdims=True)
            h = (h - mu) * jax.lax.rsqrt(var + eps) * p["gamma"] + p["beta"]
        h = jnp.maximum(h, 0.0) if act == "relu" else jnp.tanh(h)
    return h


def _ref_block(nodes, edges, graph, node_params, edge_params, node_acts, edge_acts, ln):
    n = nodes.shape[0]
    msgs = jax.ops.segment_sum(edges, graph[1], num_segments=n)
    nodes = _ref_mlp(jnp.concatenate([nodes, msgs], -1), node_params, node_acts, ln) + nodes
    ein = jnp.concatenate([nodes[graph[0]], nodes[graph[1]], edges], -1)
    edges = _ref_mlp(ein, edge_params, edge_acts, ln) + edges
    return nodes, edges


# -----------------------------------------------------------------------------
if __name__ == "__main__":
    # hparams (synthetic, small)
    latent = 32
    hidden = 32
    nb_node_layer = 2
    nb_edge_layer = 2
    layernorm = True
    hidden_activation = "relu"                                            # hparams['hidden_activation'] = 'ReLU'
    node_acts = (hidden_activation,) * nb_node_layer                      # output_activation = hidden_activation
    edge_acts = (hidden_activation,) * (nb_edge_layer - 1) + ("tanh",)    # output_activation = 'Tanh'

    key = jax.random.PRNGKey(0)
    k_nodes, k_edges, k_src, k_dst, k_np, k_ep, k2 = jax.random.split(key, 7)

    node_params = make_mlp_params(k_np, 2 * latent, hidden, latent, nb_node_layer, layernorm)
    edge_params = make_mlp_params(k_ep, 3 * latent, hidden, latent, nb_edge_layer, layernorm)

    def make_graph(kn, ke, ks, kd, N, E):
        nodes = jax.random.normal(kn, (N, latent), jnp.float32)
        edges = jax.random.normal(ke, (E, latent), jnp.float32)
        graph = jnp.stack([
            jax.random.randint(ks, (E,), 0, N, dtype=jnp.int32),
            jax.random.randint(kd, (E,), 0, N, dtype=jnp.int32),
        ], axis=0)
        return nodes, edges, graph

    # ---- case 1: small graph, default tiles --------------------------------
    N, E = 64, 128
    nodes, edges, graph = make_graph(k_nodes, k_edges, k_src, k_dst, N, E)
    ref_nodes, ref_edges = _ref_block(nodes, edges, graph, node_params, edge_params,
                                      node_acts, edge_acts, layernorm)

    # Fast path: bf16 operands / one-hots with f32 accumulation.
    fwd_bf16 = jax.jit(functools.partial(
        interaction_gnn_block,
        node_params=node_params, edge_params=edge_params,
        node_acts=node_acts, edge_acts=edge_acts, layer_norm=layernorm,
        compute_dtype=jnp.bfloat16))
    out_nodes, out_edges = fwd_bf16(nodes, edges, graph)
    jax.block_until_ready((out_nodes, out_edges))
    np.testing.assert_allclose(np.asarray(out_nodes), np.asarray(ref_nodes), atol=4e-2, rtol=4e-2)
    np.testing.assert_allclose(np.asarray(out_edges), np.asarray(ref_edges), atol=4e-2, rtol=4e-2)

    # f32 path: proves the fused structure (scatter/gather/MLP/residual) is exact.
    fwd_f32 = jax.jit(functools.partial(
        interaction_gnn_block,
        node_params=node_params, edge_params=edge_params,
        node_acts=node_acts, edge_acts=edge_acts, layer_norm=layernorm,
        compute_dtype=jnp.float32))
    out_nodes32, out_edges32 = fwd_f32(nodes, edges, graph)
    jax.block_until_ready((out_nodes32, out_edges32))
    np.testing.assert_allclose(np.asarray(out_nodes32), np.asarray(ref_nodes), atol=2e-3, rtol=2e-3)
    np.testing.assert_allclose(np.asarray(out_edges32), np.asarray(ref_edges), atol=2e-3, rtol=2e-3)

    # ---- case 2: larger graph, small explicit tiles -------------------------
    # Exercises the multi-tile scatter accumulation (grid 3x3) and the
    # N-chunked gather fori_loop path (num_chunks = 3) of the edge kernel.
    N2, E2 = 192, 384
    k2n, k2e, k2s, k2d = jax.random.split(k2, 4)
    nodes2, edges2, graph2 = make_graph(k2n, k2e, k2s, k2d, N2, E2)
    ref_nodes2, ref_edges2 = _ref_block(nodes2, edges2, graph2, node_params, edge_params,
                                        node_acts, edge_acts, layernorm)
    fwd_tiled = jax.jit(functools.partial(
        interaction_gnn_block,
        node_params=node_params, edge_params=edge_params,
        node_acts=node_acts, edge_acts=edge_acts, layer_norm=layernorm,
        tile_n=64, tile_e=128, compute_dtype=jnp.float32))
    out_nodes2, out_edges2 = fwd_tiled(nodes2, edges2, graph2)
    jax.block_until_ready((out_nodes2, out_edges2))
    np.testing.assert_allclose(np.asarray(out_nodes2), np.asarray(ref_nodes2), atol=2e-3, rtol=2e-3)
    np.testing.assert_allclose(np.asarray(out_edges2), np.asarray(ref_edges2), atol=2e-3, rtol=2e-3)

    print("KERNEL_OK")
</pallas_src>

<mosaic_0001>
module attributes {stable_mosaic.version = 11 : i64} {
  func.func @kernel(%arg0: i32, %arg1: i32, %arg2: memref<1x128xi32, #tpu.memory_space<vmem>>, %arg3: memref<128x32xbf16, #tpu.memory_space<vmem>>, %arg4: memref<64x32xf32, #tpu.memory_space<vmem>>, %arg5: memref<32x32xbf16, #tpu.memory_space<vmem>>, %arg6: memref<32x32xbf16, #tpu.memory_space<vmem>>, %arg7: memref<1x32xf32, #tpu.memory_space<vmem>>, %arg8: memref<1x32xf32, #tpu.memory_space<vmem>>, %arg9: memref<1x32xf32, #tpu.memory_space<vmem>>, %arg10: memref<32x32xbf16, #tpu.memory_space<vmem>>, %arg11: memref<1x32xf32, #tpu.memory_space<vmem>>, %arg12: memref<1x32xf32, #tpu.memory_space<vmem>>, %arg13: memref<1x32xf32, #tpu.memory_space<vmem>>, %arg14: memref<64x32xf32, #tpu.memory_space<vmem>>, %arg15: memref<64x32xf32, #tpu.memory_space<vmem>>) attributes {dimension_semantics = [#tpu.dimension_semantics<parallel>, #tpu.dimension_semantics<arbitrary>], iteration_bounds = array<i64: 1, 1>, scalar_prefetch = 0 : i64, scratch_operands = 1 : i64, tpu.core_type = #tpu.core_type<tc>, window_params = [{transform_indices = @transform_0, window_bounds = array<i64: 1, 128>}, {transform_indices = @transform_1, window_bounds = array<i64: 128, 32>}, {transform_indices = @transform_2, window_bounds = array<i64: 64, 32>}, {pipeline_mode = #tpu.pipeline_mode<synchronous>, transform_indices = @transform_3, window_bounds = array<i64: 32, 32>}, {pipeline_mode = #tpu.pipeline_mode<synchronous>, transform_indices = @transform_4, window_bounds = array<i64: 32, 32>}, {pipeline_mode = #tpu.pipeline_mode<synchronous>, transform_indices = @transform_5, window_bounds = array<i64: 1, 32>}, {pipeline_mode = #tpu.pipeline_mode<synchronous>, transform_indices = @transform_6, window_bounds = array<i64: 1, 32>}, {pipeline_mode = #tpu.pipeline_mode<synchronous>, transform_indices = @transform_7, window_bounds = array<i64: 1, 32>}, {pipeline_mode = #tpu.pipeline_mode<synchronous>, transform_indices = @transform_8, window_bounds = array<i64: 32, 32>}, {pipeline_mode = #tpu.pipeline_mode<synchronous>, transform_indices = @transform_9, window_bounds = array<i64: 1, 32>}, {pipeline_mode = #tpu.pipeline_mode<synchronous>, transform_indices = @transform_10, window_bounds = array<i64: 1, 32>}, {pipeline_mode = #tpu.pipeline_mode<synchronous>, transform_indices = @transform_11, window_bounds = array<i64: 1, 32>}, {transform_indices = @transform_12, window_bounds = array<i64: 64, 32>}]} {
    %c0_i32 = arith.constant 0 : i32
    %0 = arith.cmpi eq, %arg1, %c0_i32 : i32
    %1 = arith.extui %0 : i1 to i32
    %c0_i32_0 = arith.constant 0 : i32
    %2 = arith.cmpi ne, %1, %c0_i32_0 : i32
    scf.if %2 {
      %cst_10 = arith.constant 0.000000e+00 : f32
      %21 = vector.broadcast %cst_10 : f32 to vector<64x32xf32>
      %c0_11 = arith.constant 0 : index
      %c0_12 = arith.constant 0 : index
      %22 = vector.load %arg15[%c0_11, %c0_12] : memref<64x32xf32, #tpu.memory_space<vmem>>, vector<64x32xf32>
      tpu.vector_store %arg15[%c0_11, %c0_12], %21 {strides = array<i32>} : memref<64x32xf32, #tpu.memory_space<vmem>>, vector<64x32xf32>,
    } else {
    }
    %c64_i32 = arith.constant 64 : i32
    %3 = arith.muli %arg0, %c64_i32 : i32
    %c0 = arith.constant 0 : index
    %c0_1 = arith.constant 0 : index
    %4 = vector.load %arg2[%c0, %c0_1] : memref<1x128xi32, #tpu.memory_space<vmem>>, vector<1x128xi32>
    %5 = vector.broadcast %3 : i32 to vector<1x128xi32>
    %6 = arith.subi %4, %5 : vector<1x128xi32>
    %7 = tpu.iota {dimensions = array<i32: 0>} : vector<64x128xi32>
    %8 = vector.broadcast %6 : vector<1x128xi32> to vector<64x128xi32>
    %9 = arith.cmpi eq, %7, %8 : vector<64x128xi32>
    %10 = arith.extui %9 : vector<64x128xi1> to vector<64x128xi32>
    %11 = arith.sitofp %10 : vector<64x128xi32> to vector<64x128xf32>
    %12 = arith.truncf %11 : vector<64x128xf32> to vector<64x128xbf16>
    %c0_2 = arith.constant 0 : index
    %c0_3 = arith.constant 0 : index
    %13 = vector.load %arg15[%c0_2, %c0_3] : memref<64x32xf32, #tpu.memory_space<vmem>>, vector<64x32xf32>
    %c0_4 = arith.constant 0 : index
    %c0_5 = arith.constant 0 : index
    %14 = vector.load %arg3[%c0_4, %c0_5] : memref<128x32xbf16, #tpu.memory_space<vmem>>, vector<128x32xbf16>
    %cst = arith.constant dense<0.000000e+00> : vector<64x32xf32>
    %15 = tpu.matmul %12, %14, %cst {dimension_numbers = #tpu.dot_dimension_numbers<[1], [0], [0], [1], [0, 0, 1, 1], [], []>} : vector<64x128xbf16>, vector<128x32xbf16>, vector<64x32xf32> -> vector<64x32xf32>
    %16 = arith.addf %13, %15 : vector<64x32xf32>
    %c0_6 = arith.constant 0 : index
    %c0_7 = arith.constant 0 : index
    %17 = vector.load %arg15[%c0_6, %c0_7] : memref<64x32xf32, #tpu.memory_space<vmem>>, vector<64x32xf32>
    tpu.vector_store %arg15[%c0_6, %c0_7], %16 {strides = array<i32>} : memref<64x32xf32, #tpu.memory_space<vmem>>, vector<64x32xf32>,
    %c0_i32_8 = arith.constant 0 : i32
    %18 = arith.cmpi eq, %arg1, %c0_i32_8 : i32
    %19 = arith.extui %18 : i1 to i32
    %c0_i32_9 = arith.constant 0 : i32
    %20 = arith.cmpi ne, %19, %c0_i32_9 : i32
    scf.if %20 {
      %c0_10 = arith.constant 0 : index
      %c0_11 = arith.constant 0 : index
      %21 = vector.load %arg4[%c0_10, %c0_11] : memref<64x32xf32, #tpu.memory_space<vmem>>, vector<64x32xf32>
      %c0_12 = arith.constant 0 : index
      %c0_13 = arith.constant 0 : index
      %22 = vector.load %arg4[%c0_12, %c0_13] : memref<64x32xf32, #tpu.memory_space<vmem>>, vector<64x32xf32>
      %23 = arith.truncf %22 : vector<64x32xf32> to vector<64x32xbf16>
      %c0_14 = arith.constant 0 : index
      %c0_15 = arith.constant 0 : index
      %24 = vector.load %arg15[%c0_14, %c0_15] : memref<64x32xf32, #tpu.memory_space<vmem>>, vector<64x32xf32>
      %25 = arith.truncf %24 : vector<64x32xf32> to vector<64x32xbf16>
      %c0_16 = arith.constant 0 : index
      %c0_17 = arith.constant 0 : index
      %26 = vector.load %arg5[%c0_16, %c0_17] : memref<32x32xbf16, #tpu.memory_space<vmem>>, vector<32x32xbf16>
      %cst_18 = arith.constant dense<0.000000e+00> : vector<64x32xf32>
      %27 = tpu.matmul %23, %26, %cst_18 {dimension_numbers = #tpu.dot_dimension_numbers<[1], [0], [0], [1], [0, 0, 1, 1], [], []>} : vector<64x32xbf16>, vector<32x32xbf16>, vector<64x32xf32> -> vector<64x32xf32>
      %c0_19 = arith.constant 0 : index
      %c0_20 = arith.constant 0 : index
      %28 = vector.load %arg6[%c0_19, %c0_20] : memref<32x32xbf16, #tpu.memory_space<vmem>>, vector<32x32xbf16>
      %cst_21 = arith.constant dense<0.000000e+00> : vector<64x32xf32>
      %29 = tpu.matmul %25, %28, %cst_21 {dimension_numbers = #tpu.dot_dimension_numbers<[1], [0], [0], [1], [0, 0, 1, 1], [], []>} : vector<64x32xbf16>, vector<32x32xbf16>, vector<64x32xf32> -> vector<64x32xf32>
      %30 = arith.addf %27, %29 : vector<64x32xf32>
      %c0_22 = arith.constant 0 : index
      %c0_23 = arith.constant 0 : index
      %31 = vector.load %arg7[%c0_22, %c0_23] : memref<1x32xf32, #tpu.memory_space<vmem>>, vector<1x32xf32>
      %32 = vector.broadcast %31 : vector<1x32xf32> to vector<64x32xf32>
      %33 = arith.addf %30, %32 : vector<64x32xf32>
      %c0_24 = arith.constant 0 : index
      %c0_25 = arith.constant 0 : index
      %34 = vector.load %arg8[%c0_24, %c0_25] : memref<1x32xf32, #tpu.memory_space<vmem>>, vector<1x32xf32>
      %c0_26 = arith.constant 0 : index
      %c0_27 = arith.constant 0 : index
      %35 = vector.load %arg9[%c0_26, %c0_27] : memref<1x32xf32, #tpu.memory_space<vmem>>, vector<1x32xf32>
      %cst_28 = arith.constant dense<0.000000e+00> : vector<64xf32>
      %36 = vector.multi_reduction <add>, %33, %cst_28 [1] : vector<64x32xf32> to vector<64xf32>
      %37 = vector.shape_cast %36 : vector<64xf32> to vector<64x1xf32>
      %cst_29 = arith.constant 3.200000e+01 : f32
      %38 = vector.broadcast %cst_29 : f32 to vector<64x1xf32>
      %39 = arith.divf %37, %38 : vector<64x1xf32>
      %40 = vector.broadcast %39 : vector<64x1xf32> to vector<64x32xf32>
      %41 = arith.subf %33, %40 : vector<64x32xf32>
      %42 = arith.mulf %41, %41 : vector<64x32xf32>
      %cst_30 = arith.constant dense<0.000000e+00> : vector<64xf32>
      %43 = vector.multi_reduction <add>, %42, %cst_30 [1] : vector<64x32xf32> to vector<64xf32>
      %44 = vector.shape_cast %43 : vector<64xf32> to vector<64x1xf32>
      %cst_31 = arith.constant 3.200000e+01 : f32
      %45 = vector.broadcast %cst_31 : f32 to vector<64x1xf32>
      %46 = arith.divf %44, %45 : vector<64x1xf32>
      %cst_32 = arith.constant 9.99999974E-6 : f32
      %47 = vector.broadcast %cst_32 : f32 to vector<64x1xf32>
      %48 = arith.addf %46, %47 : vector<64x1xf32>
      %49 = math.rsqrt %48 : vector<64x1xf32>
      %50 = vector.broadcast %49 : vector<64x1xf32> to vector<64x32xf32>
      %51 = arith.mulf %41, %50 : vector<64x32xf32>
      %52 = vector.broadcast %34 : vector<1x32xf32> to vector<64x32xf32>
      %53 = arith.mulf %51, %52 : vector<64x32xf32>
      %54 = vector.broadcast %35 : vector<1x32xf32> to vector<64x32xf32>
      %55 = arith.addf %53, %54 : vector<64x32xf32>
      %cst_33 = arith.constant 0.000000e+00 : f32
      %56 = vector.broadcast %cst_33 : f32 to vector<64x32xf32>
      %57 = arith.maximumf %55, %56 : vector<64x32xf32>
      %c0_34 = arith.constant 0 : index
      %c0_35 = arith.constant 0 : index
      %58 = vector.load %arg10[%c0_34, %c0_35] : memref<32x32xbf16, #tpu.memory_space<vmem>>, vector<32x32xbf16>
      %c0_36 = arith.constant 0 : index
      %c0_37 = arith.constant 0 : index
      %59 = vector.load %arg11[%c0_36, %c0_37] : memref<1x32xf32, #tpu.memory_space<vmem>>, vector<1x32xf32>
      %60 = arith.truncf %57 : vector<64x32xf32> to vector<64x32xbf16>
      %cst_38 = arith.constant dense<0.000000e+00> : vector<64x32xf32>
      %61 = tpu.matmul %60, %58, %cst_38 {dimension_numbers = #tpu.dot_dimension_numbers<[1], [0], [0], [1], [0, 0, 1, 1], [], []>} : vector<64x32xbf16>, vector<32x32xbf16>, vector<64x32xf32> -> vector<64x32xf32>
      %62 = vector.broadcast %59 : vector<1x32xf32> to vector<64x32xf32>
      %63 = arith.addf %61, %62 : vector<64x32xf32>
      %c0_39 = arith.constant 0 : index
      %c0_40 = arith.constant 0 : index
      %64 = vector.load %arg12[%c0_39, %c0_40] : memref<1x32xf32, #tpu.memory_space<vmem>>, vector<1x32xf32>
      %c0_41 = arith.constant 0 : index
      %c0_42 = arith.constant 0 : index
      %65 = vector.load %arg13[%c0_41, %c0_42] : memref<1x32xf32, #tpu.memory_space<vmem>>, vector<1x32xf32>
      %cst_43 = arith.constant dense<0.000000e+00> : vector<64xf32>
      %66 = vector.multi_reduction <add>, %63, %cst_43 [1] : vector<64x32xf32> to vector<64xf32>
      %67 = vector.shape_cast %66 : vector<64xf32> to vector<64x1xf32>
      %cst_44 = arith.constant 3.200000e+01 : f32
      %68 = vector.broadcast %cst_44 : f32 to vector<64x1xf32>
      %69 = arith.divf %67, %68 : vector<64x1xf32>
      %70 = vector.broadcast %69 : vector<64x1xf32> to vector<64x32xf32>
      %71 = arith.subf %63, %70 : vector<64x32xf32>
      %72 = arith.mulf %71, %71 : vector<64x32xf32>
      %cst_45 = arith.constant dense<0.000000e+00> : vector<64xf32>
      %73 = vector.multi_reduction <add>, %72, %cst_45 [1] : vector<64x32xf32> to vector<64xf32>
      %74 = vector.shape_cast %73 : vector<64xf32> to vector<64x1xf32>
      %cst_46 = arith.constant 3.200000e+01 : f32
      %75 = vector.broadcast %cst_46 : f32 to vector<64x1xf32>
      %76 = arith.divf %74, %75 : vector<64x1xf32>
      %cst_47 = arith.constant 9.99999974E-6 : f32
      %77 = vector.broadcast %cst_47 : f32 to vector<64x1xf32>
      %78 = arith.addf %76, %77 : vector<64x1xf32>
      %79 = math.rsqrt %78 : vector<64x1xf32>
      %80 = vector.broadcast %79 : vector<64x1xf32> to vector<64x32xf32>
      %81 = arith.mulf %71, %80 : vector<64x32xf32>
      %82 = vector.broadcast %64 : vector<1x32xf32> to vector<64x32xf32>
      %83 = arith.mulf %81, %82 : vector<64x32xf32>
      %84 = vector.broadcast %65 : vector<1x32xf32> to vector<64x32xf32>
      %85 = arith.addf %83, %84 : vector<64x32xf32>
      %cst_48 = arith.constant 0.000000e+00 : f32
      %86 = vector.broadcast %cst_48 : f32 to vector<64x32xf32>
      %87 = arith.maximumf %85, %86 : vector<64x32xf32>
      %88 = arith.addf %87, %21 : vector<64x32xf32>
      %c0_49 = arith.constant 0 : index
      %c0_50 = arith.constant 0 : index
      %89 = vector.load %arg14[%c0_49, %c0_50] : memref<64x32xf32, #tpu.memory_space<vmem>>, vector<64x32xf32>
      tpu.vector_store %arg14[%c0_49, %c0_50], %88 {strides = array<i32>} : memref<64x32xf32, #tpu.memory_space<vmem>>, vector<64x32xf32>,
    } else {
    }
    return
  }
  func.func @transform_0(%arg0: i32, %arg1: i32) -> (i32, i32) {
    %c0_i32 = arith.constant 0 : i32
    %c0_i32_0 = arith.constant 0 : i32
    return %c0_i32, %arg1 : i32, i32
  }
  func.func @transform_1(%arg0: i32, %arg1: i32) -> (i32, i32) {
    %c0_i32 = arith.constant 0 : i32
    %c0_i32_0 = arith.constant 0 : i32
    return %arg1, %c0_i32 : i32, i32
  }
  func.func @transform_2(%arg0: i32, %arg1: i32) -> (i32, i32) {
    %c0_i32 = arith.constant 0 : i32
    %c0_i32_0 = arith.constant 0 : i32
    return %arg0, %c0_i32 : i32, i32
  }
  func.func @transform_3(%arg0: i32, %arg1: i32) -> (i32, i32) {
    %c0_i32 = arith.constant 0 : i32
    %c0_i32_0 = arith.constant 0 : i32
    %c0_i32_1 = arith.constant 0 : i32
    return %c0_i32, %c0_i32_0 : i32, i32
  }
  func.func @transform_4(%arg0: i32, %arg1: i32) -> (i32, i32) {
    %c0_i32 = arith.constant 0 : i32
    %c0_i32_0 = arith.constant 0 : i32
    %c0_i32_1 = arith.constant 0 : i32
    return %c0_i32, %c0_i32_0 : i32, i32
  }
  func.func @transform_5(%arg0: i32, %arg1: i32) -> (i32, i32) {
    %c0_i32 = arith.constant 0 : i32
    %c0_i32_0 = arith.constant 0 : i32
    %c0_i32_1 = arith.constant 0 : i32
    return %c0_i32, %c0_i32_0 : i32, i32
  }
  func.func @transform_6(%arg0: i32, %arg1: i32) -> (i32, i32) {
    %c0_i32 = arith.constant 0 : i32
    %c0_i32_0 = arith.constant 0 : i32
    %c0_i32_1 = arith.constant 0 : i32
    return %c0_i32, %c0_i32_0 : i32, i32
  }
  func.func @transform_7(%arg0: i32, %arg1: i32) -> (i32, i32) {
    %c0_i32 = arith.constant 0 : i32
    %c0_i32_0 = arith.constant 0 : i32
    %c0_i32_1 = arith.constant 0 : i32
    return %c0_i32, %c0_i32_0 : i32, i32
  }
  func.func @transform_8(%arg0: i32, %arg1: i32) -> (i32, i32) {
    %c0_i32 = arith.constant 0 : i32
    %c0_i32_0 = arith.constant 0 : i32
    %c0_i32_1 = arith.constant 0 : i32
    return %c0_i32, %c0_i32_0 : i32, i32
  }
  func.func @transform_9(%arg0: i32, %arg1: i32) -> (i32, i32) {
    %c0_i32 = arith.constant 0 : i32
    %c0_i32_0 = arith.constant 0 : i32
    %c0_i32_1 = arith.constant 0 : i32
    return %c0_i32, %c0_i32_0 : i32, i32
  }
  func.func @transform_10(%arg0: i32, %arg1: i32) -> (i32, i32) {
    %c0_i32 = arith.constant 0 : i32
    %c0_i32_0 = arith.constant 0 : i32
    %c0_i32_1 = arith.constant 0 : i32
    return %c0_i32, %c0_i32_0 : i32, i32
  }
  func.func @transform_11(%arg0: i32, %arg1: i32) -> (i32, i32) {
    %c0_i32 = arith.constant 0 : i32
    %c0_i32_0 = arith.constant 0 : i32
    %c0_i32_1 = arith.constant 0 : i32
    return %c0_i32, %c0_i32_0 : i32, i32
  }
  func.func @transform_12(%arg0: i32, %arg1: i32) -> (i32, i32) {
    %c0_i32 = arith.constant 0 : i32
    %c0_i32_0 = arith.constant 0 : i32
    return %arg0, %c0_i32 : i32, i32
  }
}

module attributes {stable_mosaic.version = 11 : i64} {
  func.func @kernel(%arg0: i32, %arg1: memref<256x1xi32, #tpu.memory_space<vmem>>, %arg2: memref<64x32xbf16, #tpu.memory_space<vmem>>, %arg3: memref<128x32xbf16, #tpu.memory_space<vmem>>, %arg4: memref<32x32xbf16, #tpu.memory_space<vmem>>, %arg5: memref<32x32xbf16, #tpu.memory_space<vmem>>, %arg6: memref<32x32xbf16, #tpu.memory_space<vmem>>, %arg7: memref<1x32xf32, #tpu.memory_space<vmem>>, %arg8: memref<1x32xf32, #tpu.memory_space<vmem>>, %arg9: memref<1x32xf32, #tpu.memory_space<vmem>>, %arg10: memref<32x32xbf16, #tpu.memory_space<vmem>>, %arg11: memref<1x32xf32, #tpu.memory_space<vmem>>, %arg12: memref<1x32xf32, #tpu.memory_space<vmem>>, %arg13: memref<1x32xf32, #tpu.memory_space<vmem>>, %arg14: memref<128x32xf32, #tpu.memory_space<vmem>>) attributes {dimension_semantics = [#tpu.dimension_semantics<parallel>], iteration_bounds = array<i64: 1>, scalar_prefetch = 0 : i64, scratch_operands = 0 : i64, tpu.core_type = #tpu.core_type<tc>, window_params = [{transform_indices = @transform_0, window_bounds = array<i64: 256, 1>}, {pipeline_mode = #tpu.pipeline_mode<synchronous>, transform_indices = @transform_1, window_bounds = array<i64: 64, 32>}, {transform_indices = @transform_2, window_bounds = array<i64: 128, 32>}, {pipeline_mode = #tpu.pipeline_mode<synchronous>, transform_indices = @transform_3, window_bounds = array<i64: 32, 32>}, {pipeline_mode = #tpu.pipeline_mode<synchronous>, transform_indices = @transform_4, window_bounds = array<i64: 32, 32>}, {pipeline_mode = #tpu.pipeline_mode<synchronous>, transform_indices = @transform_5, window_bounds = array<i64: 32, 32>}, {pipeline_mode = #tpu.pipeline_mode<synchronous>, transform_indices = @transform_6, window_bounds = array<i64: 1, 32>}, {pipeline_mode = #tpu.pipeline_mode<synchronous>, transform_indices = @transform_7, window_bounds = array<i64: 1, 32>}, {pipeline_mode = #tpu.pipeline_mode<synchronous>, transform_indices = @transform_8, window_bounds = array<i64: 1, 32>}, {pipeline_mode = #tpu.pipeline_mode<synchronous>, transform_indices = @transform_9, window_bounds = array<i64: 32, 32>}, {pipeline_mode = #tpu.pipeline_mode<synchronous>, transform_indices = @transform_10, window_bounds = array<i64: 1, 32>}, {pipeline_mode = #tpu.pipeline_mode<synchronous>, transform_indices = @transform_11, window_bounds = array<i64: 1, 32>}, {pipeline_mode = #tpu.pipeline_mode<synchronous>, transform_indices = @transform_12, window_bounds = array<i64: 1, 32>}, {transform_indices = @transform_13, window_bounds = array<i64: 128, 32>}]} {
    %c0 = arith.constant 0 : index
    %c0_0 = arith.constant 0 : index
    %0 = vector.load %arg1[%c0, %c0_0] : memref<256x1xi32, #tpu.memory_space<vmem>>, vector<256x1xi32>
    %1 = tpu.iota {dimensions = array<i32: 1>} : vector<256x64xi32>
    %2 = vector.broadcast %0 : vector<256x1xi32> to vector<256x64xi32>
    %3 = arith.cmpi eq, %1, %2 : vector<256x64xi32>
    %4 = arith.extui %3 : vector<256x64xi1> to vector<256x64xi32>
    %5 = arith.sitofp %4 : vector<256x64xi32> to vector<256x64xf32>
    %6 = arith.truncf %5 : vector<256x64xf32> to vector<256x64xbf16>
    %c0_1 = arith.constant 0 : index
    %c0_2 = arith.constant 0 : index
    %7 = vector.load %arg2[%c0_1, %c0_2] : memref<64x32xbf16, #tpu.memory_space<vmem>>, vector<64x32xbf16>
    %cst = arith.constant dense<0.000000e+00> : vector<256x32xf32>
    %8 = tpu.matmul %6, %7, %cst {dimension_numbers = #tpu.dot_dimension_numbers<[1], [0], [0], [1], [0, 0, 1, 1], [], []>} : vector<256x64xbf16>, vector<64x32xbf16>, vector<256x32xf32> -> vector<256x32xf32>
    %9 = vector.extract_strided_slice %8 {offsets = [0, 0], sizes = [128, 32], strides = [1, 1]} : vector<256x32xf32> to vector<128x32xf32>
    %10 = vector.extract_strided_slice %8 {offsets = [128, 0], sizes = [128, 32], strides = [1, 1]} : vector<256x32xf32> to vector<128x32xf32>
    %c0_3 = arith.constant 0 : index
    %c0_4 = arith.constant 0 : index
    %11 = vector.load %arg3[%c0_3, %c0_4] : memref<128x32xbf16, #tpu.memory_space<vmem>>, vector<128x32xbf16>
    %12 = arith.extf %11 : vector<128x32xbf16> to vector<128x32xf32>
    %13 = arith.truncf %9 : vector<128x32xf32> to vector<128x32xbf16>
    %14 = arith.truncf %10 : vector<128x32xf32> to vector<128x32xbf16>
    %c0_5 = arith.constant 0 : index
    %c0_6 = arith.constant 0 : index
    %15 = vector.load %arg3[%c0_5, %c0_6] : memref<128x32xbf16, #tpu.memory_space<vmem>>, vector<128x32xbf16>
    %c0_7 = arith.constant 0 : index
    %c0_8 = arith.constant 0 : index
    %16 = vector.load %arg4[%c0_7, %c0_8] : memref<32x32xbf16, #tpu.memory_space<vmem>>, vector<32x32xbf16>
    %cst_9 = arith.constant dense<0.000000e+00> : vector<128x32xf32>
    %17 = tpu.matmul %13, %16, %cst_9 {dimension_numbers = #tpu.dot_dimension_numbers<[1], [0], [0], [1], [0, 0, 1, 1], [], []>} : vector<128x32xbf16>, vector<32x32xbf16>, vector<128x32xf32> -> vector<128x32xf32>
    %c0_10 = arith.constant 0 : index
    %c0_11 = arith.constant 0 : index
    %18 = vector.load %arg5[%c0_10, %c0_11] : memref<32x32xbf16, #tpu.memory_space<vmem>>, vector<32x32xbf16>
    %cst_12 = arith.constant dense<0.000000e+00> : vector<128x32xf32>
    %19 = tpu.matmul %14, %18, %cst_12 {dimension_numbers = #tpu.dot_dimension_numbers<[1], [0], [0], [1], [0, 0, 1, 1], [], []>} : vector<128x32xbf16>, vector<32x32xbf16>, vector<128x32xf32> -> vector<128x32xf32>
    %20 = arith.addf %17, %19 : vector<128x32xf32>
    %c0_13 = arith.constant 0 : index
    %c0_14 = arith.constant 0 : index
    %21 = vector.load %arg6[%c0_13, %c0_14] : memref<32x32xbf16, #tpu.memory_space<vmem>>, vector<32x32xbf16>
    %cst_15 = arith.constant dense<0.000000e+00> : vector<128x32xf32>
    %22 = tpu.matmul %15, %21, %cst_15 {dimension_numbers = #tpu.dot_dimension_numbers<[1], [0], [0], [1], [0, 0, 1, 1], [], []>} : vector<128x32xbf16>, vector<32x32xbf16>, vector<128x32xf32> -> vector<128x32xf32>
    %23 = arith.addf %20, %22 : vector<128x32xf32>
    %c0_16 = arith.constant 0 : index
    %c0_17 = arith.constant 0 : index
    %24 = vector.load %arg7[%c0_16, %c0_17] : memref<1x32xf32, #tpu.memory_space<vmem>>, vector<1x32xf32>
    %25 = vector.broadcast %24 : vector<1x32xf32> to vector<128x32xf32>
    %26 = arith.addf %23, %25 : vector<128x32xf32>
    %c0_18 = arith.constant 0 : index
    %c0_19 = arith.constant 0 : index
    %27 = vector.load %arg8[%c0_18, %c0_19] : memref<1x32xf32, #tpu.memory_space<vmem>>, vector<1x32xf32>
    %c0_20 = arith.constant 0 : index
    %c0_21 = arith.constant 0 : index
    %28 = vector.load %arg9[%c0_20, %c0_21] : memref<1x32xf32, #tpu.memory_space<vmem>>, vector<1x32xf32>
    %cst_22 = arith.constant dense<0.000000e+00> : vector<128xf32>
    %29 = vector.multi_reduction <add>, %26, %cst_22 [1] : vector<128x32xf32> to vector<128xf32>
    %30 = vector.shape_cast %29 : vector<128xf32> to vector<128x1xf32>
    %cst_23 = arith.constant 3.200000e+01 : f32
    %31 = vector.broadcast %cst_23 : f32 to vector<128x1xf32>
    %32 = arith.divf %30, %31 : vector<128x1xf32>
    %33 = vector.broadcast %32 : vector<128x1xf32> to vector<128x32xf32>
    %34 = arith.subf %26, %33 : vector<128x32xf32>
    %35 = arith.mulf %34, %34 : vector<128x32xf32>
    %cst_24 = arith.constant dense<0.000000e+00> : vector<128xf32>
    %36 = vector.multi_reduction <add>, %35, %cst_24 [1] : vector<128x32xf32> to vector<128xf32>
    %37 = vector.shape_cast %36 : vector<128xf32> to vector<128x1xf32>
    %cst_25 = arith.constant 3.200000e+01 : f32
    %38 = vector.broadcast %cst_25 : f32 to vector<128x1xf32>
    %39 = arith.divf %37, %38 : vector<128x1xf32>
    %cst_26 = arith.constant 9.99999974E-6 : f32
    %40 = vector.broadcast %cst_26 : f32 to vector<128x1xf32>
    %41 = arith.addf %39, %40 : vector<128x1xf32>
    %42 = math.rsqrt %41 : vector<128x1xf32>
    %43 = vector.broadcast %42 : vector<128x1xf32> to vector<128x32xf32>
    %44 = arith.mulf %34, %43 : vector<128x32xf32>
    %45 = vector.broadcast %27 : vector<1x32xf32> to vector<128x32xf32>
    %46 = arith.mulf %44, %45 : vector<128x32xf32>
    %47 = vector.broadcast %28 : vector<1x32xf32> to vector<128x32xf32>
    %48 = arith.addf %46, %47 : vector<128x32xf32>
    %cst_27 = arith.constant 0.000000e+00 : f32
    %49 = vector.broadcast %cst_27 : f32 to vector<128x32xf32>
    %50 = arith.maximumf %48, %49 : vector<128x32xf32>
    %c0_28 = arith.constant 0 : index
    %c0_29 = arith.constant 0 : index
    %51 = vector.load %arg10[%c0_28, %c0_29] : memref<32x32xbf16, #tpu.memory_space<vmem>>, vector<32x32xbf16>
    %c0_30 = arith.constant 0 : index
    %c0_31 = arith.constant 0 : index
    %52 = vector.load %arg11[%c0_30, %c0_31] : memref<1x32xf32, #tpu.memory_space<vmem>>, vector<1x32xf32>
    %53 = arith.truncf %50 : vector<128x32xf32> to vector<128x32xbf16>
    %cst_32 = arith.constant dense<0.000000e+00> : vector<128x32xf32>
    %54 = tpu.matmul %53, %51, %cst_32 {dimension_numbers = #tpu.dot_dimension_numbers<[1], [0], [0], [1], [0, 0, 1, 1], [], []>} : vector<128x32xbf16>, vector<32x32xbf16>, vector<128x32xf32> -> vector<128x32xf32>
    %55 = vector.broadcast %52 : vector<1x32xf32> to vector<128x32xf32>
    %56 = arith.addf %54, %55 : vector<128x32xf32>
    %c0_33 = arith.constant 0 : index
    %c0_34 = arith.constant 0 : index
    %57 = vector.load %arg12[%c0_33, %c0_34] : memref<1x32xf32, #tpu.memory_space<vmem>>, vector<1x32xf32>
    %c0_35 = arith.constant 0 : index
    %c0_36 = arith.constant 0 : index
    %58 = vector.load %arg13[%c0_35, %c0_36] : memref<1x32xf32, #tpu.memory_space<vmem>>, vector<1x32xf32>
    %cst_37 = arith.constant dense<0.000000e+00> : vector<128xf32>
    %59 = vector.multi_reduction <add>, %56, %cst_37 [1] : vector<128x32xf32> to vector<128xf32>
    %60 = vector.shape_cast %59 : vector<128xf32> to vector<128x1xf32>
    %cst_38 = arith.constant 3.200000e+01 : f32
    %61 = vector.broadcast %cst_38 : f32 to vector<128x1xf32>
    %62 = arith.divf %60, %61 : vector<128x1xf32>
    %63 = vector.broadcast %62 : vector<128x1xf32> to vector<128x32xf32>
    %64 = arith.subf %56, %63 : vector<128x32xf32>
    %65 = arith.mulf %64, %64 : vector<128x32xf32>
    %cst_39 = arith.constant dense<0.000000e+00> : vector<128xf32>
    %66 = vector.multi_reduction <add>, %65, %cst_39 [1] : vector<128x32xf32> to vector<128xf32>
    %67 = vector.shape_cast %66 : vector<128xf32> to vector<128x1xf32>
    %cst_40 = arith.constant 3.200000e+01 : f32
    %68 = vector.broadcast %cst_40 : f32 to vector<128x1xf32>
    %69 = arith.divf %67, %68 : vector<128x1xf32>
    %cst_41 = arith.constant 9.99999974E-6 : f32
    %70 = vector.broadcast %cst_41 : f32 to vector<128x1xf32>
    %71 = arith.addf %69, %70 : vector<128x1xf32>
    %72 = math.rsqrt %71 : vector<128x1xf32>
    %73 = vector.broadcast %72 : vector<128x1xf32> to vector<128x32xf32>
    %74 = arith.mulf %64, %73 : vector<128x32xf32>
    %75 = vector.broadcast %57 : vector<1x32xf32> to vector<128x32xf32>
    %76 = arith.mulf %74, %75 : vector<128x32xf32>
    %77 = vector.broadcast %58 : vector<1x32xf32> to vector<128x32xf32>
    %78 = arith.addf %76, %77 : vector<128x32xf32>
    %79 = math.tanh %78 : vector<128x32xf32>
    %80 = arith.addf %79, %12 : vector<128x32xf32>
    %c0_42 = arith.constant 0 : index
    %c0_43 = arith.constant 0 : index
    %81 = vector.load %arg14[%c0_42, %c0_43] : memref<128x32xf32, #tpu.memory_space<vmem>>, vector<128x32xf32>
    tpu.vector_store %arg14[%c0_42, %c0_43], %80 {strides = array<i32>} : memref<128x32xf32, #tpu.memory_space<vmem>>, vector<128x32xf32>,
    return
  }
  func.func @transform_0(%arg0: i32) -> (i32, i32) {
    %c0_i32 = arith.constant 0 : i32
    %c0_i32_0 = arith.constant 0 : i32
    return %arg0, %c0_i32 : i32, i32
  }
  func.func @transform_1(%arg0: i32) -> (i32, i32) {
    %c0_i32 = arith.constant 0 : i32
    %c0_i32_0 = arith.constant 0 : i32
    %c0_i32_1 = arith.constant 0 : i32
    return %c0_i32, %c0_i32_0 : i32, i32
  }
  func.func @transform_2(%arg0: i32) -> (i32, i32) {
    %c0_i32 = arith.constant 0 : i32
    %c0_i32_0 = arith.constant 0 : i32
    return %arg0, %c0_i32 : i32, i32
  }
  func.func @transform_3(%arg0: i32) -> (i32, i32) {
    %c0_i32 = arith.constant 0 : i32
    %c0_i32_0 = arith.constant 0 : i32
    %c0_i32_1 = arith.constant 0 : i32
    return %c0_i32, %c0_i32_0 : i32, i32
  }
  func.func @transform_4(%arg0: i32) -> (i32, i32) {
    %c0_i32 = arith.constant 0 : i32
    %c0_i32_0 = arith.constant 0 : i32
    %c0_i32_1 = arith.constant 0 : i32
    return %c0_i32, %c0_i32_0 : i32, i32
  }
  func.func @transform_5(%arg0: i32) -> (i32, i32) {
    %c0_i32 = arith.constant 0 : i32
    %c0_i32_0 = arith.constant 0 : i32
    %c0_i32_1 = arith.constant 0 : i32
    return %c0_i32, %c0_i32_0 : i32, i32
  }
  func.func @transform_6(%arg0: i32) -> (i32, i32) {
    %c0_i32 = arith.constant 0 : i32
    %c0_i32_0 = arith.constant 0 : i32
    %c0_i32_1 = arith.constant 0 : i32
    return %c0_i32, %c0_i32_0 : i32, i32
  }
  func.func @transform_7(%arg0: i32) -> (i32, i32) {
    %c0_i32 = arith.constant 0 : i32
    %c0_i32_0 = arith.constant 0 : i32
    %c0_i32_1 = arith.constant 0 : i32
    return %c0_i32, %c0_i32_0 : i32, i32
  }
  func.func @transform_8(%arg0: i32) -> (i32, i32) {
    %c0_i32 = arith.constant 0 : i32
    %c0_i32_0 = arith.constant 0 : i32
    %c0_i32_1 = arith.constant 0 : i32
    return %c0_i32, %c0_i32_0 : i32, i32
  }
  func.func @transform_9(%arg0: i32) -> (i32, i32) {
    %c0_i32 = arith.constant 0 : i32
    %c0_i32_0 = arith.constant 0 : i32
    %c0_i32_1 = arith.constant 0 : i32
    return %c0_i32, %c0_i32_0 : i32, i32
  }
  func.func @transform_10(%arg0: i32) -> (i32, i32) {
    %c0_i32 = arith.constant 0 : i32
    %c0_i32_0 = arith.constant 0 : i32
    %c0_i32_1 = arith.constant 0 : i32
    return %c0_i32, %c0_i32_0 : i32, i32
  }
  func.func @transform_11(%arg0: i32) -> (i32, i32) {
    %c0_i32 = arith.constant 0 : i32
    %c0_i32_0 = arith.constant 0 : i32
    %c0_i32_1 = arith.constant 0 : i32
    return %c0_i32, %c0_i32_0 : i32, i32
  }
  func.func @transform_12(%arg0: i32) -> (i32, i32) {
    %c0_i32 = arith.constant 0 : i32
    %c0_i32_0 = arith.constant 0 : i32
    %c0_i32_1 = arith.constant 0 : i32
    return %c0_i32, %c0_i32_0 : i32, i32
  }
  func.func @transform_13(%arg0: i32) -> (i32, i32) {
    %c0_i32 = arith.constant 0 : i32
    %c0_i32_0 = arith.constant 0 : i32
    return %arg0, %c0_i32 : i32, i32
  }
}

</mosaic_0001>

<llo_original>
// kernel: interaction_gnn_block.2
$region0: #{interaction_gnn_block.2}
  #allocation0 [shape = 'u32[]', space=smem, size = 0x4, offset = 0x4, fixed_abs, tag = 'smem constant byte address 0x4 - core index']
  #allocation1 [shape = 'u32[144,128]{1,0:T(1,128)}', space=vmem, size = 0x12000, scoped, tag = 'internal scratch']
  #allocation2 [shape = 'f32[64,32]{1,0:T(8,128)}', space=vmem, size = 0x8000, scoped, tag = 'scratch operand']
  %s0 = inlined_call_operand.vmem [shape: s32[1,128], index: 0, kind: input, shape index: {}]
  %s1 = inlined_call_operand.vmem [shape: bf16[128,32], index: 1, kind: input, shape index: {}]
  %s2 = inlined_call_operand.vmem [shape: f32[64,32], index: 2, kind: input, shape index: {}]
  %s3 = inlined_call_operand.vmem [shape: bf16[32,32], index: 3, kind: input, shape index: {}]
  %s4 = inlined_call_operand.vmem [shape: bf16[32,32], index: 4, kind: input, shape index: {}]
  %s5 = inlined_call_operand.vmem [shape: f32[1,32], index: 5, kind: input, shape index: {}]
  %s6 = inlined_call_operand.vmem [shape: f32[1,32], index: 6, kind: input, shape index: {}, may-alias: {6,10}]
  %s7 = inlined_call_operand.vmem [shape: f32[1,32], index: 7, kind: input, shape index: {}, may-alias: {7,11}]
  %s8 = inlined_call_operand.vmem [shape: bf16[32,32], index: 8, kind: input, shape index: {}]
  %s9 = inlined_call_operand.vmem [shape: f32[1,32], index: 9, kind: input, shape index: {}]
  %s10 = inlined_call_operand.vmem [shape: f32[1,32], index: 10, kind: input, shape index: {}, may-alias: {6,10}]
  %s11 = inlined_call_operand.vmem [shape: f32[1,32], index: 11, kind: input, shape index: {}, may-alias: {7,11}]
  %s12 = inlined_call_operand.vmem [shape: f32[64,32], index: 12, kind: output, shape index: {}]
  %s13 = sld [smem:[#allocation0]]
  $region66: #{interaction_gnn_block.2} parent=0
    _
  %s15 = ssub.s32 1, %s13
  %s16 = scalar_select 0, %s15, %s13
  // Predicated region
  $region2: #{interaction_gnn_block.2} parent=0 // pred_check
    _
  $region3: #{interaction_gnn_block.2} parent=0 // pred_check_branch
    %18 = sbr.rel (0) target = $region5
  $region4: #{interaction_gnn_block.2} parent=0 // pred_region
    _
  $region5: #{interaction_gnn_block.2} parent=0 // pred_fallthru
    _
  // Predicated region
  $region6: #{interaction_gnn_block.2} parent=0 // pred_check
    _
  $region7: #{interaction_gnn_block.2} parent=0 // pred_check_branch
    %20 = sbr.rel (0) target = $region9
  $region8: #{interaction_gnn_block.2} parent=0 // pred_region
    _
  $region9: #{interaction_gnn_block.2} parent=0 // pred_fallthru
    _
  // Predicated region
  $region10: #{interaction_gnn_block.2} parent=0 // pred_check
    _
  $region11: #{interaction_gnn_block.2} parent=0 // pred_check_branch
    %22 = sbr.rel (0) target = $region13
  $region12: #{interaction_gnn_block.2} parent=0 // pred_region
    _
  $region13: #{interaction_gnn_block.2} parent=0 // pred_fallthru
    _
  // Predicated region
  $region14: #{interaction_gnn_block.2} parent=0 // pred_check
    _
  $region15: #{interaction_gnn_block.2} parent=0 // pred_check_branch
    %24 = sbr.rel (0) target = $region17
  $region16: #{interaction_gnn_block.2} parent=0 // pred_region
    _
  $region17: #{interaction_gnn_block.2} parent=0 // pred_fallthru
    _
  // Predicated region
  $region18: #{interaction_gnn_block.2} parent=0 // pred_check
    _
  $region19: #{interaction_gnn_block.2} parent=0 // pred_check_branch
    %26 = sbr.rel (0) target = $region21
  $region20: #{interaction_gnn_block.2} parent=0 // pred_region
    _
  $region21: #{interaction_gnn_block.2} parent=0 // pred_fallthru
    _
  // Predicated region
  $region22: #{interaction_gnn_block.2} parent=0 // pred_check
    _
  $region23: #{interaction_gnn_block.2} parent=0 // pred_check_branch
    %28 = sbr.rel (0) target = $region25
  $region24: #{interaction_gnn_block.2} parent=0 // pred_region
    _
  $region25: #{interaction_gnn_block.2} parent=0 // pred_fallthru
    _
  // Predicated region
  $region26: #{interaction_gnn_block.2} parent=0 // pred_check
    _
  $region27: #{interaction_gnn_block.2} parent=0 // pred_check_branch
    %30 = sbr.rel (0) target = $region29
  $region28: #{interaction_gnn_block.2} parent=0 // pred_region
    _
  $region29: #{interaction_gnn_block.2} parent=0 // pred_fallthru
    _
  // Predicated region
  $region30: #{interaction_gnn_block.2} parent=0 // pred_check
    _
  $region31: #{interaction_gnn_block.2} parent=0 // pred_check_branch
    %32 = sbr.rel (0) target = $region33
  $region32: #{interaction_gnn_block.2} parent=0 // pred_region
    _
  $region33: #{interaction_gnn_block.2} parent=0 // pred_fallthru
    _
  // Predicated region
  $region34: #{interaction_gnn_block.2} parent=0 // pred_check
    _
  $region35: #{interaction_gnn_block.2} parent=0 // pred_check_branch
    %34 = sbr.rel (0) target = $region37
  $region36: #{interaction_gnn_block.2} parent=0 // pred_region
    _
  $region37: #{interaction_gnn_block.2} parent=0 // pred_fallthru
    _
  // Predicated region
  $region38: #{interaction_gnn_block.2} parent=0 // pred_check
    _
  $region39: #{interaction_gnn_block.2} parent=0 // pred_check_branch
    %36 = sbr.rel (0) target = $region41
  $region40: #{interaction_gnn_block.2} parent=0 // pred_region
    _
  $region41: #{interaction_gnn_block.2} parent=0 // pred_fallthru
    _
  // Predicated region
  $region42: #{interaction_gnn_block.2} parent=0 // pred_check
    _
  $region43: #{interaction_gnn_block.2} parent=0 // pred_check_branch
    %38 = sbr.rel (0) target = $region45
  $region44: #{interaction_gnn_block.2} parent=0 // pred_region
    _
  $region45: #{interaction_gnn_block.2} parent=0 // pred_fallthru
    _
  // Predicated region
  $region46: #{interaction_gnn_block.2} parent=0 // pred_check
    _
  $region47: #{interaction_gnn_block.2} parent=0 // pred_check_branch
    %40 = sbr.rel (0) target = $region49
  $region48: #{interaction_gnn_block.2} parent=0 // pred_region
    _
  $region49: #{interaction_gnn_block.2} parent=0 // pred_fallthru
    _
  %p42 = scmp.eq.s32.totalorder 0, 0
  // Predicated region
  $region50: #{interaction_gnn_block.2} parent=0 // pred_check
    %p43 = pneg %p42
  $region51: #{interaction_gnn_block.2} parent=0 // pred_check_branch
    %45 = sbr.rel (%p43) target = $region53
  $region52: #{interaction_gnn_block.2} parent=0 // pred_region
    %vm46 = vcmask 261120
    %47 = vst.msk [vmem:[#allocation2] sm:$0xff] %vm46, 0.0
    %48 = vst.msk [vmem:[#allocation2 + $0x8] sm:$0xff] %vm46, 0.0
    %49 = vst.msk [vmem:[#allocation2 + $0x10] sm:$0xff] %vm46, 0.0
    %50 = vst.msk [vmem:[#allocation2 + $0x18] sm:$0xff] %vm46, 0.0
    %51 = vst.msk [vmem:[#allocation2 + $0x20] sm:$0xff] %vm46, 0.0
    %52 = vst.msk [vmem:[#allocation2 + $0x28] sm:$0xff] %vm46, 0.0
    %53 = vst.msk [vmem:[#allocation2 + $0x30] sm:$0xff] %vm46, 0.0
    %54 = vst.msk [vmem:[#allocation2 + $0x38] sm:$0xff] %vm46, 0.0
  $region53: #{interaction_gnn_block.2} parent=0 // pred_fallthru
    _
  %s55 = smul.u32 0, 64
  %v56 = vld [vmem:[%s0] sm:$0x1]
  %v57 = vstv %s55
  %v58 = vsub.s32 %v56, %v57
  %v59 = vlaneseq
  %v60 = vshrl.u32 %v59, 7
  %v61 = vadd.s32 %v60, 8
  %v62 = vadd.s32 %v60, 16
  %v63 = vadd.s32 %v60, 24
  %v64 = vadd.s32 %v60, 32
  %v65 = vadd.s32 %v60, 40
  %v66 = vadd.s32 %v60, 48
  %v67 = vadd.s32 %v60, 56
  %v68 = vlaneseq
  %v69 = vshrl.u32 %v68, 7
  %v70 = vsub.s32 0, %v69
  %v71 = vrot.slane %v58, %v70
  %vm72 = vcmp.eq.s32.totalorder %v60, %v71
  %vm73 = vcmp.eq.s32.totalorder %v61, %v71
  %vm74 = vcmp.eq.s32.totalorder %v62, %v71
  %vm75 = vcmp.eq.s32.totalorder %v63, %v71
  %vm76 = vcmp.eq.s32.totalorder %v64, %v71
  %vm77 = vcmp.eq.s32.totalorder %v65, %v71
  %vm78 = vcmp.eq.s32.totalorder %v66, %v71
  %vm79 = vcmp.eq.s32.totalorder %v67, %v71
  %v80 = vsel %vm72, 1, 0
  %v81 = vsel %vm73, 1, 0
  %v82 = vsel %vm74, 1, 0
  %v83 = vsel %vm75, 1, 0
  %v84 = vsel %vm76, 1, 0
  %v85 = vsel %vm77, 1, 0
  %v86 = vsel %vm78, 1, 0
  %v87 = vsel %vm79, 1, 0
  %v88 = vcvt.s32.f32 %v80
  %v89 = vcvt.s32.f32 %v81
  %v90 = vcvt.s32.f32 %v82
  %v91 = vcvt.s32.f32 %v83
  %v92 = vcvt.s32.f32 %v84
  %v93 = vcvt.s32.f32 %v85
  %v94 = vcvt.s32.f32 %v86
  %v95 = vcvt.s32.f32 %v87
  %v96 = vpack.c.bf16 %v89, %v88
  %v97 = vpack.c.bf16 %v91, %v90
  %v98 = vpack.c.bf16 %v93, %v92
  %v99 = vpack.c.bf16 %v95, %v94
  %v100 = vld [vmem:[#allocation2] sm:$0xff]
  %v101 = vld [vmem:[#allocation2 + $0x8] sm:$0xff]
  %v102 = vld [vmem:[#allocation2 + $0x10] sm:$0xff]
  %v103 = vld [vmem:[#allocation2 + $0x18] sm:$0xff]
  %v104 = vld [vmem:[#allocation2 + $0x20] sm:$0xff]
  %v105 = vld [vmem:[#allocation2 + $0x28] sm:$0xff]
  %v106 = vld [vmem:[#allocation2 + $0x30] sm:$0xff]
  %v107 = vld [vmem:[#allocation2 + $0x38] sm:$0xff]
  %v108 = vld [vmem:[%s1] sm:$0xf]
  %v109 = vld [vmem:[%s1 + $0x4] sm:$0xf]
  %v110 = vld [vmem:[%s1 + $0x8] sm:$0xf]
  %v111 = vld [vmem:[%s1 + $0xc] sm:$0xf]
  %v112 = vld [vmem:[%s1 + $0x10] sm:$0xf]
  %v113 = vld [vmem:[%s1 + $0x14] sm:$0xf]
  %v114 = vld [vmem:[%s1 + $0x18] sm:$0xf]
  %v115 = vld [vmem:[%s1 + $0x1c] sm:$0xf]
  %v116 = vld [vmem:[%s1 + $0x20] sm:$0xf]
  %v117 = vld [vmem:[%s1 + $0x24] sm:$0xf]
  %v118 = vld [vmem:[%s1 + $0x28] sm:$0xf]
  %v119 = vld [vmem:[%s1 + $0x2c] sm:$0xf]
  %v120 = vld [vmem:[%s1 + $0x30] sm:$0xf]
  %v121 = vld [vmem:[%s1 + $0x34] sm:$0xf]
  %v122 = vld [vmem:[%s1 + $0x38] sm:$0xf]
  %v123 = vld [vmem:[%s1 + $0x3c] sm:$0xf]
  %v140 = vunpack.c.l.b16 %v108
  %v141 = vunpack.c.l.b16 %v109
  %v142 = vunpack.c.l.b16 %v110
  %v143 = vunpack.c.l.b16 %v111
  %v144 = vunpack.c.l.b16 %v112
  %v145 = vunpack.c.l.b16 %v113
  %v146 = vunpack.c.l.b16 %v114
  %v147 = vunpack.c.l.b16 %v115
  %v148 = vunpack.c.l.b16 %v116
  %v149 = vunpack.c.l.b16 %v117
  %v150 = vunpack.c.l.b16 %v118
  %v151 = vunpack.c.l.b16 %v119
  %v152 = vunpack.c.l.b16 %v120
  %v153 = vunpack.c.l.b16 %v121
  %v154 = vunpack.c.l.b16 %v122
  %v155 = vunpack.c.l.b16 %v123
  %v156 = vpack.c.b16 %v141, %v140
  %v157 = vpack.c.b16 %v143, %v142
  %v158 = vpack.c.b16 %v145, %v144
  %v159 = vpack.c.b16 %v147, %v146
  %v160 = vpack.c.b16 %v149, %v148
  %v161 = vpack.c.b16 %v151, %v150
  %v162 = vpack.c.b16 %v153, %v152
  %v163 = vpack.c.b16 %v155, %v154
  %172 = vmatprep.subr.bf16.mxu0 0
  %173 = vmatpush1.bf16.msra.mxu0 %v163
  %174 = vmatprep.subr.bf16.mxu0 0
  %175 = vmatpush1.bf16.msra.mxu0 %v162
  %176 = vmatprep.subr.bf16.mxu0 0
  %177 = vmatpush1.bf16.msra.mxu0 %v161
  %178 = vmatprep.subr.bf16.mxu0 0
  %179 = vmatpush1.bf16.msra.mxu0 %v160
  %180 = vmatprep.subr.bf16.mxu0 0
  %181 = vmatpush1.bf16.msra.mxu0 %v159
  %182 = vmatprep.subr.bf16.mxu0 0
  %183 = vmatpush1.bf16.msra.mxu0 %v158
  %184 = vmatprep.subr.bf16.mxu0 0
  %185 = vmatpush1.bf16.msra.mxu0 %v157
  %186 = vmatprep.subr.bf16.mxu0 0
  %187 = vmatpush1.bf16.msra.mxu0 %v156
  %188 = vmatprep.subr.bf16.mxu0 0
  %189 = vmatpush2.bf16.msra.mxu0 0
  %190 = vmatprep.subr.bf16.mxu0 0
  %191 = vmatpush2.bf16.msra.mxu0 0
  %192 = vmatprep.subr.bf16.mxu0 0
  %193 = vmatpush2.bf16.msra.mxu0 0
  %194 = vmatprep.subr.bf16.mxu0 0
  %195 = vmatpush2.bf16.msra.mxu0 0
  %196 = vmatprep.subr.bf16.mxu0 0
  %197 = vmatpush2.bf16.msra.mxu0 0
  %198 = vmatprep.subr.bf16.mxu0 0
  %199 = vmatpush2.bf16.msra.mxu0 0
  %200 = vmatprep.subr.bf16.mxu0 0
  %201 = vmatpush2.bf16.msra.mxu0 0
  %202 = vmatprep.subr.bf16.mxu0 0
  %203 = vmatpush2.bf16.msra.mxu0 0
  %204 = vmatprep.mubr.bf16.mxu0 0
  %205 = vmatmul.mubr.bf16.gmra.mxu0 %v96
  %v206 = vpop.f32.mrf.mxu0
  %v207 = vadd.f32 0.0, %v206
  %v208 = vpop.f32.mrf.mxu0
  %v209 = vpop.f32.mrf.mxu0
  %v210 = vadd.f32 0.0, %v209
  %v211 = vpop.f32.mrf.mxu0
  %212 = vmatprep.mubr.bf16.mxu0 0
  %213 = vmatmul.mubr.bf16.gmra.mxu0 %v97
  %v214 = vpop.f32.mrf.mxu0
  %v215 = vadd.f32 0.0, %v214
  %v216 = vpop.f32.mrf.mxu0
  %v217 = vpop.f32.mrf.mxu0
  %v218 = vadd.f32 0.0, %v217
  %v219 = vpop.f32.mrf.mxu0
  %220 = vmatprep.mubr.bf16.mxu0 0
  %221 = vmatmul.mubr.bf16.gmra.mxu0 %v98
  %v222 = vpop.f32.mrf.mxu0
  %v223 = vadd.f32 0.0, %v222
  %v224 = vpop.f32.mrf.mxu0
  %v225 = vpop.f32.mrf.mxu0
  %v226 = vadd.f32 0.0, %v225
  %v227 = vpop.f32.mrf.mxu0
  %228 = vmatprep.mubr.bf16.mxu0 0
  %229 = vmatmul.mubr.bf16.gmra.mxu0 %v99
  %v230 = vpop.f32.mrf.mxu0
  %v231 = vadd.f32 0.0, %v230
  %v232 = vpop.f32.mrf.mxu0
  %v233 = vpop.f32.mrf.mxu0
  %v234 = vadd.f32 0.0, %v233
  %v235 = vpop.f32.mrf.mxu0
  %236 = vdwg.mxu0
  %v237 = vadd.f32 %v100, %v207
  %v238 = vadd.f32 %v101, %v210
  %v239 = vadd.f32 %v102, %v215
  %v240 = vadd.f32 %v103, %v218
  %v241 = vadd.f32 %v104, %v223
  %v242 = vadd.f32 %v105, %v226
  %v243 = vadd.f32 %v106, %v231
  %v244 = vadd.f32 %v107, %v234
  %vm245 = vcmask 261120
  %246 = vst.msk [vmem:[#allocation2] sm:$0xff] %vm245, %v237
  %247 = vst.msk [vmem:[#allocation2 + $0x8] sm:$0xff] %vm245, %v238
  %248 = vst.msk [vmem:[#allocation2 + $0x10] sm:$0xff] %vm245, %v239
  %249 = vst.msk [vmem:[#allocation2 + $0x18] sm:$0xff] %vm245, %v240
  %250 = vst.msk [vmem:[#allocation2 + $0x20] sm:$0xff] %vm245, %v241
  %251 = vst.msk [vmem:[#allocation2 + $0x28] sm:$0xff] %vm245, %v242
  %252 = vst.msk [vmem:[#allocation2 + $0x30] sm:$0xff] %vm245, %v243
  %253 = vst.msk [vmem:[#allocation2 + $0x38] sm:$0xff] %vm245, %v244
  // Predicated region
  $region54: #{interaction_gnn_block.2} parent=0 // pred_check
    %p254 = pneg %p42
  $region55: #{interaction_gnn_block.2} parent=0 // pred_check_branch
    %256 = sbr.rel (%p254) target = $region57
  $region56: #{interaction_gnn_block.2} parent=0 // pred_region
    %v257 = vld [vmem:[%s2] sm:$0xff]
    %v258 = vld [vmem:[%s2 + $0x8] sm:$0xff]
    %v259 = vld [vmem:[%s2 + $0x10] sm:$0xff]
    %v260 = vld [vmem:[%s2 + $0x18] sm:$0xff]
    %v261 = vld [vmem:[%s2 + $0x20] sm:$0xff]
    %v262 = vld [vmem:[%s2 + $0x28] sm:$0xff]
    %v263 = vld [vmem:[%s2 + $0x30] sm:$0xff]
    %v264 = vld [vmem:[%s2 + $0x38] sm:$0xff]
    %v265 = vpack.c.bf16 %v258, %v257
    %v266 = vpack.c.bf16 %v260, %v259
    %v267 = vpack.c.bf16 %v262, %v261
    %v268 = vpack.c.bf16 %v264, %v263
    %v269 = vld [vmem:[#allocation2] sm:$0xff]
    %v270 = vld [vmem:[#allocation2 + $0x8] sm:$0xff]
    %v271 = vld [vmem:[#allocation2 + $0x10] sm:$0xff]
    %v272 = vld [vmem:[#allocation2 + $0x18] sm:$0xff]
    %v273 = vld [vmem:[#allocation2 + $0x20] sm:$0xff]
    %v274 = vld [vmem:[#allocation2 + $0x28] sm:$0xff]
    %v275 = vld [vmem:[#allocation2 + $0x30] sm:$0xff]
    %v276 = vld [vmem:[#allocation2 + $0x38] sm:$0xff]
    %v277 = vpack.c.bf16 %v270, %v269
    %v278 = vpack.c.bf16 %v272, %v271
    %v279 = vpack.c.bf16 %v274, %v273
    %v280 = vpack.c.bf16 %v276, %v275
    %v281 = vld [vmem:[%s3] sm:$0xf]
    %v282 = vld [vmem:[%s3 + $0x4] sm:$0xf]
    %v283 = vld [vmem:[%s3 + $0x8] sm:$0xf]
    %v284 = vld [vmem:[%s3 + $0xc] sm:$0xf]
    %v285 = vld [vmem:[%s4] sm:$0xf]
    %v286 = vld [vmem:[%s4 + $0x4] sm:$0xf]
    %v287 = vld [vmem:[%s4 + $0x8] sm:$0xf]
    %v288 = vld [vmem:[%s4 + $0xc] sm:$0xf]
    %v293 = vunpack.c.l.b16 %v285
    %v294 = vunpack.c.l.b16 %v286
    %v295 = vunpack.c.l.b16 %v287
    %v296 = vunpack.c.l.b16 %v288
    %v297 = vpack.c.b16 %v294, %v293
    %v298 = vpack.c.b16 %v296, %v295
    %v302 = vsel %vm245, %v277, 0
    %v305 = vsel %vm245, %v278, 0
    %v308 = vsel %vm245, %v279, 0
    %v311 = vsel %vm245, %v280, 0
    %313 = vmatprep.subr.bf16.mxu0 0
    %314 = vmatpush1.bf16.msra.mxu0 0
    %315 = vmatprep.subr.bf16.mxu0 0
    %316 = vmatpush1.bf16.msra.mxu0 0
    %317 = vmatprep.subr.bf16.mxu0 0
    %318 = vmatpush1.bf16.msra.mxu0 0
    %319 = vmatprep.subr.bf16.mxu0 0
    %320 = vmatpush1.bf16.msra.mxu0 0
    %321 = vmatprep.subr.bf16.mxu0 0
    %322 = vmatpush1.bf16.msra.mxu0 0
    %323 = vmatprep.subr.bf16.mxu0 0
    %324 = vmatpush1.bf16.msra.mxu0 0
    %325 = vmatprep.subr.bf16.mxu0 0
    %326 = vmatpush1.bf16.msra.mxu0 %v298
    %327 = vmatprep.subr.bf16.mxu0 0
    %328 = vmatpush1.bf16.msra.mxu0 %v297
    %329 = vmatprep.subr.bf16.mxu0 0
    %330 = vmatpush2.bf16.msra.mxu0 0
    %331 = vmatprep.subr.bf16.mxu0 0
    %332 = vmatpush2.bf16.msra.mxu0 0
    %333 = vmatprep.subr.bf16.mxu0 0
    %334 = vmatpush2.bf16.msra.mxu0 0
    %335 = vmatprep.subr.bf16.mxu0 0
    %336 = vmatpush2.bf16.msra.mxu0 0
    %337 = vmatprep.subr.bf16.mxu0 0
    %338 = vmatpush2.bf16.msra.mxu0 0
    %339 = vmatprep.subr.bf16.mxu0 0
    %340 = vmatpush2.bf16.msra.mxu0 0
    %341 = vmatprep.subr.bf16.mxu0 0
    %342 = vmatpush2.bf16.msra.mxu0 0
    %343 = vmatprep.subr.bf16.mxu0 0
    %344 = vmatpush2.bf16.msra.mxu0 0
    %345 = vmatprep.mubr.bf16.mxu0 0
    %346 = vmatmul.mubr.bf16.gmra.mxu0 %v302
    %v347 = vpop.f32.mrf.mxu0
    %v348 = vadd.f32 0.0, %v347
    %v349 = vpop.f32.mrf.mxu0
    %v350 = vpop.f32.mrf.mxu0
    %v351 = vadd.f32 0.0, %v350
    %v352 = vpop.f32.mrf.mxu0
    %353 = vmatprep.mubr.bf16.mxu0 0
    %354 = vmatmul.mubr.bf16.gmra.mxu0 %v305
    %v355 = vpop.f32.mrf.mxu0
    %v356 = vadd.f32 0.0, %v355
    %v357 = vpop.f32.mrf.mxu0
    %v358 = vpop.f32.mrf.mxu0
    %v359 = vadd.f32 0.0, %v358
    %v360 = vpop.f32.mrf.mxu0
    %361 = vmatprep.mubr.bf16.mxu0 0
    %362 = vmatmul.mubr.bf16.gmra.mxu0 %v308
    %v363 = vpop.f32.mrf.mxu0
    %v364 = vadd.f32 0.0, %v363
    %v365 = vpop.f32.mrf.mxu0
    %v366 = vpop.f32.mrf.mxu0
    %v367 = vadd.f32 0.0, %v366
    %v368 = vpop.f32.mrf.mxu0
    %369 = vmatprep.mubr.bf16.mxu0 0
    %370 = vmatmul.mubr.bf16.gmra.mxu0 %v311
    %v371 = vpop.f32.mrf.mxu0
    %v372 = vadd.f32 0.0, %v371
    %v373 = vpop.f32.mrf.mxu0
    %v374 = vpop.f32.mrf.mxu0
    %v375 = vadd.f32 0.0, %v374
    %v376 = vpop.f32.mrf.mxu0
    %377 = vdwg.mxu0
    %v382 = vunpack.c.l.b16 %v281
    %v383 = vunpack.c.l.b16 %v282
    %v384 = vunpack.c.l.b16 %v283
    %v385 = vunpack.c.l.b16 %v284
    %v386 = vpack.c.b16 %v383, %v382
    %v387 = vpack.c.b16 %v385, %v384
    %v391 = vsel %vm245, %v265, 0
    %v394 = vsel %vm245, %v266, 0
    %v397 = vsel %vm245, %v267, 0
    %v400 = vsel %vm245, %v268, 0
    %402 = vmatprep.subr.bf16.mxu0 0
    %403 = vmatpush1.bf16.msra.mxu0 0
    %404 = vmatprep.subr.bf16.mxu0 0
    %405 = vmatpush1.bf16.msra.mxu0 0
    %406 = vmatprep.subr.bf16.mxu0 0
    %407 = vmatpush1.bf16.msra.mxu0 0
    %408 = vmatprep.subr.bf16.mxu0 0
    %409 = vmatpush1.bf16.msra.mxu0 0
    %410 = vmatprep.subr.bf16.mxu0 0
    %411 = vmatpush1.bf16.msra.mxu0 0
    %412 = vmatprep.subr.bf16.mxu0 0
    %413 = vmatpush1.bf16.msra.mxu0 0
    %414 = vmatprep.subr.bf16.mxu0 0
    %415 = vmatpush1.bf16.msra.mxu0 %v387
    %416 = vmatprep.subr.bf16.mxu0 0
    %417 = vmatpush1.bf16.msra.mxu0 %v386
    %418 = vmatprep.subr.bf16.mxu0 0
    %419 = vmatpush2.bf16.msra.mxu0 0
    %420 = vmatprep.subr.bf16.mxu0 0
    %421 = vmatpush2.bf16.msra.mxu0 0
    %422 = vmatprep.subr.bf16.mxu0 0
    %423 = vmatpush2.bf16.msra.mxu0 0
    %424 = vmatprep.subr.bf16.mxu0 0
    %425 = vmatpush2.bf16.msra.mxu0 0
    %426 = vmatprep.subr.bf16.mxu0 0
    %427 = vmatpush2.bf16.msra.mxu0 0
    %428 = vmatprep.subr.bf16.mxu0 0
    %429 = vmatpush2.bf16.msra.mxu0 0
    %430 = vmatprep.subr.bf16.mxu0 0
    %431 = vmatpush2.bf16.msra.mxu0 0
    %432 = vmatprep.subr.bf16.mxu0 0
    %433 = vmatpush2.bf16.msra.mxu0 0
    %434 = vmatprep.mubr.bf16.mxu0 0
    %435 = vmatmul.mubr.bf16.gmra.mxu0 %v391
    %v436 = vpop.f32.mrf.mxu0
    %v437 = vadd.f32 %v348, %v436
    %v438 = vpop.f32.mrf.mxu0
    %v439 = vpop.f32.mrf.mxu0
    %v440 = vadd.f32 %v351, %v439
    %v441 = vpop.f32.mrf.mxu0
    %442 = vmatprep.mubr.bf16.mxu0 0
    %443 = vmatmul.mubr.bf16.gmra.mxu0 %v394
    %v444 = vpop.f32.mrf.mxu0
    %v445 = vadd.f32 %v356, %v444
    %v446 = vpop.f32.mrf.mxu0
    %v447 = vpop.f32.mrf.mxu0
    %v448 = vadd.f32 %v359, %v447
    %v449 = vpop.f32.mrf.mxu0
    %450 = vmatprep.mubr.bf16.mxu0 0
    %451 = vmatmul.mubr.bf16.gmra.mxu0 %v397
    %v452 = vpop.f32.mrf.mxu0
    %v453 = vadd.f32 %v364, %v452
    %v454 = vpop.f32.mrf.mxu0
    %v455 = vpop.f32.mrf.mxu0
    %v456 = vadd.f32 %v367, %v455
    %v457 = vpop.f32.mrf.mxu0
    %458 = vmatprep.mubr.bf16.mxu0 0
    %459 = vmatmul.mubr.bf16.gmra.mxu0 %v400
    %v460 = vpop.f32.mrf.mxu0
    %v461 = vadd.f32 %v372, %v460
    %v462 = vpop.f32.mrf.mxu0
    %v463 = vpop.f32.mrf.mxu0
    %v464 = vadd.f32 %v375, %v463
    %v465 = vpop.f32.mrf.mxu0
    %466 = vdwg.mxu0
    %v467 = vld [vmem:[%s5] sm:$0x1]
    %v469 = vlaneseq
    %v470 = vshrl.u32 %v469, 7
    %v471 = vsub.s32 0, %v470
    %v472 = vrot.slane %v467, %v471
    %v474 = vadd.f32 %v437, %v472
    %v475 = vadd.f32 %v440, %v472
    %v476 = vadd.f32 %v445, %v472
    %v477 = vadd.f32 %v448, %v472
    %v478 = vadd.f32 %v453, %v472
    %v479 = vadd.f32 %v456, %v472
    %v480 = vadd.f32 %v461, %v472
    %v481 = vadd.f32 %v464, %v472
    %v482 = vld [vmem:[%s6] sm:$0x1]
    %v483 = vld [vmem:[%s7] sm:$0x1]
    %v484 = vsel %vm245, %v474, 0.0
    %485 = vadd.xlane.f32.xlu0 %v484
    %v486 = vpop.xlane.xlu0 %485
    %v487 = vsel %vm245, %v475, 0.0
    %488 = vadd.xlane.f32.xlu0 %v487
    %v489 = vpop.xlane.xlu0 %488
    %v490 = vsel %vm245, %v476, 0.0
    %491 = vadd.xlane.f32.xlu0 %v490
    %v492 = vpop.xlane.xlu0 %491
    %v493 = vsel %vm245, %v477, 0.0
    %494 = vadd.xlane.f32.xlu0 %v493
    %v495 = vpop.xlane.xlu0 %494
    %v496 = vsel %vm245, %v478, 0.0
    %497 = vadd.xlane.f32.xlu0 %v496
    %v498 = vpop.xlane.xlu0 %497
    %v499 = vsel %vm245, %v479, 0.0
    %500 = vadd.xlane.f32.xlu0 %v499
    %v501 = vpop.xlane.xlu0 %500
    %v502 = vsel %vm245, %v480, 0.0
    %503 = vadd.xlane.f32.xlu0 %v502
    %v504 = vpop.xlane.xlu0 %503
    %v505 = vsel %vm245, %v481, 0.0
    %506 = vadd.xlane.f32.xlu0 %v505
    %v507 = vpop.xlane.xlu0 %506
    %v508 = vrcp.pop 32.0
    %v509 = vmul.f32 %v486, %v508
    %v510 = vmul.f32 %v489, %v508
    %v511 = vmul.f32 %v492, %v508
    %v512 = vmul.f32 %v495, %v508
    %v513 = vmul.f32 %v498, %v508
    %v514 = vmul.f32 %v501, %v508
    %v515 = vmul.f32 %v504, %v508
    %v516 = vmul.f32 %v507, %v508
    %v517 = vsub.f32 %v474, %v509
    %v518 = vsub.f32 %v475, %v510
    %v519 = vsub.f32 %v476, %v511
    %v520 = vsub.f32 %v477, %v512
    %v521 = vsub.f32 %v478, %v513
    %v522 = vsub.f32 %v479, %v514
    %v523 = vsub.f32 %v480, %v515
    %v524 = vsub.f32 %v481, %v516
    %v525 = vmul.f32 %v517, %v517
    %v526 = vmul.f32 %v518, %v518
    %v527 = vmul.f32 %v519, %v519
    %v528 = vmul.f32 %v520, %v520
    %v529 = vmul.f32 %v521, %v521
    %v530 = vmul.f32 %v522, %v522
    %v531 = vmul.f32 %v523, %v523
    %v532 = vmul.f32 %v524, %v524
    %v533 = vsel %vm245, %v525, 0.0
    %534 = vadd.xlane.f32.xlu0 %v533
    %v535 = vpop.xlane.xlu0 %534
    %v536 = vsel %vm245, %v526, 0.0
    %537 = vadd.xlane.f32.xlu0 %v536
    %v538 = vpop.xlane.xlu0 %537
    %v539 = vsel %vm245, %v527, 0.0
    %540 = vadd.xlane.f32.xlu0 %v539
    %v541 = vpop.xlane.xlu0 %540
    %v542 = vsel %vm245, %v528, 0.0
    %543 = vadd.xlane.f32.xlu0 %v542
    %v544 = vpop.xlane.xlu0 %543
    %v545 = vsel %vm245, %v529, 0.0
    %546 = vadd.xlane.f32.xlu0 %v545
    %v547 = vpop.xlane.xlu0 %546
    %v548 = vsel %vm245, %v530, 0.0
    %549 = vadd.xlane.f32.xlu0 %v548
    %v550 = vpop.xlane.xlu0 %549
    %v551 = vsel %vm245, %v531, 0.0
    %552 = vadd.xlane.f32.xlu0 %v551
    %v553 = vpop.xlane.xlu0 %552
    %v554 = vsel %vm245, %v532, 0.0
    %555 = vadd.xlane.f32.xlu0 %v554
    %v556 = vpop.xlane.xlu0 %555
    %v557 = vmul.f32 %v535, %v508
    %v558 = vmul.f32 %v538, %v508
    %v559 = vmul.f32 %v541, %v508
    %v560 = vmul.f32 %v544, %v508
    %v561 = vmul.f32 %v547, %v508
    %v562 = vmul.f32 %v550, %v508
    %v563 = vmul.f32 %v553, %v508
    %v564 = vmul.f32 %v556, %v508
    %v565 = vadd.f32 %v557, 1e-05
    %v566 = vadd.f32 %v558, 1e-05
    %v567 = vadd.f32 %v559, 1e-05
    %v568 = vadd.f32 %v560, 1e-05
    %v569 = vadd.f32 %v561, 1e-05
    %v570 = vadd.f32 %v562, 1e-05
    %v571 = vadd.f32 %v563, 1e-05
    %v572 = vadd.f32 %v564, 1e-05
    %v573 = vrsqrt.pop %v565
    %v574 = vrsqrt.pop %v566
    %v575 = vrsqrt.pop %v567
    %v576 = vrsqrt.pop %v568
    %v577 = vrsqrt.pop %v569
    %v578 = vrsqrt.pop %v570
    %v579 = vrsqrt.pop %v571
    %v580 = vrsqrt.pop %v572
    %v581 = vmul.f32 %v517, %v573
    %v582 = vmul.f32 %v518, %v574
    %v583 = vmul.f32 %v519, %v575
    %v584 = vmul.f32 %v520, %v576
    %v585 = vmul.f32 %v521, %v577
    %v586 = vmul.f32 %v522, %v578
    %v587 = vmul.f32 %v523, %v579
    %v588 = vmul.f32 %v524, %v580
    %v590 = vlaneseq
    %v591 = vshrl.u32 %v590, 7
    %v592 = vsub.s32 0, %v591
    %v593 = vrot.slane %v482, %v592
    %v595 = vmul.f32 %v581, %v593
    %v596 = vmul.f32 %v582, %v593
    %v597 = vmul.f32 %v583, %v593
    %v598 = vmul.f32 %v584, %v593
    %v599 = vmul.f32 %v585, %v593
    %v600 = vmul.f32 %v586, %v593
    %v601 = vmul.f32 %v587, %v593
    %v602 = vmul.f32 %v588, %v593
    %v604 = vlaneseq
    %v605 = vshrl.u32 %v604, 7
    %v606 = vsub.s32 0, %v605
    %v607 = vrot.slane %v483, %v606
    %v609 = vadd.f32 %v595, %v607
    %v610 = vadd.f32 %v596, %v607
    %v611 = vadd.f32 %v597, %v607
    %v612 = vadd.f32 %v598, %v607
    %v613 = vadd.f32 %v599, %v607
    %v614 = vadd.f32 %v600, %v607
    %v615 = vadd.f32 %v601, %v607
    %v616 = vadd.f32 %v602, %v607
    %v617 = vmax.f32 %v609, 0.0
    %v618 = vmax.f32 %v610, 0.0
    %v619 = vmax.f32 %v611, 0.0
    %v620 = vmax.f32 %v612, 0.0
    %v621 = vmax.f32 %v613, 0.0
    %v622 = vmax.f32 %v614, 0.0
    %v623 = vmax.f32 %v615, 0.0
    %v624 = vmax.f32 %v616, 0.0
    %v625 = vld [vmem:[%s8] sm:$0xf]
    %v626 = vld [vmem:[%s8 + $0x4] sm:$0xf]
    %v627 = vld [vmem:[%s8 + $0x8] sm:$0xf]
    %v628 = vld [vmem:[%s8 + $0xc] sm:$0xf]
    %v629 = vld [vmem:[%s9] sm:$0x1]
    %v630 = vpack.c.bf16 %v618, %v617
    %v631 = vpack.c.bf16 %v620, %v619
    %v632 = vpack.c.bf16 %v622, %v621
    %v633 = vpack.c.bf16 %v624, %v623
    %v635 = vlaneseq
    %v636 = vshrl.u32 %v635, 7
    %v637 = vsub.s32 0, %v636
    %v638 = vrot.slane %v629, %v637
    %v644 = vunpack.c.l.b16 %v625
    %v645 = vunpack.c.l.b16 %v626
    %v646 = vunpack.c.l.b16 %v627
    %v647 = vunpack.c.l.b16 %v628
    %v648 = vpack.c.b16 %v645, %v644
    %v649 = vpack.c.b16 %v647, %v646
    %v653 = vsel %vm245, %v630, 0
    %v656 = vsel %vm245, %v631, 0
    %v659 = vsel %vm245, %v632, 0
    %v662 = vsel %vm245, %v633, 0
    %664 = vmatprep.subr.bf16.mxu0 0
    %665 = vmatpush1.bf16.msra.mxu0 0
    %666 = vmatprep.subr.bf16.mxu0 0
    %667 = vmatpush1.bf16.msra.mxu0 0
    %668 = vmatprep.subr.bf16.mxu0 0
    %669 = vmatpush1.bf16.msra.mxu0 0
    %670 = vmatprep.subr.bf16.mxu0 0
    %671 = vmatpush1.bf16.msra.mxu0 0
    %672 = vmatprep.subr.bf16.mxu0 0
    %673 = vmatpush1.bf16.msra.mxu0 0
    %674 = vmatprep.subr.bf16.mxu0 0
    %675 = vmatpush1.bf16.msra.mxu0 0
    %676 = vmatprep.subr.bf16.mxu0 0
    %677 = vmatpush1.bf16.msra.mxu0 %v649
    %678 = vmatprep.subr.bf16.mxu0 0
    %679 = vmatpush1.bf16.msra.mxu0 %v648
    %680 = vmatprep.subr.bf16.mxu0 0
    %681 = vmatpush2.bf16.msra.mxu0 0
    %682 = vmatprep.subr.bf16.mxu0 0
    %683 = vmatpush2.bf16.msra.mxu0 0
    %684 = vmatprep.subr.bf16.mxu0 0
    %685 = vmatpush2.bf16.msra.mxu0 0
    %686 = vmatprep.subr.bf16.mxu0 0
    %687 = vmatpush2.bf16.msra.mxu0 0
    %688 = vmatprep.subr.bf16.mxu0 0
    %689 = vmatpush2.bf16.msra.mxu0 0
    %690 = vmatprep.subr.bf16.mxu0 0
    %691 = vmatpush2.bf16.msra.mxu0 0
    %692 = vmatprep.subr.bf16.mxu0 0
    %693 = vmatpush2.bf16.msra.mxu0 0
    %694 = vmatprep.subr.bf16.mxu0 0
    %695 = vmatpush2.bf16.msra.mxu0 0
    %696 = vmatprep.mubr.bf16.mxu0 0
    %697 = vmatmul.mubr.bf16.gmra.mxu0 %v653
    %v698 = vpop.f32.mrf.mxu0
    %v699 = vadd.f32 %v638, %v698
    %v700 = vpop.f32.mrf.mxu0
    %v701 = vpop.f32.mrf.mxu0
    %v702 = vadd.f32 %v638, %v701
    %v703 = vpop.f32.mrf.mxu0
    %704 = vmatprep.mubr.bf16.mxu0 0
    %705 = vmatmul.mubr.bf16.gmra.mxu0 %v656
    %v706 = vpop.f32.mrf.mxu0
    %v707 = vadd.f32 %v638, %v706
    %v708 = vpop.f32.mrf.mxu0
    %v709 = vpop.f32.mrf.mxu0
    %v710 = vadd.f32 %v638, %v709
    %v711 = vpop.f32.mrf.mxu0
    %712 = vmatprep.mubr.bf16.mxu0 0
    %713 = vmatmul.mubr.bf16.gmra.mxu0 %v659
    %v714 = vpop.f32.mrf.mxu0
    %v715 = vadd.f32 %v638, %v714
    %v716 = vpop.f32.mrf.mxu0
    %v717 = vpop.f32.mrf.mxu0
    %v718 = vadd.f32 %v638, %v717
    %v719 = vpop.f32.mrf.mxu0
    %720 = vmatprep.mubr.bf16.mxu0 0
    %721 = vmatmul.mubr.bf16.gmra.mxu0 %v662
    %v722 = vpop.f32.mrf.mxu0
    %v723 = vadd.f32 %v638, %v722
    %v724 = vpop.f32.mrf.mxu0
    %v725 = vpop.f32.mrf.mxu0
    %v726 = vadd.f32 %v638, %v725
    %v727 = vpop.f32.mrf.mxu0
    %728 = vdwg.mxu0
    %v729 = vld [vmem:[%s10] sm:$0x1]
    %v730 = vld [vmem:[%s11] sm:$0x1]
    %v731 = vsel %vm245, %v699, 0.0
    %732 = vadd.xlane.f32.xlu0 %v731
    %v733 = vpop.xlane.xlu0 %732
    %v734 = vsel %vm245, %v702, 0.0
    %735 = vadd.xlane.f32.xlu0 %v734
    %v736 = vpop.xlane.xlu0 %735
    %v737 = vsel %vm245, %v707, 0.0
    %738 = vadd.xlane.f32.xlu0 %v737
    %v739 = vpop.xlane.xlu0 %738
    %v740 = vsel %vm245, %v710, 0.0
    %741 = vadd.xlane.f32.xlu0 %v740
    %v742 = vpop.xlane.xlu0 %741
    %v743 = vsel %vm245, %v715, 0.0
    %744 = vadd.xlane.f32.xlu0 %v743
    %v745 = vpop.xlane.xlu0 %744
    %v746 = vsel %vm245, %v718, 0.0
    %747 = vadd.xlane.f32.xlu0 %v746
    %v748 = vpop.xlane.xlu0 %747
    %v749 = vsel %vm245, %v723, 0.0
    %750 = vadd.xlane.f32.xlu0 %v749
    %v751 = vpop.xlane.xlu0 %750
    %v752 = vsel %vm245, %v726, 0.0
    %753 = vadd.xlane.f32.xlu0 %v752
    %v754 = vpop.xlane.xlu0 %753
    %v755 = vmul.f32 %v733, %v508
    %v756 = vmul.f32 %v736, %v508
    %v757 = vmul.f32 %v739, %v508
    %v758 = vmul.f32 %v742, %v508
    %v759 = vmul.f32 %v745, %v508
    %v760 = vmul.f32 %v748, %v508
    %v761 = vmul.f32 %v751, %v508
    %v762 = vmul.f32 %v754, %v508
    %v763 = vsub.f32 %v699, %v755
    %v764 = vsub.f32 %v702, %v756
    %v765 = vsub.f32 %v707, %v757
    %v766 = vsub.f32 %v710, %v758
    %v767 = vsub.f32 %v715, %v759
    %v768 = vsub.f32 %v718, %v760
    %v769 = vsub.f32 %v723, %v761
    %v770 = vsub.f32 %v726, %v762
    %v771 = vmul.f32 %v763, %v763
    %v772 = vmul.f32 %v764, %v764
    %v773 = vmul.f32 %v765, %v765
    %v774 = vmul.f32 %v766, %v766
    %v775 = vmul.f32 %v767, %v767
    %v776 = vmul.f32 %v768, %v768
    %v777 = vmul.f32 %v769, %v769
    %v778 = vmul.f32 %v770, %v770
    %v779 = vsel %vm245, %v771, 0.0
    %780 = vadd.xlane.f32.xlu0 %v779
    %v781 = vpop.xlane.xlu0 %780
    %v782 = vsel %vm245, %v772, 0.0
    %783 = vadd.xlane.f32.xlu0 %v782
    %v784 = vpop.xlane.xlu0 %783
    %v785 = vsel %vm245, %v773, 0.0
    %786 = vadd.xlane.f32.xlu0 %v785
    %v787 = vpop.xlane.xlu0 %786
    %v788 = vsel %vm245, %v774, 0.0
    %789 = vadd.xlane.f32.xlu0 %v788
    %v790 = vpop.xlane.xlu0 %789
    %v791 = vsel %vm245, %v775, 0.0
    %792 = vadd.xlane.f32.xlu0 %v791
    %v793 = vpop.xlane.xlu0 %792
    %v794 = vsel %vm245, %v776, 0.0
    %795 = vadd.xlane.f32.xlu0 %v794
    %v796 = vpop.xlane.xlu0 %795
    %v797 = vsel %vm245, %v777, 0.0
    %798 = vadd.xlane.f32.xlu0 %v797
    %v799 = vpop.xlane.xlu0 %798
    %v800 = vsel %vm245, %v778, 0.0
    %801 = vadd.xlane.f32.xlu0 %v800
    %v802 = vpop.xlane.xlu0 %801
    %v803 = vmul.f32 %v781, %v508
    %v804 = vmul.f32 %v784, %v508
    %v805 = vmul.f32 %v787, %v508
    %v806 = vmul.f32 %v790, %v508
    %v807 = vmul.f32 %v793, %v508
    %v808 = vmul.f32 %v796, %v508
    %v809 = vmul.f32 %v799, %v508
    %v810 = vmul.f32 %v802, %v508
    %v811 = vadd.f32 %v803, 1e-05
    %v812 = vadd.f32 %v804, 1e-05
    %v813 = vadd.f32 %v805, 1e-05
    %v814 = vadd.f32 %v806, 1e-05
    %v815 = vadd.f32 %v807, 1e-05
    %v816 = vadd.f32 %v808, 1e-05
    %v817 = vadd.f32 %v809, 1e-05
    %v818 = vadd.f32 %v810, 1e-05
    %v819 = vrsqrt.pop %v811
    %v820 = vrsqrt.pop %v812
    %v821 = vrsqrt.pop %v813
    %v822 = vrsqrt.pop %v814
    %v823 = vrsqrt.pop %v815
    %v824 = vrsqrt.pop %v816
    %v825 = vrsqrt.pop %v817
    %v826 = vrsqrt.pop %v818
    %v827 = vmul.f32 %v763, %v819
    %v828 = vmul.f32 %v764, %v820
    %v829 = vmul.f32 %v765, %v821
    %v830 = vmul.f32 %v766, %v822
    %v831 = vmul.f32 %v767, %v823
    %v832 = vmul.f32 %v768, %v824
    %v833 = vmul.f32 %v769, %v825
    %v834 = vmul.f32 %v770, %v826
    %v836 = vlaneseq
    %v837 = vshrl.u32 %v836, 7
    %v838 = vsub.s32 0, %v837
    %v839 = vrot.slane %v729, %v838
    %v841 = vmul.f32 %v827, %v839
    %v842 = vmul.f32 %v828, %v839
    %v843 = vmul.f32 %v829, %v839
    %v844 = vmul.f32 %v830, %v839
    %v845 = vmul.f32 %v831, %v839
    %v846 = vmul.f32 %v832, %v839
    %v847 = vmul.f32 %v833, %v839
    %v848 = vmul.f32 %v834, %v839
    %v850 = vlaneseq
    %v851 = vshrl.u32 %v850, 7
    %v852 = vsub.s32 0, %v851
    %v853 = vrot.slane %v730, %v852
    %v855 = vadd.f32 %v841, %v853
    %v856 = vadd.f32 %v842, %v853
    %v857 = vadd.f32 %v843, %v853
    %v858 = vadd.f32 %v844, %v853
    %v859 = vadd.f32 %v845, %v853
    %v860 = vadd.f32 %v846, %v853
    %v861 = vadd.f32 %v847, %v853
    %v862 = vadd.f32 %v848, %v853
    %v863 = vmax.f32 %v855, 0.0
    %v864 = vmax.f32 %v856, 0.0
    %v865 = vmax.f32 %v857, 0.0
    %v866 = vmax.f32 %v858, 0.0
    %v867 = vmax.f32 %v859, 0.0
    %v868 = vmax.f32 %v860, 0.0
    %v869 = vmax.f32 %v861, 0.0
    %v870 = vmax.f32 %v862, 0.0
    %v871 = vadd.f32 %v863, %v257
    %v872 = vadd.f32 %v864, %v258
    %v873 = vadd.f32 %v865, %v259
    %v874 = vadd.f32 %v866, %v260
    %v875 = vadd.f32 %v867, %v261
    %v876 = vadd.f32 %v868, %v262
    %v877 = vadd.f32 %v869, %v263
    %v878 = vadd.f32 %v870, %v264
    %879 = vst.msk [vmem:[%s12] sm:$0xff] %vm245, %v871
    %880 = vst.msk [vmem:[%s12 + $0x8] sm:$0xff] %vm245, %v872
    %881 = vst.msk [vmem:[%s12 + $0x10] sm:$0xff] %vm245, %v873
    %882 = vst.msk [vmem:[%s12 + $0x18] sm:$0xff] %vm245, %v874
    %883 = vst.msk [vmem:[%s12 + $0x20] sm:$0xff] %vm245, %v875
    %884 = vst.msk [vmem:[%s12 + $0x28] sm:$0xff] %vm245, %v876
    %885 = vst.msk [vmem:[%s12 + $0x30] sm:$0xff] %vm245, %v877
    %886 = vst.msk [vmem:[%s12 + $0x38] sm:$0xff] %vm245, %v878
  $region57: #{interaction_gnn_block.2} parent=0 // pred_fallthru
    _
  // Predicated region
  $region58: #{interaction_gnn_block.2} parent=0 // pred_check
    _
  $region59: #{interaction_gnn_block.2} parent=0 // pred_check_branch
    %888 = sbr.rel (0) target = $region61
  $region60: #{interaction_gnn_block.2} parent=0 // pred_region
    _
  $region61: #{interaction_gnn_block.2} parent=0 // pred_fallthru
    _
  // Predicated region
  $region62: #{interaction_gnn_block.2} parent=0 // pred_check
    _
  $region63: #{interaction_gnn_block.2} parent=0 // pred_check_branch
    %890 = sbr.rel (0) target = $region65
  $region64: #{interaction_gnn_block.2} parent=0 // pred_region
    _
  $region65: #{interaction_gnn_block.2} parent=0 // pred_fallthru
    _

// kernel: interaction_gnn_block.3
$region0: #{interaction_gnn_block.3}
  #allocation0 [shape = 'u32[]', space=smem, size = 0x4, offset = 0x4, fixed_abs, tag = 'smem constant byte address 0x4 - core index']
  #allocation1 [shape = 'u32[144,128]{1,0:T(1,128)}', space=vmem, size = 0x12000, scoped, tag = 'internal scratch']
  %s0 = inlined_call_operand.vmem [shape: s32[256,1], index: 0, kind: input, shape index: {}]
  %s1 = inlined_call_operand.vmem [shape: bf16[64,32], index: 1, kind: input, shape index: {}]
  %s2 = inlined_call_operand.vmem [shape: bf16[128,32], index: 2, kind: input, shape index: {}]
  %s3 = inlined_call_operand.vmem [shape: bf16[32,32], index: 3, kind: input, shape index: {}]
  %s4 = inlined_call_operand.vmem [shape: bf16[32,32], index: 4, kind: input, shape index: {}]
  %s5 = inlined_call_operand.vmem [shape: bf16[32,32], index: 5, kind: input, shape index: {}]
  %s6 = inlined_call_operand.vmem [shape: f32[1,32], index: 6, kind: input, shape index: {}]
  %s7 = inlined_call_operand.vmem [shape: f32[1,32], index: 7, kind: input, shape index: {}, may-alias: {7,11}]
  %s8 = inlined_call_operand.vmem [shape: f32[1,32], index: 8, kind: input, shape index: {}, may-alias: {8,12}]
  %s9 = inlined_call_operand.vmem [shape: bf16[32,32], index: 9, kind: input, shape index: {}]
  %s10 = inlined_call_operand.vmem [shape: f32[1,32], index: 10, kind: input, shape index: {}]
  %s11 = inlined_call_operand.vmem [shape: f32[1,32], index: 11, kind: input, shape index: {}, may-alias: {7,11}]
  %s12 = inlined_call_operand.vmem [shape: f32[1,32], index: 12, kind: input, shape index: {}, may-alias: {8,12}]
  %s13 = inlined_call_operand.vmem [shape: f32[128,32], index: 13, kind: output, shape index: {}]
  %s14 = sld [smem:[#allocation0]]
  $region62: #{interaction_gnn_block.3} parent=0
    _
  %s16 = ssub.s32 1, %s14
  %s17 = scalar_select 0, %s16, %s14
  // Predicated region
  $region2: #{interaction_gnn_block.3} parent=0 // pred_check
    _
  $region3: #{interaction_gnn_block.3} parent=0 // pred_check_branch
    %19 = sbr.rel (0) target = $region5
  $region4: #{interaction_gnn_block.3} parent=0 // pred_region
    _
  $region5: #{interaction_gnn_block.3} parent=0 // pred_fallthru
    _
  // Predicated region
  $region6: #{interaction_gnn_block.3} parent=0 // pred_check
    _
  $region7: #{interaction_gnn_block.3} parent=0 // pred_check_branch
    %21 = sbr.rel (0) target = $region9
  $region8: #{interaction_gnn_block.3} parent=0 // pred_region
    _
  $region9: #{interaction_gnn_block.3} parent=0 // pred_fallthru
    _
  // Predicated region
  $region10: #{interaction_gnn_block.3} parent=0 // pred_check
    _
  $region11: #{interaction_gnn_block.3} parent=0 // pred_check_branch
    %23 = sbr.rel (0) target = $region13
  $region12: #{interaction_gnn_block.3} parent=0 // pred_region
    _
  $region13: #{interaction_gnn_block.3} parent=0 // pred_fallthru
    _
  // Predicated region
  $region14: #{interaction_gnn_block.3} parent=0 // pred_check
    _
  $region15: #{interaction_gnn_block.3} parent=0 // pred_check_branch
    %25 = sbr.rel (0) target = $region17
  $region16: #{interaction_gnn_block.3} parent=0 // pred_region
    _
  $region17: #{interaction_gnn_block.3} parent=0 // pred_fallthru
    _
  // Predicated region
  $region18: #{interaction_gnn_block.3} parent=0 // pred_check
    _
  $region19: #{interaction_gnn_block.3} parent=0 // pred_check_branch
    %27 = sbr.rel (0) target = $region21
  $region20: #{interaction_gnn_block.3} parent=0 // pred_region
    _
  $region21: #{interaction_gnn_block.3} parent=0 // pred_fallthru
    _
  // Predicated region
  $region22: #{interaction_gnn_block.3} parent=0 // pred_check
    _
  $region23: #{interaction_gnn_block.3} parent=0 // pred_check_branch
    %29 = sbr.rel (0) target = $region25
  $region24: #{interaction_gnn_block.3} parent=0 // pred_region
    _
  $region25: #{interaction_gnn_block.3} parent=0 // pred_fallthru
    _
  // Predicated region
  $region26: #{interaction_gnn_block.3} parent=0 // pred_check
    _
  $region27: #{interaction_gnn_block.3} parent=0 // pred_check_branch
    %31 = sbr.rel (0) target = $region29
  $region28: #{interaction_gnn_block.3} parent=0 // pred_region
    _
  $region29: #{interaction_gnn_block.3} parent=0 // pred_fallthru
    _
  // Predicated region
  $region30: #{interaction_gnn_block.3} parent=0 // pred_check
    _
  $region31: #{interaction_gnn_block.3} parent=0 // pred_check_branch
    %33 = sbr.rel (0) target = $region33
  $region32: #{interaction_gnn_block.3} parent=0 // pred_region
    _
  $region33: #{interaction_gnn_block.3} parent=0 // pred_fallthru
    _
  // Predicated region
  $region34: #{interaction_gnn_block.3} parent=0 // pred_check
    _
  $region35: #{interaction_gnn_block.3} parent=0 // pred_check_branch
    %35 = sbr.rel (0) target = $region37
  $region36: #{interaction_gnn_block.3} parent=0 // pred_region
    _
  $region37: #{interaction_gnn_block.3} parent=0 // pred_fallthru
    _
  // Predicated region
  $region38: #{interaction_gnn_block.3} parent=0 // pred_check
    _
  $region39: #{interaction_gnn_block.3} parent=0 // pred_check_branch
    %37 = sbr.rel (0) target = $region41
  $region40: #{interaction_gnn_block.3} parent=0 // pred_region
    _
  $region41: #{interaction_gnn_block.3} parent=0 // pred_fallthru
    _
  // Predicated region
  $region42: #{interaction_gnn_block.3} parent=0 // pred_check
    _
  $region43: #{interaction_gnn_block.3} parent=0 // pred_check_branch
    %39 = sbr.rel (0) target = $region45
  $region44: #{interaction_gnn_block.3} parent=0 // pred_region
    _
  $region45: #{interaction_gnn_block.3} parent=0 // pred_fallthru
    _
  // Predicated region
  $region46: #{interaction_gnn_block.3} parent=0 // pred_check
    _
  $region47: #{interaction_gnn_block.3} parent=0 // pred_check_branch
    %41 = sbr.rel (0) target = $region49
  $region48: #{interaction_gnn_block.3} parent=0 // pred_region
    _
  $region49: #{interaction_gnn_block.3} parent=0 // pred_fallthru
    _
  // Predicated region
  $region50: #{interaction_gnn_block.3} parent=0 // pred_check
    _
  $region51: #{interaction_gnn_block.3} parent=0 // pred_check_branch
    %43 = sbr.rel (0) target = $region53
  $region52: #{interaction_gnn_block.3} parent=0 // pred_region
    _
  $region53: #{interaction_gnn_block.3} parent=0 // pred_fallthru
    _
  %v45 = vld [vmem:[%s0] sm:$0xff]
  %v46 = vld [vmem:[%s0 + $0x8] sm:$0xff]
  %v47 = vld [vmem:[%s0 + $0x10] sm:$0xff]
  %v48 = vld [vmem:[%s0 + $0x18] sm:$0xff]
  %v49 = vld [vmem:[%s0 + $0x20] sm:$0xff]
  %v50 = vld [vmem:[%s0 + $0x28] sm:$0xff]
  %v51 = vld [vmem:[%s0 + $0x30] sm:$0xff]
  %v52 = vld [vmem:[%s0 + $0x38] sm:$0xff]
  %v53 = vld [vmem:[%s0 + $0x40] sm:$0xff]
  %v54 = vld [vmem:[%s0 + $0x48] sm:$0xff]
  %v55 = vld [vmem:[%s0 + $0x50] sm:$0xff]
  %v56 = vld [vmem:[%s0 + $0x58] sm:$0xff]
  %v57 = vld [vmem:[%s0 + $0x60] sm:$0xff]
  %v58 = vld [vmem:[%s0 + $0x68] sm:$0xff]
  %v59 = vld [vmem:[%s0 + $0x70] sm:$0xff]
  %v60 = vld [vmem:[%s0 + $0x78] sm:$0xff]
  %v61 = vld [vmem:[%s0 + $0x80] sm:$0xff]
  %v62 = vld [vmem:[%s0 + $0x88] sm:$0xff]
  %v63 = vld [vmem:[%s0 + $0x90] sm:$0xff]
  %v64 = vld [vmem:[%s0 + $0x98] sm:$0xff]
  %v65 = vld [vmem:[%s0 + $0xa0] sm:$0xff]
  %v66 = vld [vmem:[%s0 + $0xa8] sm:$0xff]
  %v67 = vld [vmem:[%s0 + $0xb0] sm:$0xff]
  %v68 = vld [vmem:[%s0 + $0xb8] sm:$0xff]
  %v69 = vld [vmem:[%s0 + $0xc0] sm:$0xff]
  %v70 = vld [vmem:[%s0 + $0xc8] sm:$0xff]
  %v71 = vld [vmem:[%s0 + $0xd0] sm:$0xff]
  %v72 = vld [vmem:[%s0 + $0xd8] sm:$0xff]
  %v73 = vld [vmem:[%s0 + $0xe0] sm:$0xff]
  %v74 = vld [vmem:[%s0 + $0xe8] sm:$0xff]
  %v75 = vld [vmem:[%s0 + $0xf0] sm:$0xff]
  %v76 = vld [vmem:[%s0 + $0xf8] sm:$0xff]
  %v77 = vlaneseq
  %v78 = vand.u32 %v77, 127
  %79 = vset.pattern.permute.xlu0 0
  %80 = vperm.xlu0 %79, %v45
  %v81 = vpop.permute.xlu0 %80
  %82 = vset.pattern.permute.xlu0 0
  %83 = vperm.xlu0 %82, %v46
  %v84 = vpop.permute.xlu0 %83
  %85 = vset.pattern.permute.xlu0 0
  %86 = vperm.xlu0 %85, %v47
  %v87 = vpop.permute.xlu0 %86
  %88 = vset.pattern.permute.xlu0 0
  %89 = vperm.xlu0 %88, %v48
  %v90 = vpop.permute.xlu0 %89
  %91 = vset.pattern.permute.xlu0 0
  %92 = vperm.xlu0 %91, %v49
  %v93 = vpop.permute.xlu0 %92
  %94 = vset.pattern.permute.xlu0 0
  %95 = vperm.xlu0 %94, %v50
  %v96 = vpop.permute.xlu0 %95
  %97 = vset.pattern.permute.xlu0 0
  %98 = vperm.xlu0 %97, %v51
  %v99 = vpop.permute.xlu0 %98
  %100 = vset.pattern.permute.xlu0 0
  %101 = vperm.xlu0 %100, %v52
  %v102 = vpop.permute.xlu0 %101
  %103 = vset.pattern.permute.xlu0 0
  %104 = vperm.xlu0 %103, %v53
  %v105 = vpop.permute.xlu0 %104
  %106 = vset.pattern.permute.xlu0 0
  %107 = vperm.xlu0 %106, %v54
  %v108 = vpop.permute.xlu0 %107
  %109 = vset.pattern.permute.xlu0 0
  %110 = vperm.xlu0 %109, %v55
  %v111 = vpop.permute.xlu0 %110
  %112 = vset.pattern.permute.xlu0 0
  %113 = vperm.xlu0 %112, %v56
  %v114 = vpop.permute.xlu0 %113
  %115 = vset.pattern.permute.xlu0 0
  %116 = vperm.xlu0 %115, %v57
  %v117 = vpop.permute.xlu0 %116
  %118 = vset.pattern.permute.xlu0 0
  %119 = vperm.xlu0 %118, %v58
  %v120 = vpop.permute.xlu0 %119
  %121 = vset.pattern.permute.xlu0 0
  %122 = vperm.xlu0 %121, %v59
  %v123 = vpop.permute.xlu0 %122
  %124 = vset.pattern.permute.xlu0 0
  %125 = vperm.xlu0 %124, %v60
  %v126 = vpop.permute.xlu0 %125
  %127 = vset.pattern.permute.xlu0 0
  %128 = vperm.xlu0 %127, %v61
  %v129 = vpop.permute.xlu0 %128
  %130 = vset.pattern.permute.xlu0 0
  %131 = vperm.xlu0 %130, %v62
  %v132 = vpop.permute.xlu0 %131
  %133 = vset.pattern.permute.xlu0 0
  %134 = vperm.xlu0 %133, %v63
  %v135 = vpop.permute.xlu0 %134
  %136 = vset.pattern.permute.xlu0 0
  %137 = vperm.xlu0 %136, %v64
  %v138 = vpop.permute.xlu0 %137
  %139 = vset.pattern.permute.xlu0 0
  %140 = vperm.xlu0 %139, %v65
  %v141 = vpop.permute.xlu0 %140
  %142 = vset.pattern.permute.xlu0 0
  %143 = vperm.xlu0 %142, %v66
  %v144 = vpop.permute.xlu0 %143
  %145 = vset.pattern.permute.xlu0 0
  %146 = vperm.xlu0 %145, %v67
  %v147 = vpop.permute.xlu0 %146
  %148 = vset.pattern.permute.xlu0 0
  %149 = vperm.xlu0 %148, %v68
  %v150 = vpop.permute.xlu0 %149
  %151 = vset.pattern.permute.xlu0 0
  %152 = vperm.xlu0 %151, %v69
  %v153 = vpop.permute.xlu0 %152
  %154 = vset.pattern.permute.xlu0 0
  %155 = vperm.xlu0 %154, %v70
  %v156 = vpop.permute.xlu0 %155
  %157 = vset.pattern.permute.xlu0 0
  %158 = vperm.xlu0 %157, %v71
  %v159 = vpop.permute.xlu0 %158
  %160 = vset.pattern.permute.xlu0 0
  %161 = vperm.xlu0 %160, %v72
  %v162 = vpop.permute.xlu0 %161
  %163 = vset.pattern.permute.xlu0 0
  %164 = vperm.xlu0 %163, %v73
  %v165 = vpop.permute.xlu0 %164
  %166 = vset.pattern.permute.xlu0 0
  %167 = vperm.xlu0 %166, %v74
  %v168 = vpop.permute.xlu0 %167
  %169 = vset.pattern.permute.xlu0 0
  %170 = vperm.xlu0 %169, %v75
  %v171 = vpop.permute.xlu0 %170
  %172 = vset.pattern.permute.xlu0 0
  %173 = vperm.xlu0 %172, %v76
  %v174 = vpop.permute.xlu0 %173
  %vm175 = vcmp.eq.s32.totalorder %v78, %v81
  %vm176 = vcmp.eq.s32.totalorder %v78, %v84
  %vm177 = vcmp.eq.s32.totalorder %v78, %v87
  %vm178 = vcmp.eq.s32.totalorder %v78, %v90
  %vm179 = vcmp.eq.s32.totalorder %v78, %v93
  %vm180 = vcmp.eq.s32.totalorder %v78, %v96
  %vm181 = vcmp.eq.s32.totalorder %v78, %v99
  %vm182 = vcmp.eq.s32.totalorder %v78, %v102
  %vm183 = vcmp.eq.s32.totalorder %v78, %v105
  %vm184 = vcmp.eq.s32.totalorder %v78, %v108
  %vm185 = vcmp.eq.s32.totalorder %v78, %v111
  %vm186 = vcmp.eq.s32.totalorder %v78, %v114
  %vm187 = vcmp.eq.s32.totalorder %v78, %v117
  %vm188 = vcmp.eq.s32.totalorder %v78, %v120
  %vm189 = vcmp.eq.s32.totalorder %v78, %v123
  %vm190 = vcmp.eq.s32.totalorder %v78, %v126
  %vm191 = vcmp.eq.s32.totalorder %v78, %v129
  %vm192 = vcmp.eq.s32.totalorder %v78, %v132
  %vm193 = vcmp.eq.s32.totalorder %v78, %v135
  %vm194 = vcmp.eq.s32.totalorder %v78, %v138
  %vm195 = vcmp.eq.s32.totalorder %v78, %v141
  %vm196 = vcmp.eq.s32.totalorder %v78, %v144
  %vm197 = vcmp.eq.s32.totalorder %v78, %v147
  %vm198 = vcmp.eq.s32.totalorder %v78, %v150
  %vm199 = vcmp.eq.s32.totalorder %v78, %v153
  %vm200 = vcmp.eq.s32.totalorder %v78, %v156
  %vm201 = vcmp.eq.s32.totalorder %v78, %v159
  %vm202 = vcmp.eq.s32.totalorder %v78, %v162
  %vm203 = vcmp.eq.s32.totalorder %v78, %v165
  %vm204 = vcmp.eq.s32.totalorder %v78, %v168
  %vm205 = vcmp.eq.s32.totalorder %v78, %v171
  %vm206 = vcmp.eq.s32.totalorder %v78, %v174
  %v207 = vsel %vm175, 1, 0
  %v208 = vsel %vm176, 1, 0
  %v209 = vsel %vm177, 1, 0
  %v210 = vsel %vm178, 1, 0
  %v211 = vsel %vm179, 1, 0
  %v212 = vsel %vm180, 1, 0
  %v213 = vsel %vm181, 1, 0
  %v214 = vsel %vm182, 1, 0
  %v215 = vsel %vm183, 1, 0
  %v216 = vsel %vm184, 1, 0
  %v217 = vsel %vm185, 1, 0
  %v218 = vsel %vm186, 1, 0
  %v219 = vsel %vm187, 1, 0
  %v220 = vsel %vm188, 1, 0
  %v221 = vsel %vm189, 1, 0
  %v222 = vsel %vm190, 1, 0
  %v223 = vsel %vm191, 1, 0
  %v224 = vsel %vm192, 1, 0
  %v225 = vsel %vm193, 1, 0
  %v226 = vsel %vm194, 1, 0
  %v227 = vsel %vm195, 1, 0
  %v228 = vsel %vm196, 1, 0
  %v229 = vsel %vm197, 1, 0
  %v230 = vsel %vm198, 1, 0
  %v231 = vsel %vm199, 1, 0
  %v232 = vsel %vm200, 1, 0
  %v233 = vsel %vm201, 1, 0
  %v234 = vsel %vm202, 1, 0
  %v235 = vsel %vm203, 1, 0
  %v236 = vsel %vm204, 1, 0
  %v237 = vsel %vm205, 1, 0
  %v238 = vsel %vm206, 1, 0
  %v239 = vcvt.s32.f32 %v207
  %v240 = vcvt.s32.f32 %v208
  %v241 = vcvt.s32.f32 %v209
  %v242 = vcvt.s32.f32 %v210
  %v243 = vcvt.s32.f32 %v211
  %v244 = vcvt.s32.f32 %v212
  %v245 = vcvt.s32.f32 %v213
  %v246 = vcvt.s32.f32 %v214
  %v247 = vcvt.s32.f32 %v215
  %v248 = vcvt.s32.f32 %v216
  %v249 = vcvt.s32.f32 %v217
  %v250 = vcvt.s32.f32 %v218
  %v251 = vcvt.s32.f32 %v219
  %v252 = vcvt.s32.f32 %v220
  %v253 = vcvt.s32.f32 %v221
  %v254 = vcvt.s32.f32 %v222
  %v255 = vcvt.s32.f32 %v223
  %v256 = vcvt.s32.f32 %v224
  %v257 = vcvt.s32.f32 %v225
  %v258 = vcvt.s32.f32 %v226
  %v259 = vcvt.s32.f32 %v227
  %v260 = vcvt.s32.f32 %v228
  %v261 = vcvt.s32.f32 %v229
  %v262 = vcvt.s32.f32 %v230
  %v263 = vcvt.s32.f32 %v231
  %v264 = vcvt.s32.f32 %v232
  %v265 = vcvt.s32.f32 %v233
  %v266 = vcvt.s32.f32 %v234
  %v267 = vcvt.s32.f32 %v235
  %v268 = vcvt.s32.f32 %v236
  %v269 = vcvt.s32.f32 %v237
  %v270 = vcvt.s32.f32 %v238
  %v271 = vpack.c.bf16 %v240, %v239
  %v272 = vpack.c.bf16 %v242, %v241
  %v273 = vpack.c.bf16 %v244, %v243
  %v274 = vpack.c.bf16 %v246, %v245
  %v275 = vpack.c.bf16 %v248, %v247
  %v276 = vpack.c.bf16 %v250, %v249
  %v277 = vpack.c.bf16 %v252, %v251
  %v278 = vpack.c.bf16 %v254, %v253
  %v279 = vpack.c.bf16 %v256, %v255
  %v280 = vpack.c.bf16 %v258, %v257
  %v281 = vpack.c.bf16 %v260, %v259
  %v282 = vpack.c.bf16 %v262, %v261
  %v283 = vpack.c.bf16 %v264, %v263
  %v284 = vpack.c.bf16 %v266, %v265
  %v285 = vpack.c.bf16 %v268, %v267
  %v286 = vpack.c.bf16 %v270, %v269
  %v287 = vld [vmem:[%s1] sm:$0xf]
  %v288 = vld [vmem:[%s1 + $0x4] sm:$0xf]
  %v289 = vld [vmem:[%s1 + $0x8] sm:$0xf]
  %v290 = vld [vmem:[%s1 + $0xc] sm:$0xf]
  %v291 = vld [vmem:[%s1 + $0x10] sm:$0xf]
  %v292 = vld [vmem:[%s1 + $0x14] sm:$0xf]
  %v293 = vld [vmem:[%s1 + $0x18] sm:$0xf]
  %v294 = vld [vmem:[%s1 + $0x1c] sm:$0xf]
  %v303 = vunpack.c.l.b16 %v287
  %v304 = vunpack.c.l.b16 %v288
  %v305 = vunpack.c.l.b16 %v289
  %v306 = vunpack.c.l.b16 %v290
  %v307 = vunpack.c.l.b16 %v291
  %v308 = vunpack.c.l.b16 %v292
  %v309 = vunpack.c.l.b16 %v293
  %v310 = vunpack.c.l.b16 %v294
  %v311 = vpack.c.b16 %v304, %v303
  %v312 = vpack.c.b16 %v306, %v305
  %v313 = vpack.c.b16 %v308, %v307
  %v314 = vpack.c.b16 %v310, %v309
  %vm319 = vcmask 523264
  %v321 = vsel %vm319, %v271, 0
  %v324 = vsel %vm319, %v272, 0
  %v327 = vsel %vm319, %v273, 0
  %v330 = vsel %vm319, %v274, 0
  %v333 = vsel %vm319, %v275, 0
  %v336 = vsel %vm319, %v276, 0
  %v339 = vsel %vm319, %v277, 0
  %v342 = vsel %vm319, %v278, 0
  %v345 = vsel %vm319, %v279, 0
  %v348 = vsel %vm319, %v280, 0
  %v351 = vsel %vm319, %v281, 0
  %v354 = vsel %vm319, %v282, 0
  %v357 = vsel %vm319, %v283, 0
  %v360 = vsel %vm319, %v284, 0
  %v363 = vsel %vm319, %v285, 0
  %v366 = vsel %vm319, %v286, 0
  %368 = vmatprep.subr.bf16.mxu0 0
  %369 = vmatpush1.bf16.msra.mxu0 0
  %370 = vmatprep.subr.bf16.mxu0 0
  %371 = vmatpush1.bf16.msra.mxu0 0
  %372 = vmatprep.subr.bf16.mxu0 0
  %373 = vmatpush1.bf16.msra.mxu0 0
  %374 = vmatprep.subr.bf16.mxu0 0
  %375 = vmatpush1.bf16.msra.mxu0 0
  %376 = vmatprep.subr.bf16.mxu0 0
  %377 = vmatpush1.bf16.msra.mxu0 %v314
  %378 = vmatprep.subr.bf16.mxu0 0
  %379 = vmatpush1.bf16.msra.mxu0 %v313
  %380 = vmatprep.subr.bf16.mxu0 0
  %381 = vmatpush1.bf16.msra.mxu0 %v312
  %382 = vmatprep.subr.bf16.mxu0 0
  %383 = vmatpush1.bf16.msra.mxu0 %v311
  %384 = vmatprep.subr.bf16.mxu0 0
  %385 = vmatpush2.bf16.msra.mxu0 0
  %386 = vmatprep.subr.bf16.mxu0 0
  %387 = vmatpush2.bf16.msra.mxu0 0
  %388 = vmatprep.subr.bf16.mxu0 0
  %389 = vmatpush2.bf16.msra.mxu0 0
  %390 = vmatprep.subr.bf16.mxu0 0
  %391 = vmatpush2.bf16.msra.mxu0 0
  %392 = vmatprep.subr.bf16.mxu0 0
  %393 = vmatpush2.bf16.msra.mxu0 0
  %394 = vmatprep.subr.bf16.mxu0 0
  %395 = vmatpush2.bf16.msra.mxu0 0
  %396 = vmatprep.subr.bf16.mxu0 0
  %397 = vmatpush2.bf16.msra.mxu0 0
  %398 = vmatprep.subr.bf16.mxu0 0
  %399 = vmatpush2.bf16.msra.mxu0 0
  %400 = vmatprep.mubr.bf16.mxu0 0
  %401 = vmatmul.mubr.bf16.gmra.mxu0 %v321
  %v402 = vpop.f32.mrf.mxu0
  %v403 = vadd.f32 0.0, %v402
  %v404 = vpop.f32.mrf.mxu0
  %v405 = vpop.f32.mrf.mxu0
  %v406 = vadd.f32 0.0, %v405
  %v407 = vpop.f32.mrf.mxu0
  %408 = vmatprep.mubr.bf16.mxu0 0
  %409 = vmatmul.mubr.bf16.gmra.mxu0 %v324
  %v410 = vpop.f32.mrf.mxu0
  %v411 = vadd.f32 0.0, %v410
  %v412 = vpop.f32.mrf.mxu0
  %v413 = vpop.f32.mrf.mxu0
  %v414 = vadd.f32 0.0, %v413
  %v415 = vpop.f32.mrf.mxu0
  %416 = vmatprep.mubr.bf16.mxu0 0
  %417 = vmatmul.mubr.bf16.gmra.mxu0 %v327
  %v418 = vpop.f32.mrf.mxu0
  %v419 = vadd.f32 0.0, %v418
  %v420 = vpop.f32.mrf.mxu0
  %v421 = vpop.f32.mrf.mxu0
  %v422 = vadd.f32 0.0, %v421
  %v423 = vpop.f32.mrf.mxu0
  %424 = vmatprep.mubr.bf16.mxu0 0
  %425 = vmatmul.mubr.bf16.gmra.mxu0 %v330
  %v426 = vpop.f32.mrf.mxu0
  %v427 = vadd.f32 0.0, %v426
  %v428 = vpop.f32.mrf.mxu0
  %v429 = vpop.f32.mrf.mxu0
  %v430 = vadd.f32 0.0, %v429
  %v431 = vpop.f32.mrf.mxu0
  %432 = vmatprep.mubr.bf16.mxu0 0
  %433 = vmatmul.mubr.bf16.gmra.mxu0 %v333
  %v434 = vpop.f32.mrf.mxu0
  %v435 = vadd.f32 0.0, %v434
  %v436 = vpop.f32.mrf.mxu0
  %v437 = vpop.f32.mrf.mxu0
  %v438 = vadd.f32 0.0, %v437
  %v439 = vpop.f32.mrf.mxu0
  %440 = vmatprep.mubr.bf16.mxu0 0
  %441 = vmatmul.mubr.bf16.gmra.mxu0 %v336
  %v442 = vpop.f32.mrf.mxu0
  %v443 = vadd.f32 0.0, %v442
  %v444 = vpop.f32.mrf.mxu0
  %v445 = vpop.f32.mrf.mxu0
  %v446 = vadd.f32 0.0, %v445
  %v447 = vpop.f32.mrf.mxu0
  %448 = vmatprep.mubr.bf16.mxu0 0
  %449 = vmatmul.mubr.bf16.gmra.mxu0 %v339
  %v450 = vpop.f32.mrf.mxu0
  %v451 = vadd.f32 0.0, %v450
  %v452 = vpop.f32.mrf.mxu0
  %v453 = vpop.f32.mrf.mxu0
  %v454 = vadd.f32 0.0, %v453
  %v455 = vpop.f32.mrf.mxu0
  %456 = vmatprep.mubr.bf16.mxu0 0
  %457 = vmatmul.mubr.bf16.gmra.mxu0 %v342
  %v458 = vpop.f32.mrf.mxu0
  %v459 = vadd.f32 0.0, %v458
  %v460 = vpop.f32.mrf.mxu0
  %v461 = vpop.f32.mrf.mxu0
  %v462 = vadd.f32 0.0, %v461
  %v463 = vpop.f32.mrf.mxu0
  %464 = vmatprep.mubr.bf16.mxu0 0
  %465 = vmatmul.mubr.bf16.gmra.mxu0 %v345
  %v466 = vpop.f32.mrf.mxu0
  %v467 = vadd.f32 0.0, %v466
  %v468 = vpop.f32.mrf.mxu0
  %v469 = vpop.f32.mrf.mxu0
  %v470 = vadd.f32 0.0, %v469
  %v471 = vpop.f32.mrf.mxu0
  %472 = vmatprep.mubr.bf16.mxu0 0
  %473 = vmatmul.mubr.bf16.gmra.mxu0 %v348
  %v474 = vpop.f32.mrf.mxu0
  %v475 = vadd.f32 0.0, %v474
  %v476 = vpop.f32.mrf.mxu0
  %v477 = vpop.f32.mrf.mxu0
  %v478 = vadd.f32 0.0, %v477
  %v479 = vpop.f32.mrf.mxu0
  %480 = vmatprep.mubr.bf16.mxu0 0
  %481 = vmatmul.mubr.bf16.gmra.mxu0 %v351
  %v482 = vpop.f32.mrf.mxu0
  %v483 = vadd.f32 0.0, %v482
  %v484 = vpop.f32.mrf.mxu0
  %v485 = vpop.f32.mrf.mxu0
  %v486 = vadd.f32 0.0, %v485
  %v487 = vpop.f32.mrf.mxu0
  %488 = vmatprep.mubr.bf16.mxu0 0
  %489 = vmatmul.mubr.bf16.gmra.mxu0 %v354
  %v490 = vpop.f32.mrf.mxu0
  %v491 = vadd.f32 0.0, %v490
  %v492 = vpop.f32.mrf.mxu0
  %v493 = vpop.f32.mrf.mxu0
  %v494 = vadd.f32 0.0, %v493
  %v495 = vpop.f32.mrf.mxu0
  %496 = vmatprep.mubr.bf16.mxu0 0
  %497 = vmatmul.mubr.bf16.gmra.mxu0 %v357
  %v498 = vpop.f32.mrf.mxu0
  %v499 = vadd.f32 0.0, %v498
  %v500 = vpop.f32.mrf.mxu0
  %v501 = vpop.f32.mrf.mxu0
  %v502 = vadd.f32 0.0, %v501
  %v503 = vpop.f32.mrf.mxu0
  %504 = vmatprep.mubr.bf16.mxu0 0
  %505 = vmatmul.mubr.bf16.gmra.mxu0 %v360
  %v506 = vpop.f32.mrf.mxu0
  %v507 = vadd.f32 0.0, %v506
  %v508 = vpop.f32.mrf.mxu0
  %v509 = vpop.f32.mrf.mxu0
  %v510 = vadd.f32 0.0, %v509
  %v511 = vpop.f32.mrf.mxu0
  %512 = vmatprep.mubr.bf16.mxu0 0
  %513 = vmatmul.mubr.bf16.gmra.mxu0 %v363
  %v514 = vpop.f32.mrf.mxu0
  %v515 = vadd.f32 0.0, %v514
  %v516 = vpop.f32.mrf.mxu0
  %v517 = vpop.f32.mrf.mxu0
  %v518 = vadd.f32 0.0, %v517
  %v519 = vpop.f32.mrf.mxu0
  %520 = vmatprep.mubr.bf16.mxu0 0
  %521 = vmatmul.mubr.bf16.gmra.mxu0 %v366
  %v522 = vpop.f32.mrf.mxu0
  %v523 = vadd.f32 0.0, %v522
  %v524 = vpop.f32.mrf.mxu0
  %v525 = vpop.f32.mrf.mxu0
  %v526 = vadd.f32 0.0, %v525
  %v527 = vpop.f32.mrf.mxu0
  %528 = vdwg.mxu0
  %v529 = vld [vmem:[%s2] sm:$0xf]
  %v530 = vld [vmem:[%s2 + $0x4] sm:$0xf]
  %v531 = vld [vmem:[%s2 + $0x8] sm:$0xf]
  %v532 = vld [vmem:[%s2 + $0xc] sm:$0xf]
  %v533 = vld [vmem:[%s2 + $0x10] sm:$0xf]
  %v534 = vld [vmem:[%s2 + $0x14] sm:$0xf]
  %v535 = vld [vmem:[%s2 + $0x18] sm:$0xf]
  %v536 = vld [vmem:[%s2 + $0x1c] sm:$0xf]
  %v537 = vld [vmem:[%s2 + $0x20] sm:$0xf]
  %v538 = vld [vmem:[%s2 + $0x24] sm:$0xf]
  %v539 = vld [vmem:[%s2 + $0x28] sm:$0xf]
  %v540 = vld [vmem:[%s2 + $0x2c] sm:$0xf]
  %v541 = vld [vmem:[%s2 + $0x30] sm:$0xf]
  %v542 = vld [vmem:[%s2 + $0x34] sm:$0xf]
  %v543 = vld [vmem:[%s2 + $0x38] sm:$0xf]
  %v544 = vld [vmem:[%s2 + $0x3c] sm:$0xf]
  %v545 = vunpack.c.l.bf16 %v529
  %v546 = vunpack.c.l.bf16 %v530
  %v547 = vunpack.c.l.bf16 %v531
  %v548 = vunpack.c.l.bf16 %v532
  %v549 = vunpack.c.l.bf16 %v533
  %v550 = vunpack.c.l.bf16 %v534
  %v551 = vunpack.c.l.bf16 %v535
  %v552 = vunpack.c.l.bf16 %v536
  %v553 = vunpack.c.l.bf16 %v537
  %v554 = vunpack.c.l.bf16 %v538
  %v555 = vunpack.c.l.bf16 %v539
  %v556 = vunpack.c.l.bf16 %v540
  %v557 = vunpack.c.l.bf16 %v541
  %v558 = vunpack.c.l.bf16 %v542
  %v559 = vunpack.c.l.bf16 %v543
  %v560 = vunpack.c.l.bf16 %v544
  %v561 = vpack.c.bf16 %v406, %v403
  %v562 = vpack.c.bf16 %v414, %v411
  %v563 = vpack.c.bf16 %v422, %v419
  %v564 = vpack.c.bf16 %v430, %v427
  %v565 = vpack.c.bf16 %v438, %v435
  %v566 = vpack.c.bf16 %v446, %v443
  %v567 = vpack.c.bf16 %v454, %v451
  %v568 = vpack.c.bf16 %v462, %v459
  %v569 = vpack.c.bf16 %v470, %v467
  %v570 = vpack.c.bf16 %v478, %v475
  %v571 = vpack.c.bf16 %v486, %v483
  %v572 = vpack.c.bf16 %v494, %v491
  %v573 = vpack.c.bf16 %v502, %v499
  %v574 = vpack.c.bf16 %v510, %v507
  %v575 = vpack.c.bf16 %v518, %v515
  %v576 = vpack.c.bf16 %v526, %v523
  %v577 = vld [vmem:[%s3] sm:$0xf]
  %v578 = vld [vmem:[%s3 + $0x4] sm:$0xf]
  %v579 = vld [vmem:[%s3 + $0x8] sm:$0xf]
  %v580 = vld [vmem:[%s3 + $0xc] sm:$0xf]
  %v581 = vld [vmem:[%s4] sm:$0xf]
  %v582 = vld [vmem:[%s4 + $0x4] sm:$0xf]
  %v583 = vld [vmem:[%s4 + $0x8] sm:$0xf]
  %v584 = vld [vmem:[%s4 + $0xc] sm:$0xf]
  %v589 = vunpack.c.l.b16 %v581
  %v590 = vunpack.c.l.b16 %v582
  %v591 = vunpack.c.l.b16 %v583
  %v592 = vunpack.c.l.b16 %v584
  %v593 = vpack.c.b16 %v590, %v589
  %v594 = vpack.c.b16 %v592, %v591
  %vm597 = vcmask 261120
  %v599 = vsel %vm597, %v569, 0
  %v602 = vsel %vm597, %v570, 0
  %v605 = vsel %vm597, %v571, 0
  %v608 = vsel %vm597, %v572, 0
  %v611 = vsel %vm597, %v573, 0
  %v614 = vsel %vm597, %v574, 0
  %v617 = vsel %vm597, %v575, 0
  %v620 = vsel %vm597, %v576, 0
  %622 = vmatprep.subr.bf16.mxu0 0
  %623 = vmatpush1.bf16.msra.mxu0 0
  %624 = vmatprep.subr.bf16.mxu0 0
  %625 = vmatpush1.bf16.msra.mxu0 0
  %626 = vmatprep.subr.bf16.mxu0 0
  %627 = vmatpush1.bf16.msra.mxu0 0
  %628 = vmatprep.subr.bf16.mxu0 0
  %629 = vmatpush1.bf16.msra.mxu0 0
  %630 = vmatprep.subr.bf16.mxu0 0
  %631 = vmatpush1.bf16.msra.mxu0 0
  %632 = vmatprep.subr.bf16.mxu0 0
  %633 = vmatpush1.bf16.msra.mxu0 0
  %634 = vmatprep.subr.bf16.mxu0 0
  %635 = vmatpush1.bf16.msra.mxu0 %v594
  %636 = vmatprep.subr.bf16.mxu0 0
  %637 = vmatpush1.bf16.msra.mxu0 %v593
  %638 = vmatprep.subr.bf16.mxu0 0
  %639 = vmatpush2.bf16.msra.mxu0 0
  %640 = vmatprep.subr.bf16.mxu0 0
  %641 = vmatpush2.bf16.msra.mxu0 0
  %642 = vmatprep.subr.bf16.mxu0 0
  %643 = vmatpush2.bf16.msra.mxu0 0
  %644 = vmatprep.subr.bf16.mxu0 0
  %645 = vmatpush2.bf16.msra.mxu0 0
  %646 = vmatprep.subr.bf16.mxu0 0
  %647 = vmatpush2.bf16.msra.mxu0 0
  %648 = vmatprep.subr.bf16.mxu0 0
  %649 = vmatpush2.bf16.msra.mxu0 0
  %650 = vmatprep.subr.bf16.mxu0 0
  %651 = vmatpush2.bf16.msra.mxu0 0
  %652 = vmatprep.subr.bf16.mxu0 0
  %653 = vmatpush2.bf16.msra.mxu0 0
  %654 = vmatprep.mubr.bf16.mxu0 0
  %655 = vmatmul.mubr.bf16.gmra.mxu0 %v599
  %v656 = vpop.f32.mrf.mxu0
  %v657 = vadd.f32 0.0, %v656
  %v658 = vpop.f32.mrf.mxu0
  %v659 = vpop.f32.mrf.mxu0
  %v660 = vadd.f32 0.0, %v659
  %v661 = vpop.f32.mrf.mxu0
  %662 = vmatprep.mubr.bf16.mxu0 0
  %663 = vmatmul.mubr.bf16.gmra.mxu0 %v602
  %v664 = vpop.f32.mrf.mxu0
  %v665 = vadd.f32 0.0, %v664
  %v666 = vpop.f32.mrf.mxu0
  %v667 = vpop.f32.mrf.mxu0
  %v668 = vadd.f32 0.0, %v667
  %v669 = vpop.f32.mrf.mxu0
  %670 = vmatprep.mubr.bf16.mxu0 0
  %671 = vmatmul.mubr.bf16.gmra.mxu0 %v605
  %v672 = vpop.f32.mrf.mxu0
  %v673 = vadd.f32 0.0, %v672
  %v674 = vpop.f32.mrf.mxu0
  %v675 = vpop.f32.mrf.mxu0
  %v676 = vadd.f32 0.0, %v675
  %v677 = vpop.f32.mrf.mxu0
  %678 = vmatprep.mubr.bf16.mxu0 0
  %679 = vmatmul.mubr.bf16.gmra.mxu0 %v608
  %v680 = vpop.f32.mrf.mxu0
  %v681 = vadd.f32 0.0, %v680
  %v682 = vpop.f32.mrf.mxu0
  %v683 = vpop.f32.mrf.mxu0
  %v684 = vadd.f32 0.0, %v683
  %v685 = vpop.f32.mrf.mxu0
  %686 = vmatprep.mubr.bf16.mxu0 0
  %687 = vmatmul.mubr.bf16.gmra.mxu0 %v611
  %v688 = vpop.f32.mrf.mxu0
  %v689 = vadd.f32 0.0, %v688
  %v690 = vpop.f32.mrf.mxu0
  %v691 = vpop.f32.mrf.mxu0
  %v692 = vadd.f32 0.0, %v691
  %v693 = vpop.f32.mrf.mxu0
  %694 = vmatprep.mubr.bf16.mxu0 0
  %695 = vmatmul.mubr.bf16.gmra.mxu0 %v614
  %v696 = vpop.f32.mrf.mxu0
  %v697 = vadd.f32 0.0, %v696
  %v698 = vpop.f32.mrf.mxu0
  %v699 = vpop.f32.mrf.mxu0
  %v700 = vadd.f32 0.0, %v699
  %v701 = vpop.f32.mrf.mxu0
  %702 = vmatprep.mubr.bf16.mxu0 0
  %703 = vmatmul.mubr.bf16.gmra.mxu0 %v617
  %v704 = vpop.f32.mrf.mxu0
  %v705 = vadd.f32 0.0, %v704
  %v706 = vpop.f32.mrf.mxu0
  %v707 = vpop.f32.mrf.mxu0
  %v708 = vadd.f32 0.0, %v707
  %v709 = vpop.f32.mrf.mxu0
  %710 = vmatprep.mubr.bf16.mxu0 0
  %711 = vmatmul.mubr.bf16.gmra.mxu0 %v620
  %v712 = vpop.f32.mrf.mxu0
  %v713 = vadd.f32 0.0, %v712
  %v714 = vpop.f32.mrf.mxu0
  %v715 = vpop.f32.mrf.mxu0
  %v716 = vadd.f32 0.0, %v715
  %v717 = vpop.f32.mrf.mxu0
  %718 = vdwg.mxu0
  %v723 = vunpack.c.l.b16 %v577
  %v724 = vunpack.c.l.b16 %v578
  %v725 = vunpack.c.l.b16 %v579
  %v726 = vunpack.c.l.b16 %v580
  %v727 = vpack.c.b16 %v724, %v723
  %v728 = vpack.c.b16 %v726, %v725
  %v732 = vsel %vm597, %v561, 0
  %v735 = vsel %vm597, %v562, 0
  %v738 = vsel %vm597, %v563, 0
  %v741 = vsel %vm597, %v564, 0
  %v744 = vsel %vm597, %v565, 0
  %v747 = vsel %vm597, %v566, 0
  %v750 = vsel %vm597, %v567, 0
  %v753 = vsel %vm597, %v568, 0
  %755 = vmatprep.subr.bf16.mxu0 0
  %756 = vmatpush1.bf16.msra.mxu0 0
  %757 = vmatprep.subr.bf16.mxu0 0
  %758 = vmatpush1.bf16.msra.mxu0 0
  %759 = vmatprep.subr.bf16.mxu0 0
  %760 = vmatpush1.bf16.msra.mxu0 0
  %761 = vmatprep.subr.bf16.mxu0 0
  %762 = vmatpush1.bf16.msra.mxu0 0
  %763 = vmatprep.subr.bf16.mxu0 0
  %764 = vmatpush1.bf16.msra.mxu0 0
  %765 = vmatprep.subr.bf16.mxu0 0
  %766 = vmatpush1.bf16.msra.mxu0 0
  %767 = vmatprep.subr.bf16.mxu0 0
  %768 = vmatpush1.bf16.msra.mxu0 %v728
  %769 = vmatprep.subr.bf16.mxu0 0
  %770 = vmatpush1.bf16.msra.mxu0 %v727
  %771 = vmatprep.subr.bf16.mxu0 0
  %772 = vmatpush2.bf16.msra.mxu0 0
  %773 = vmatprep.subr.bf16.mxu0 0
  %774 = vmatpush2.bf16.msra.mxu0 0
  %775 = vmatprep.subr.bf16.mxu0 0
  %776 = vmatpush2.bf16.msra.mxu0 0
  %777 = vmatprep.subr.bf16.mxu0 0
  %778 = vmatpush2.bf16.msra.mxu0 0
  %779 = vmatprep.subr.bf16.mxu0 0
  %780 = vmatpush2.bf16.msra.mxu0 0
  %781 = vmatprep.subr.bf16.mxu0 0
  %782 = vmatpush2.bf16.msra.mxu0 0
  %783 = vmatprep.subr.bf16.mxu0 0
  %784 = vmatpush2.bf16.msra.mxu0 0
  %785 = vmatprep.subr.bf16.mxu0 0
  %786 = vmatpush2.bf16.msra.mxu0 0
  %787 = vmatprep.mubr.bf16.mxu0 0
  %788 = vmatmul.mubr.bf16.gmra.mxu0 %v732
  %v789 = vpop.f32.mrf.mxu0
  %v790 = vadd.f32 %v657, %v789
  %v791 = vpop.f32.mrf.mxu0
  %v792 = vpop.f32.mrf.mxu0
  %v793 = vadd.f32 %v660, %v792
  %v794 = vpop.f32.mrf.mxu0
  %795 = vmatprep.mubr.bf16.mxu0 0
  %796 = vmatmul.mubr.bf16.gmra.mxu0 %v735
  %v797 = vpop.f32.mrf.mxu0
  %v798 = vadd.f32 %v665, %v797
  %v799 = vpop.f32.mrf.mxu0
  %v800 = vpop.f32.mrf.mxu0
  %v801 = vadd.f32 %v668, %v800
  %v802 = vpop.f32.mrf.mxu0
  %803 = vmatprep.mubr.bf16.mxu0 0
  %804 = vmatmul.mubr.bf16.gmra.mxu0 %v738
  %v805 = vpop.f32.mrf.mxu0
  %v806 = vadd.f32 %v673, %v805
  %v807 = vpop.f32.mrf.mxu0
  %v808 = vpop.f32.mrf.mxu0
  %v809 = vadd.f32 %v676, %v808
  %v810 = vpop.f32.mrf.mxu0
  %811 = vmatprep.mubr.bf16.mxu0 0
  %812 = vmatmul.mubr.bf16.gmra.mxu0 %v741
  %v813 = vpop.f32.mrf.mxu0
  %v814 = vadd.f32 %v681, %v813
  %v815 = vpop.f32.mrf.mxu0
  %v816 = vpop.f32.mrf.mxu0
  %v817 = vadd.f32 %v684, %v816
  %v818 = vpop.f32.mrf.mxu0
  %819 = vmatprep.mubr.bf16.mxu0 0
  %820 = vmatmul.mubr.bf16.gmra.mxu0 %v744
  %v821 = vpop.f32.mrf.mxu0
  %v822 = vadd.f32 %v689, %v821
  %v823 = vpop.f32.mrf.mxu0
  %v824 = vpop.f32.mrf.mxu0
  %v825 = vadd.f32 %v692, %v824
  %v826 = vpop.f32.mrf.mxu0
  %827 = vmatprep.mubr.bf16.mxu0 0
  %828 = vmatmul.mubr.bf16.gmra.mxu0 %v747
  %v829 = vpop.f32.mrf.mxu0
  %v830 = vadd.f32 %v697, %v829
  %v831 = vpop.f32.mrf.mxu0
  %v832 = vpop.f32.mrf.mxu0
  %v833 = vadd.f32 %v700, %v832
  %v834 = vpop.f32.mrf.mxu0
  %835 = vmatprep.mubr.bf16.mxu0 0
  %836 = vmatmul.mubr.bf16.gmra.mxu0 %v750
  %v837 = vpop.f32.mrf.mxu0
  %v838 = vadd.f32 %v705, %v837
  %v839 = vpop.f32.mrf.mxu0
  %v840 = vpop.f32.mrf.mxu0
  %v841 = vadd.f32 %v708, %v840
  %v842 = vpop.f32.mrf.mxu0
  %843 = vmatprep.mubr.bf16.mxu0 0
  %844 = vmatmul.mubr.bf16.gmra.mxu0 %v753
  %v845 = vpop.f32.mrf.mxu0
  %v846 = vadd.f32 %v713, %v845
  %v847 = vpop.f32.mrf.mxu0
  %v848 = vpop.f32.mrf.mxu0
  %v849 = vadd.f32 %v716, %v848
  %v850 = vpop.f32.mrf.mxu0
  %851 = vdwg.mxu0
  %v852 = vld [vmem:[%s5] sm:$0xf]
  %v853 = vld [vmem:[%s5 + $0x4] sm:$0xf]
  %v854 = vld [vmem:[%s5 + $0x8] sm:$0xf]
  %v855 = vld [vmem:[%s5 + $0xc] sm:$0xf]
  %v872 = vunpack.c.l.b16 %v529
  %v873 = vunpack.c.l.b16 %v530
  %v874 = vunpack.c.l.b16 %v531
  %v875 = vunpack.c.l.b16 %v532
  %v876 = vunpack.c.l.b16 %v533
  %v877 = vunpack.c.l.b16 %v534
  %v878 = vunpack.c.l.b16 %v535
  %v879 = vunpack.c.l.b16 %v536
  %v880 = vunpack.c.l.b16 %v537
  %v881 = vunpack.c.l.b16 %v538
  %v882 = vunpack.c.l.b16 %v539
  %v883 = vunpack.c.l.b16 %v540
  %v884 = vunpack.c.l.b16 %v541
  %v885 = vunpack.c.l.b16 %v542
  %v886 = vunpack.c.l.b16 %v543
  %v887 = vunpack.c.l.b16 %v544
  %v888 = vpack.c.b16 %v873, %v872
  %v889 = vpack.c.b16 %v875, %v874
  %v890 = vpack.c.b16 %v877, %v876
  %v891 = vpack.c.b16 %v879, %v878
  %v892 = vpack.c.b16 %v881, %v880
  %v893 = vpack.c.b16 %v883, %v882
  %v894 = vpack.c.b16 %v885, %v884
  %v895 = vpack.c.b16 %v887, %v886
  %v900 = vunpack.c.l.b16 %v852
  %v901 = vunpack.c.l.b16 %v853
  %v902 = vunpack.c.l.b16 %v854
  %v903 = vunpack.c.l.b16 %v855
  %v904 = vpack.c.b16 %v901, %v900
  %v905 = vpack.c.b16 %v903, %v902
  %v909 = vsel %vm597, %v888, 0
  %v912 = vsel %vm597, %v889, 0
  %v915 = vsel %vm597, %v890, 0
  %v918 = vsel %vm597, %v891, 0
  %v921 = vsel %vm597, %v892, 0
  %v924 = vsel %vm597, %v893, 0
  %v927 = vsel %vm597, %v894, 0
  %v930 = vsel %vm597, %v895, 0
  %932 = vmatprep.subr.bf16.mxu0 0
  %933 = vmatpush1.bf16.msra.mxu0 0
  %934 = vmatprep.subr.bf16.mxu0 0
  %935 = vmatpush1.bf16.msra.mxu0 0
  %936 = vmatprep.subr.bf16.mxu0 0
  %937 = vmatpush1.bf16.msra.mxu0 0
  %938 = vmatprep.subr.bf16.mxu0 0
  %939 = vmatpush1.bf16.msra.mxu0 0
  %940 = vmatprep.subr.bf16.mxu0 0
  %941 = vmatpush1.bf16.msra.mxu0 0
  %942 = vmatprep.subr.bf16.mxu0 0
  %943 = vmatpush1.bf16.msra.mxu0 0
  %944 = vmatprep.subr.bf16.mxu0 0
  %945 = vmatpush1.bf16.msra.mxu0 %v905
  %946 = vmatprep.subr.bf16.mxu0 0
  %947 = vmatpush1.bf16.msra.mxu0 %v904
  %948 = vmatprep.subr.bf16.mxu0 0
  %949 = vmatpush2.bf16.msra.mxu0 0
  %950 = vmatprep.subr.bf16.mxu0 0
  %951 = vmatpush2.bf16.msra.mxu0 0
  %952 = vmatprep.subr.bf16.mxu0 0
  %953 = vmatpush2.bf16.msra.mxu0 0
  %954 = vmatprep.subr.bf16.mxu0 0
  %955 = vmatpush2.bf16.msra.mxu0 0
  %956 = vmatprep.subr.bf16.mxu0 0
  %957 = vmatpush2.bf16.msra.mxu0 0
  %958 = vmatprep.subr.bf16.mxu0 0
  %959 = vmatpush2.bf16.msra.mxu0 0
  %960 = vmatprep.subr.bf16.mxu0 0
  %961 = vmatpush2.bf16.msra.mxu0 0
  %962 = vmatprep.subr.bf16.mxu0 0
  %963 = vmatpush2.bf16.msra.mxu0 0
  %964 = vmatprep.mubr.bf16.mxu0 0
  %965 = vmatmul.mubr.bf16.gmra.mxu0 %v909
  %v966 = vpop.f32.mrf.mxu0
  %v967 = vadd.f32 0.0, %v966
  %v968 = vpop.f32.mrf.mxu0
  %v969 = vpop.f32.mrf.mxu0
  %v970 = vadd.f32 0.0, %v969
  %v971 = vpop.f32.mrf.mxu0
  %972 = vmatprep.mubr.bf16.mxu0 0
  %973 = vmatmul.mubr.bf16.gmra.mxu0 %v912
  %v974 = vpop.f32.mrf.mxu0
  %v975 = vadd.f32 0.0, %v974
  %v976 = vpop.f32.mrf.mxu0
  %v977 = vpop.f32.mrf.mxu0
  %v978 = vadd.f32 0.0, %v977
  %v979 = vpop.f32.mrf.mxu0
  %980 = vmatprep.mubr.bf16.mxu0 0
  %981 = vmatmul.mubr.bf16.gmra.mxu0 %v915
  %v982 = vpop.f32.mrf.mxu0
  %v983 = vadd.f32 0.0, %v982
  %v984 = vpop.f32.mrf.mxu0
  %v985 = vpop.f32.mrf.mxu0
  %v986 = vadd.f32 0.0, %v985
  %v987 = vpop.f32.mrf.mxu0
  %988 = vmatprep.mubr.bf16.mxu0 0
  %989 = vmatmul.mubr.bf16.gmra.mxu0 %v918
  %v990 = vpop.f32.mrf.mxu0
  %v991 = vadd.f32 0.0, %v990
  %v992 = vpop.f32.mrf.mxu0
  %v993 = vpop.f32.mrf.mxu0
  %v994 = vadd.f32 0.0, %v993
  %v995 = vpop.f32.mrf.mxu0
  %996 = vmatprep.mubr.bf16.mxu0 0
  %997 = vmatmul.mubr.bf16.gmra.mxu0 %v921
  %v998 = vpop.f32.mrf.mxu0
  %v999 = vadd.f32 0.0, %v998
  %v1000 = vpop.f32.mrf.mxu0
  %v1001 = vpop.f32.mrf.mxu0
  %v1002 = vadd.f32 0.0, %v1001
  %v1003 = vpop.f32.mrf.mxu0
  %1004 = vmatprep.mubr.bf16.mxu0 0
  %1005 = vmatmul.mubr.bf16.gmra.mxu0 %v924
  %v1006 = vpop.f32.mrf.mxu0
  %v1007 = vadd.f32 0.0, %v1006
  %v1008 = vpop.f32.mrf.mxu0
  %v1009 = vpop.f32.mrf.mxu0
  %v1010 = vadd.f32 0.0, %v1009
  %v1011 = vpop.f32.mrf.mxu0
  %1012 = vmatprep.mubr.bf16.mxu0 0
  %1013 = vmatmul.mubr.bf16.gmra.mxu0 %v927
  %v1014 = vpop.f32.mrf.mxu0
  %v1015 = vadd.f32 0.0, %v1014
  %v1016 = vpop.f32.mrf.mxu0
  %v1017 = vpop.f32.mrf.mxu0
  %v1018 = vadd.f32 0.0, %v1017
  %v1019 = vpop.f32.mrf.mxu0
  %1020 = vmatprep.mubr.bf16.mxu0 0
  %1021 = vmatmul.mubr.bf16.gmra.mxu0 %v930
  %v1022 = vpop.f32.mrf.mxu0
  %v1023 = vadd.f32 0.0, %v1022
  %v1024 = vpop.f32.mrf.mxu0
  %v1025 = vpop.f32.mrf.mxu0
  %v1026 = vadd.f32 0.0, %v1025
  %v1027 = vpop.f32.mrf.mxu0
  %1028 = vdwg.mxu0
  %v1029 = vadd.f32 %v790, %v967
  %v1030 = vadd.f32 %v793, %v970
  %v1031 = vadd.f32 %v798, %v975
  %v1032 = vadd.f32 %v801, %v978
  %v1033 = vadd.f32 %v806, %v983
  %v1034 = vadd.f32 %v809, %v986
  %v1035 = vadd.f32 %v814, %v991
  %v1036 = vadd.f32 %v817, %v994
  %v1037 = vadd.f32 %v822, %v999
  %v1038 = vadd.f32 %v825, %v1002
  %v1039 = vadd.f32 %v830, %v1007
  %v1040 = vadd.f32 %v833, %v1010
  %v1041 = vadd.f32 %v838, %v1015
  %v1042 = vadd.f32 %v841, %v1018
  %v1043 = vadd.f32 %v846, %v1023
  %v1044 = vadd.f32 %v849, %v1026
  %v1045 = vld [vmem:[%s6] sm:$0x1]
  %v1047 = vlaneseq
  %v1048 = vshrl.u32 %v1047, 7
  %v1049 = vsub.s32 0, %v1048
  %v1050 = vrot.slane %v1045, %v1049
  %v1052 = vadd.f32 %v1029, %v1050
  %v1053 = vadd.f32 %v1030, %v1050
  %v1054 = vadd.f32 %v1031, %v1050
  %v1055 = vadd.f32 %v1032, %v1050
  %v1056 = vadd.f32 %v1033, %v1050
  %v1057 = vadd.f32 %v1034, %v1050
  %v1058 = vadd.f32 %v1035, %v1050
  %v1059 = vadd.f32 %v1036, %v1050
  %v1060 = vadd.f32 %v1037, %v1050
  %v1061 = vadd.f32 %v1038, %v1050
  %v1062 = vadd.f32 %v1039, %v1050
  %v1063 = vadd.f32 %v1040, %v1050
  %v1064 = vadd.f32 %v1041, %v1050
  %v1065 = vadd.f32 %v1042, %v1050
  %v1066 = vadd.f32 %v1043, %v1050
  %v1067 = vadd.f32 %v1044, %v1050
  %v1068 = vld [vmem:[%s7] sm:$0x1]
  %v1069 = vld [vmem:[%s8] sm:$0x1]
  %v1070 = vsel %vm597, %v1052, 0.0
  %1071 = vadd.xlane.f32.xlu0 %v1070
  %v1072 = vpop.xlane.xlu0 %1071
  %v1073 = vsel %vm597, %v1053, 0.0
  %1074 = vadd.xlane.f32.xlu0 %v1073
  %v1075 = vpop.xlane.xlu0 %1074
  %v1076 = vsel %vm597, %v1054, 0.0
  %1077 = vadd.xlane.f32.xlu0 %v1076
  %v1078 = vpop.xlane.xlu0 %1077
  %v1079 = vsel %vm597, %v1055, 0.0
  %1080 = vadd.xlane.f32.xlu0 %v1079
  %v1081 = vpop.xlane.xlu0 %1080
  %v1082 = vsel %vm597, %v1056, 0.0
  %1083 = vadd.xlane.f32.xlu0 %v1082
  %v1084 = vpop.xlane.xlu0 %1083
  %v1085 = vsel %vm597, %v1057, 0.0
  %1086 = vadd.xlane.f32.xlu0 %v1085
  %v1087 = vpop.xlane.xlu0 %1086
  %v1088 = vsel %vm597, %v1058, 0.0
  %1089 = vadd.xlane.f32.xlu0 %v1088
  %v1090 = vpop.xlane.xlu0 %1089
  %v1091 = vsel %vm597, %v1059, 0.0
  %1092 = vadd.xlane.f32.xlu0 %v1091
  %v1093 = vpop.xlane.xlu0 %1092
  %v1094 = vsel %vm597, %v1060, 0.0
  %1095 = vadd.xlane.f32.xlu0 %v1094
  %v1096 = vpop.xlane.xlu0 %1095
  %v1097 = vsel %vm597, %v1061, 0.0
  %1098 = vadd.xlane.f32.xlu0 %v1097
  %v1099 = vpop.xlane.xlu0 %1098
  %v1100 = vsel %vm597, %v1062, 0.0
  %1101 = vadd.xlane.f32.xlu0 %v1100
  %v1102 = vpop.xlane.xlu0 %1101
  %v1103 = vsel %vm597, %v1063, 0.0
  %1104 = vadd.xlane.f32.xlu0 %v1103
  %v1105 = vpop.xlane.xlu0 %1104
  %v1106 = vsel %vm597, %v1064, 0.0
  %1107 = vadd.xlane.f32.xlu0 %v1106
  %v1108 = vpop.xlane.xlu0 %1107
  %v1109 = vsel %vm597, %v1065, 0.0
  %1110 = vadd.xlane.f32.xlu0 %v1109
  %v1111 = vpop.xlane.xlu0 %1110
  %v1112 = vsel %vm597, %v1066, 0.0
  %1113 = vadd.xlane.f32.xlu0 %v1112
  %v1114 = vpop.xlane.xlu0 %1113
  %v1115 = vsel %vm597, %v1067, 0.0
  %1116 = vadd.xlane.f32.xlu0 %v1115
  %v1117 = vpop.xlane.xlu0 %1116
  %v1118 = vrcp.pop 32.0
  %v1119 = vmul.f32 %v1072, %v1118
  %v1120 = vmul.f32 %v1075, %v1118
  %v1121 = vmul.f32 %v1078, %v1118
  %v1122 = vmul.f32 %v1081, %v1118
  %v1123 = vmul.f32 %v1084, %v1118
  %v1124 = vmul.f32 %v1087, %v1118
  %v1125 = vmul.f32 %v1090, %v1118
  %v1126 = vmul.f32 %v1093, %v1118
  %v1127 = vmul.f32 %v1096, %v1118
  %v1128 = vmul.f32 %v1099, %v1118
  %v1129 = vmul.f32 %v1102, %v1118
  %v1130 = vmul.f32 %v1105, %v1118
  %v1131 = vmul.f32 %v1108, %v1118
  %v1132 = vmul.f32 %v1111, %v1118
  %v1133 = vmul.f32 %v1114, %v1118
  %v1134 = vmul.f32 %v1117, %v1118
  %v1135 = vsub.f32 %v1052, %v1119
  %v1136 = vsub.f32 %v1053, %v1120
  %v1137 = vsub.f32 %v1054, %v1121
  %v1138 = vsub.f32 %v1055, %v1122
  %v1139 = vsub.f32 %v1056, %v1123
  %v1140 = vsub.f32 %v1057, %v1124
  %v1141 = vsub.f32 %v1058, %v1125
  %v1142 = vsub.f32 %v1059, %v1126
  %v1143 = vsub.f32 %v1060, %v1127
  %v1144 = vsub.f32 %v1061, %v1128
  %v1145 = vsub.f32 %v1062, %v1129
  %v1146 = vsub.f32 %v1063, %v1130
  %v1147 = vsub.f32 %v1064, %v1131
  %v1148 = vsub.f32 %v1065, %v1132
  %v1149 = vsub.f32 %v1066, %v1133
  %v1150 = vsub.f32 %v1067, %v1134
  %v1151 = vmul.f32 %v1135, %v1135
  %v1152 = vmul.f32 %v1136, %v1136
  %v1153 = vmul.f32 %v1137, %v1137
  %v1154 = vmul.f32 %v1138, %v1138
  %v1155 = vmul.f32 %v1139, %v1139
  %v1156 = vmul.f32 %v1140, %v1140
  %v1157 = vmul.f32 %v1141, %v1141
  %v1158 = vmul.f32 %v1142, %v1142
  %v1159 = vmul.f32 %v1143, %v1143
  %v1160 = vmul.f32 %v1144, %v1144
  %v1161 = vmul.f32 %v1145, %v1145
  %v1162 = vmul.f32 %v1146, %v1146
  %v1163 = vmul.f32 %v1147, %v1147
  %v1164 = vmul.f32 %v1148, %v1148
  %v1165 = vmul.f32 %v1149, %v1149
  %v1166 = vmul.f32 %v1150, %v1150
  %v1167 = vsel %vm597, %v1151, 0.0
  %1168 = vadd.xlane.f32.xlu0 %v1167
  %v1169 = vpop.xlane.xlu0 %1168
  %v1170 = vsel %vm597, %v1152, 0.0
  %1171 = vadd.xlane.f32.xlu0 %v1170
  %v1172 = vpop.xlane.xlu0 %1171
  %v1173 = vsel %vm597, %v1153, 0.0
  %1174 = vadd.xlane.f32.xlu0 %v1173
  %v1175 = vpop.xlane.xlu0 %1174
  %v1176 = vsel %vm597, %v1154, 0.0
  %1177 = vadd.xlane.f32.xlu0 %v1176
  %v1178 = vpop.xlane.xlu0 %1177
  %v1179 = vsel %vm597, %v1155, 0.0
  %1180 = vadd.xlane.f32.xlu0 %v1179
  %v1181 = vpop.xlane.xlu0 %1180
  %v1182 = vsel %vm597, %v1156, 0.0
  %1183 = vadd.xlane.f32.xlu0 %v1182
  %v1184 = vpop.xlane.xlu0 %1183
  %v1185 = vsel %vm597, %v1157, 0.0
  %1186 = vadd.xlane.f32.xlu0 %v1185
  %v1187 = vpop.xlane.xlu0 %1186
  %v1188 = vsel %vm597, %v1158, 0.0
  %1189 = vadd.xlane.f32.xlu0 %v1188
  %v1190 = vpop.xlane.xlu0 %1189
  %v1191 = vsel %vm597, %v1159, 0.0
  %1192 = vadd.xlane.f32.xlu0 %v1191
  %v1193 = vpop.xlane.xlu0 %1192
  %v1194 = vsel %vm597, %v1160, 0.0
  %1195 = vadd.xlane.f32.xlu0 %v1194
  %v1196 = vpop.xlane.xlu0 %1195
  %v1197 = vsel %vm597, %v1161, 0.0
  %1198 = vadd.xlane.f32.xlu0 %v1197
  %v1199 = vpop.xlane.xlu0 %1198
  %v1200 = vsel %vm597, %v1162, 0.0
  %1201 = vadd.xlane.f32.xlu0 %v1200
  %v1202 = vpop.xlane.xlu0 %1201
  %v1203 = vsel %vm597, %v1163, 0.0
  %1204 = vadd.xlane.f32.xlu0 %v1203
  %v1205 = vpop.xlane.xlu0 %1204
  %v1206 = vsel %vm597, %v1164, 0.0
  %1207 = vadd.xlane.f32.xlu0 %v1206
  %v1208 = vpop.xlane.xlu0 %1207
  %v1209 = vsel %vm597, %v1165, 0.0
  %1210 = vadd.xlane.f32.xlu0 %v1209
  %v1211 = vpop.xlane.xlu0 %1210
  %v1212 = vsel %vm597, %v1166, 0.0
  %1213 = vadd.xlane.f32.xlu0 %v1212
  %v1214 = vpop.xlane.xlu0 %1213
  %v1215 = vmul.f32 %v1169, %v1118
  %v1216 = vmul.f32 %v1172, %v1118
  %v1217 = vmul.f32 %v1175, %v1118
  %v1218 = vmul.f32 %v1178, %v1118
  %v1219 = vmul.f32 %v1181, %v1118
  %v1220 = vmul.f32 %v1184, %v1118
  %v1221 = vmul.f32 %v1187, %v1118
  %v1222 = vmul.f32 %v1190, %v1118
  %v1223 = vmul.f32 %v1193, %v1118
  %v1224 = vmul.f32 %v1196, %v1118
  %v1225 = vmul.f32 %v1199, %v1118
  %v1226 = vmul.f32 %v1202, %v1118
  %v1227 = vmul.f32 %v1205, %v1118
  %v1228 = vmul.f32 %v1208, %v1118
  %v1229 = vmul.f32 %v1211, %v1118
  %v1230 = vmul.f32 %v1214, %v1118
  %v1231 = vadd.f32 %v1215, 1e-05
  %v1232 = vadd.f32 %v1216, 1e-05
  %v1233 = vadd.f32 %v1217, 1e-05
  %v1234 = vadd.f32 %v1218, 1e-05
  %v1235 = vadd.f32 %v1219, 1e-05
  %v1236 = vadd.f32 %v1220, 1e-05
  %v1237 = vadd.f32 %v1221, 1e-05
  %v1238 = vadd.f32 %v1222, 1e-05
  %v1239 = vadd.f32 %v1223, 1e-05
  %v1240 = vadd.f32 %v1224, 1e-05
  %v1241 = vadd.f32 %v1225, 1e-05
  %v1242 = vadd.f32 %v1226, 1e-05
  %v1243 = vadd.f32 %v1227, 1e-05
  %v1244 = vadd.f32 %v1228, 1e-05
  %v1245 = vadd.f32 %v1229, 1e-05
  %v1246 = vadd.f32 %v1230, 1e-05
  %v1247 = vrsqrt.pop %v1231
  %v1248 = vrsqrt.pop %v1232
  %v1249 = vrsqrt.pop %v1233
  %v1250 = vrsqrt.pop %v1234
  %v1251 = vrsqrt.pop %v1235
  %v1252 = vrsqrt.pop %v1236
  %v1253 = vrsqrt.pop %v1237
  %v1254 = vrsqrt.pop %v1238
  %v1255 = vrsqrt.pop %v1239
  %v1256 = vrsqrt.pop %v1240
  %v1257 = vrsqrt.pop %v1241
  %v1258 = vrsqrt.pop %v1242
  %v1259 = vrsqrt.pop %v1243
  %v1260 = vrsqrt.pop %v1244
  %v1261 = vrsqrt.pop %v1245
  %v1262 = vrsqrt.pop %v1246
  %v1263 = vmul.f32 %v1135, %v1247
  %v1264 = vmul.f32 %v1136, %v1248
  %v1265 = vmul.f32 %v1137, %v1249
  %v1266 = vmul.f32 %v1138, %v1250
  %v1267 = vmul.f32 %v1139, %v1251
  %v1268 = vmul.f32 %v1140, %v1252
  %v1269 = vmul.f32 %v1141, %v1253
  %v1270 = vmul.f32 %v1142, %v1254
  %v1271 = vmul.f32 %v1143, %v1255
  %v1272 = vmul.f32 %v1144, %v1256
  %v1273 = vmul.f32 %v1145, %v1257
  %v1274 = vmul.f32 %v1146, %v1258
  %v1275 = vmul.f32 %v1147, %v1259
  %v1276 = vmul.f32 %v1148, %v1260
  %v1277 = vmul.f32 %v1149, %v1261
  %v1278 = vmul.f32 %v1150, %v1262
  %v1280 = vlaneseq
  %v1281 = vshrl.u32 %v1280, 7
  %v1282 = vsub.s32 0, %v1281
  %v1283 = vrot.slane %v1068, %v1282
  %v1285 = vmul.f32 %v1263, %v1283
  %v1286 = vmul.f32 %v1264, %v1283
  %v1287 = vmul.f32 %v1265, %v1283
  %v1288 = vmul.f32 %v1266, %v1283
  %v1289 = vmul.f32 %v1267, %v1283
  %v1290 = vmul.f32 %v1268, %v1283
  %v1291 = vmul.f32 %v1269, %v1283
  %v1292 = vmul.f32 %v1270, %v1283
  %v1293 = vmul.f32 %v1271, %v1283
  %v1294 = vmul.f32 %v1272, %v1283
  %v1295 = vmul.f32 %v1273, %v1283
  %v1296 = vmul.f32 %v1274, %v1283
  %v1297 = vmul.f32 %v1275, %v1283
  %v1298 = vmul.f32 %v1276, %v1283
  %v1299 = vmul.f32 %v1277, %v1283
  %v1300 = vmul.f32 %v1278, %v1283
  %v1302 = vlaneseq
  %v1303 = vshrl.u32 %v1302, 7
  %v1304 = vsub.s32 0, %v1303
  %v1305 = vrot.slane %v1069, %v1304
  %v1307 = vadd.f32 %v1285, %v1305
  %v1308 = vadd.f32 %v1286, %v1305
  %v1309 = vadd.f32 %v1287, %v1305
  %v1310 = vadd.f32 %v1288, %v1305
  %v1311 = vadd.f32 %v1289, %v1305
  %v1312 = vadd.f32 %v1290, %v1305
  %v1313 = vadd.f32 %v1291, %v1305
  %v1314 = vadd.f32 %v1292, %v1305
  %v1315 = vadd.f32 %v1293, %v1305
  %v1316 = vadd.f32 %v1294, %v1305
  %v1317 = vadd.f32 %v1295, %v1305
  %v1318 = vadd.f32 %v1296, %v1305
  %v1319 = vadd.f32 %v1297, %v1305
  %v1320 = vadd.f32 %v1298, %v1305
  %v1321 = vadd.f32 %v1299, %v1305
  %v1322 = vadd.f32 %v1300, %v1305
  %v1323 = vmax.f32 %v1307, 0.0
  %v1324 = vmax.f32 %v1308, 0.0
  %v1325 = vmax.f32 %v1309, 0.0
  %v1326 = vmax.f32 %v1310, 0.0
  %v1327 = vmax.f32 %v1311, 0.0
  %v1328 = vmax.f32 %v1312, 0.0
  %v1329 = vmax.f32 %v1313, 0.0
  %v1330 = vmax.f32 %v1314, 0.0
  %v1331 = vmax.f32 %v1315, 0.0
  %v1332 = vmax.f32 %v1316, 0.0
  %v1333 = vmax.f32 %v1317, 0.0
  %v1334 = vmax.f32 %v1318, 0.0
  %v1335 = vmax.f32 %v1319, 0.0
  %v1336 = vmax.f32 %v1320, 0.0
  %v1337 = vmax.f32 %v1321, 0.0
  %v1338 = vmax.f32 %v1322, 0.0
  %v1339 = vld [vmem:[%s9] sm:$0xf]
  %v1340 = vld [vmem:[%s9 + $0x4] sm:$0xf]
  %v1341 = vld [vmem:[%s9 + $0x8] sm:$0xf]
  %v1342 = vld [vmem:[%s9 + $0xc] sm:$0xf]
  %v1343 = vld [vmem:[%s10] sm:$0x1]
  %v1344 = vpack.c.bf16 %v1324, %v1323
  %v1345 = vpack.c.bf16 %v1326, %v1325
  %v1346 = vpack.c.bf16 %v1328, %v1327
  %v1347 = vpack.c.bf16 %v1330, %v1329
  %v1348 = vpack.c.bf16 %v1332, %v1331
  %v1349 = vpack.c.bf16 %v1334, %v1333
  %v1350 = vpack.c.bf16 %v1336, %v1335
  %v1351 = vpack.c.bf16 %v1338, %v1337
  %v1353 = vlaneseq
  %v1354 = vshrl.u32 %v1353, 7
  %v1355 = vsub.s32 0, %v1354
  %v1356 = vrot.slane %v1343, %v1355
  %v1362 = vunpack.c.l.b16 %v1339
  %v1363 = vunpack.c.l.b16 %v1340
  %v1364 = vunpack.c.l.b16 %v1341
  %v1365 = vunpack.c.l.b16 %v1342
  %v1366 = vpack.c.b16 %v1363, %v1362
  %v1367 = vpack.c.b16 %v1365, %v1364
  %v1371 = vsel %vm597, %v1344, 0
  %v1374 = vsel %vm597, %v1345, 0
  %v1377 = vsel %vm597, %v1346, 0
  %v1380 = vsel %vm597, %v1347, 0
  %v1383 = vsel %vm597, %v1348, 0
  %v1386 = vsel %vm597, %v1349, 0
  %v1389 = vsel %vm597, %v1350, 0
  %v1392 = vsel %vm597, %v1351, 0
  %1394 = vmatprep.subr.bf16.mxu0 0
  %1395 = vmatpush1.bf16.msra.mxu0 0
  %1396 = vmatprep.subr.bf16.mxu0 0
  %1397 = vmatpush1.bf16.msra.mxu0 0
  %1398 = vmatprep.subr.bf16.mxu0 0
  %1399 = vmatpush1.bf16.msra.mxu0 0
  %1400 = vmatprep.subr.bf16.mxu0 0
  %1401 = vmatpush1.bf16.msra.mxu0 0
  %1402 = vmatprep.subr.bf16.mxu0 0
  %1403 = vmatpush1.bf16.msra.mxu0 0
  %1404 = vmatprep.subr.bf16.mxu0 0
  %1405 = vmatpush1.bf16.msra.mxu0 0
  %1406 = vmatprep.subr.bf16.mxu0 0
  %1407 = vmatpush1.bf16.msra.mxu0 %v1367
  %1408 = vmatprep.subr.bf16.mxu0 0
  %1409 = vmatpush1.bf16.msra.mxu0 %v1366
  %1410 = vmatprep.subr.bf16.mxu0 0
  %1411 = vmatpush2.bf16.msra.mxu0 0
  %1412 = vmatprep.subr.bf16.mxu0 0
  %1413 = vmatpush2.bf16.msra.mxu0 0
  %1414 = vmatprep.subr.bf16.mxu0 0
  %1415 = vmatpush2.bf16.msra.mxu0 0
  %1416 = vmatprep.subr.bf16.mxu0 0
  %1417 = vmatpush2.bf16.msra.mxu0 0
  %1418 = vmatprep.subr.bf16.mxu0 0
  %1419 = vmatpush2.bf16.msra.mxu0 0
  %1420 = vmatprep.subr.bf16.mxu0 0
  %1421 = vmatpush2.bf16.msra.mxu0 0
  %1422 = vmatprep.subr.bf16.mxu0 0
  %1423 = vmatpush2.bf16.msra.mxu0 0
  %1424 = vmatprep.subr.bf16.mxu0 0
  %1425 = vmatpush2.bf16.msra.mxu0 0
  %1426 = vmatprep.mubr.bf16.mxu0 0
  %1427 = vmatmul.mubr.bf16.gmra.mxu0 %v1371
  %v1428 = vpop.f32.mrf.mxu0
  %v1429 = vadd.f32 %v1356, %v1428
  %v1430 = vpop.f32.mrf.mxu0
  %v1431 = vpop.f32.mrf.mxu0
  %v1432 = vadd.f32 %v1356, %v1431
  %v1433 = vpop.f32.mrf.mxu0
  %1434 = vmatprep.mubr.bf16.mxu0 0
  %1435 = vmatmul.mubr.bf16.gmra.mxu0 %v1374
  %v1436 = vpop.f32.mrf.mxu0
  %v1437 = vadd.f32 %v1356, %v1436
  %v1438 = vpop.f32.mrf.mxu0
  %v1439 = vpop.f32.mrf.mxu0
  %v1440 = vadd.f32 %v1356, %v1439
  %v1441 = vpop.f32.mrf.mxu0
  %1442 = vmatprep.mubr.bf16.mxu0 0
  %1443 = vmatmul.mubr.bf16.gmra.mxu0 %v1377
  %v1444 = vpop.f32.mrf.mxu0
  %v1445 = vadd.f32 %v1356, %v1444
  %v1446 = vpop.f32.mrf.mxu0
  %v1447 = vpop.f32.mrf.mxu0
  %v1448 = vadd.f32 %v1356, %v1447
  %v1449 = vpop.f32.mrf.mxu0
  %1450 = vmatprep.mubr.bf16.mxu0 0
  %1451 = vmatmul.mubr.bf16.gmra.mxu0 %v1380
  %v1452 = vpop.f32.mrf.mxu0
  %v1453 = vadd.f32 %v1356, %v1452
  %v1454 = vpop.f32.mrf.mxu0
  %v1455 = vpop.f32.mrf.mxu0
  %v1456 = vadd.f32 %v1356, %v1455
  %v1457 = vpop.f32.mrf.mxu0
  %1458 = vmatprep.mubr.bf16.mxu0 0
  %1459 = vmatmul.mubr.bf16.gmra.mxu0 %v1383
  %v1460 = vpop.f32.mrf.mxu0
  %v1461 = vadd.f32 %v1356, %v1460
  %v1462 = vpop.f32.mrf.mxu0
  %v1463 = vpop.f32.mrf.mxu0
  %v1464 = vadd.f32 %v1356, %v1463
  %v1465 = vpop.f32.mrf.mxu0
  %1466 = vmatprep.mubr.bf16.mxu0 0
  %1467 = vmatmul.mubr.bf16.gmra.mxu0 %v1386
  %v1468 = vpop.f32.mrf.mxu0
  %v1469 = vadd.f32 %v1356, %v1468
  %v1470 = vpop.f32.mrf.mxu0
  %v1471 = vpop.f32.mrf.mxu0
  %v1472 = vadd.f32 %v1356, %v1471
  %v1473 = vpop.f32.mrf.mxu0
  %1474 = vmatprep.mubr.bf16.mxu0 0
  %1475 = vmatmul.mubr.bf16.gmra.mxu0 %v1389
  %v1476 = vpop.f32.mrf.mxu0
  %v1477 = vadd.f32 %v1356, %v1476
  %v1478 = vpop.f32.mrf.mxu0
  %v1479 = vpop.f32.mrf.mxu0
  %v1480 = vadd.f32 %v1356, %v1479
  %v1481 = vpop.f32.mrf.mxu0
  %1482 = vmatprep.mubr.bf16.mxu0 0
  %1483 = vmatmul.mubr.bf16.gmra.mxu0 %v1392
  %v1484 = vpop.f32.mrf.mxu0
  %v1485 = vadd.f32 %v1356, %v1484
  %v1486 = vpop.f32.mrf.mxu0
  %v1487 = vpop.f32.mrf.mxu0
  %v1488 = vadd.f32 %v1356, %v1487
  %v1489 = vpop.f32.mrf.mxu0
  %1490 = vdwg.mxu0
  %v1491 = vld [vmem:[%s11] sm:$0x1]
  %v1492 = vld [vmem:[%s12] sm:$0x1]
  %v1493 = vsel %vm597, %v1429, 0.0
  %1494 = vadd.xlane.f32.xlu0 %v1493
  %v1495 = vpop.xlane.xlu0 %1494
  %v1496 = vsel %vm597, %v1432, 0.0
  %1497 = vadd.xlane.f32.xlu0 %v1496
  %v1498 = vpop.xlane.xlu0 %1497
  %v1499 = vsel %vm597, %v1437, 0.0
  %1500 = vadd.xlane.f32.xlu0 %v1499
  %v1501 = vpop.xlane.xlu0 %1500
  %v1502 = vsel %vm597, %v1440, 0.0
  %1503 = vadd.xlane.f32.xlu0 %v1502
  %v1504 = vpop.xlane.xlu0 %1503
  %v1505 = vsel %vm597, %v1445, 0.0
  %1506 = vadd.xlane.f32.xlu0 %v1505
  %v1507 = vpop.xlane.xlu0 %1506
  %v1508 = vsel %vm597, %v1448, 0.0
  %1509 = vadd.xlane.f32.xlu0 %v1508
  %v1510 = vpop.xlane.xlu0 %1509
  %v1511 = vsel %vm597, %v1453, 0.0
  %1512 = vadd.xlane.f32.xlu0 %v1511
  %v1513 = vpop.xlane.xlu0 %1512
  %v1514 = vsel %vm597, %v1456, 0.0
  %1515 = vadd.xlane.f32.xlu0 %v1514
  %v1516 = vpop.xlane.xlu0 %1515
  %v1517 = vsel %vm597, %v1461, 0.0
  %1518 = vadd.xlane.f32.xlu0 %v1517
  %v1519 = vpop.xlane.xlu0 %1518
  %v1520 = vsel %vm597, %v1464, 0.0
  %1521 = vadd.xlane.f32.xlu0 %v1520
  %v1522 = vpop.xlane.xlu0 %1521
  %v1523 = vsel %vm597, %v1469, 0.0
  %1524 = vadd.xlane.f32.xlu0 %v1523
  %v1525 = vpop.xlane.xlu0 %1524
  %v1526 = vsel %vm597, %v1472, 0.0
  %1527 = vadd.xlane.f32.xlu0 %v1526
  %v1528 = vpop.xlane.xlu0 %1527
  %v1529 = vsel %vm597, %v1477, 0.0
  %1530 = vadd.xlane.f32.xlu0 %v1529
  %v1531 = vpop.xlane.xlu0 %1530
  %v1532 = vsel %vm597, %v1480, 0.0
  %1533 = vadd.xlane.f32.xlu0 %v1532
  %v1534 = vpop.xlane.xlu0 %1533
  %v1535 = vsel %vm597, %v1485, 0.0
  %1536 = vadd.xlane.f32.xlu0 %v1535
  %v1537 = vpop.xlane.xlu0 %1536
  %v1538 = vsel %vm597, %v1488, 0.0
  %1539 = vadd.xlane.f32.xlu0 %v1538
  %v1540 = vpop.xlane.xlu0 %1539
  %v1541 = vmul.f32 %v1495, %v1118
  %v1542 = vmul.f32 %v1498, %v1118
  %v1543 = vmul.f32 %v1501, %v1118
  %v1544 = vmul.f32 %v1504, %v1118
  %v1545 = vmul.f32 %v1507, %v1118
  %v1546 = vmul.f32 %v1510, %v1118
  %v1547 = vmul.f32 %v1513, %v1118
  %v1548 = vmul.f32 %v1516, %v1118
  %v1549 = vmul.f32 %v1519, %v1118
  %v1550 = vmul.f32 %v1522, %v1118
  %v1551 = vmul.f32 %v1525, %v1118
  %v1552 = vmul.f32 %v1528, %v1118
  %v1553 = vmul.f32 %v1531, %v1118
  %v1554 = vmul.f32 %v1534, %v1118
  %v1555 = vmul.f32 %v1537, %v1118
  %v1556 = vmul.f32 %v1540, %v1118
  %v1557 = vsub.f32 %v1429, %v1541
  %v1558 = vsub.f32 %v1432, %v1542
  %v1559 = vsub.f32 %v1437, %v1543
  %v1560 = vsub.f32 %v1440, %v1544
  %v1561 = vsub.f32 %v1445, %v1545
  %v1562 = vsub.f32 %v1448, %v1546
  %v1563 = vsub.f32 %v1453, %v1547
  %v1564 = vsub.f32 %v1456, %v1548
  %v1565 = vsub.f32 %v1461, %v1549
  %v1566 = vsub.f32 %v1464, %v1550
  %v1567 = vsub.f32 %v1469, %v1551
  %v1568 = vsub.f32 %v1472, %v1552
  %v1569 = vsub.f32 %v1477, %v1553
  %v1570 = vsub.f32 %v1480, %v1554
  %v1571 = vsub.f32 %v1485, %v1555
  %v1572 = vsub.f32 %v1488, %v1556
  %v1573 = vmul.f32 %v1557, %v1557
  %v1574 = vmul.f32 %v1558, %v1558
  %v1575 = vmul.f32 %v1559, %v1559
  %v1576 = vmul.f32 %v1560, %v1560
  %v1577 = vmul.f32 %v1561, %v1561
  %v1578 = vmul.f32 %v1562, %v1562
  %v1579 = vmul.f32 %v1563, %v1563
  %v1580 = vmul.f32 %v1564, %v1564
  %v1581 = vmul.f32 %v1565, %v1565
  %v1582 = vmul.f32 %v1566, %v1566
  %v1583 = vmul.f32 %v1567, %v1567
  %v1584 = vmul.f32 %v1568, %v1568
  %v1585 = vmul.f32 %v1569, %v1569
  %v1586 = vmul.f32 %v1570, %v1570
  %v1587 = vmul.f32 %v1571, %v1571
  %v1588 = vmul.f32 %v1572, %v1572
  %v1589 = vsel %vm597, %v1573, 0.0
  %1590 = vadd.xlane.f32.xlu0 %v1589
  %v1591 = vpop.xlane.xlu0 %1590
  %v1592 = vsel %vm597, %v1574, 0.0
  %1593 = vadd.xlane.f32.xlu0 %v1592
  %v1594 = vpop.xlane.xlu0 %1593
  %v1595 = vsel %vm597, %v1575, 0.0
  %1596 = vadd.xlane.f32.xlu0 %v1595
  %v1597 = vpop.xlane.xlu0 %1596
  %v1598 = vsel %vm597, %v1576, 0.0
  %1599 = vadd.xlane.f32.xlu0 %v1598
  %v1600 = vpop.xlane.xlu0 %1599
  %v1601 = vsel %vm597, %v1577, 0.0
  %1602 = vadd.xlane.f32.xlu0 %v1601
  %v1603 = vpop.xlane.xlu0 %1602
  %v1604 = vsel %vm597, %v1578, 0.0
  %1605 = vadd.xlane.f32.xlu0 %v1604
  %v1606 = vpop.xlane.xlu0 %1605
  %v1607 = vsel %vm597, %v1579, 0.0
  %1608 = vadd.xlane.f32.xlu0 %v1607
  %v1609 = vpop.xlane.xlu0 %1608
  %v1610 = vsel %vm597, %v1580, 0.0
  %1611 = vadd.xlane.f32.xlu0 %v1610
  %v1612 = vpop.xlane.xlu0 %1611
  %v1613 = vsel %vm597, %v1581, 0.0
  %1614 = vadd.xlane.f32.xlu0 %v1613
  %v1615 = vpop.xlane.xlu0 %1614
  %v1616 = vsel %vm597, %v1582, 0.0
  %1617 = vadd.xlane.f32.xlu0 %v1616
  %v1618 = vpop.xlane.xlu0 %1617
  %v1619 = vsel %vm597, %v1583, 0.0
  %1620 = vadd.xlane.f32.xlu0 %v1619
  %v1621 = vpop.xlane.xlu0 %1620
  %v1622 = vsel %vm597, %v1584, 0.0
  %1623 = vadd.xlane.f32.xlu0 %v1622
  %v1624 = vpop.xlane.xlu0 %1623
  %v1625 = vsel %vm597, %v1585, 0.0
  %1626 = vadd.xlane.f32.xlu0 %v1625
  %v1627 = vpop.xlane.xlu0 %1626
  %v1628 = vsel %vm597, %v1586, 0.0
  %1629 = vadd.xlane.f32.xlu0 %v1628
  %v1630 = vpop.xlane.xlu0 %1629
  %v1631 = vsel %vm597, %v1587, 0.0
  %1632 = vadd.xlane.f32.xlu0 %v1631
  %v1633 = vpop.xlane.xlu0 %1632
  %v1634 = vsel %vm597, %v1588, 0.0
  %1635 = vadd.xlane.f32.xlu0 %v1634
  %v1636 = vpop.xlane.xlu0 %1635
  %v1637 = vmul.f32 %v1591, %v1118
  %v1638 = vmul.f32 %v1594, %v1118
  %v1639 = vmul.f32 %v1597, %v1118
  %v1640 = vmul.f32 %v1600, %v1118
  %v1641 = vmul.f32 %v1603, %v1118
  %v1642 = vmul.f32 %v1606, %v1118
  %v1643 = vmul.f32 %v1609, %v1118
  %v1644 = vmul.f32 %v1612, %v1118
  %v1645 = vmul.f32 %v1615, %v1118
  %v1646 = vmul.f32 %v1618, %v1118
  %v1647 = vmul.f32 %v1621, %v1118
  %v1648 = vmul.f32 %v1624, %v1118
  %v1649 = vmul.f32 %v1627, %v1118
  %v1650 = vmul.f32 %v1630, %v1118
  %v1651 = vmul.f32 %v1633, %v1118
  %v1652 = vmul.f32 %v1636, %v1118
  %v1653 = vadd.f32 %v1637, 1e-05
  %v1654 = vadd.f32 %v1638, 1e-05
  %v1655 = vadd.f32 %v1639, 1e-05
  %v1656 = vadd.f32 %v1640, 1e-05
  %v1657 = vadd.f32 %v1641, 1e-05
  %v1658 = vadd.f32 %v1642, 1e-05
  %v1659 = vadd.f32 %v1643, 1e-05
  %v1660 = vadd.f32 %v1644, 1e-05
  %v1661 = vadd.f32 %v1645, 1e-05
  %v1662 = vadd.f32 %v1646, 1e-05
  %v1663 = vadd.f32 %v1647, 1e-05
  %v1664 = vadd.f32 %v1648, 1e-05
  %v1665 = vadd.f32 %v1649, 1e-05
  %v1666 = vadd.f32 %v1650, 1e-05
  %v1667 = vadd.f32 %v1651, 1e-05
  %v1668 = vadd.f32 %v1652, 1e-05
  %v1669 = vrsqrt.pop %v1653
  %v1670 = vrsqrt.pop %v1654
  %v1671 = vrsqrt.pop %v1655
  %v1672 = vrsqrt.pop %v1656
  %v1673 = vrsqrt.pop %v1657
  %v1674 = vrsqrt.pop %v1658
  %v1675 = vrsqrt.pop %v1659
  %v1676 = vrsqrt.pop %v1660
  %v1677 = vrsqrt.pop %v1661
  %v1678 = vrsqrt.pop %v1662
  %v1679 = vrsqrt.pop %v1663
  %v1680 = vrsqrt.pop %v1664
  %v1681 = vrsqrt.pop %v1665
  %v1682 = vrsqrt.pop %v1666
  %v1683 = vrsqrt.pop %v1667
  %v1684 = vrsqrt.pop %v1668
  %v1685 = vmul.f32 %v1557, %v1669
  %v1686 = vmul.f32 %v1558, %v1670
  %v1687 = vmul.f32 %v1559, %v1671
  %v1688 = vmul.f32 %v1560, %v1672
  %v1689 = vmul.f32 %v1561, %v1673
  %v1690 = vmul.f32 %v1562, %v1674
  %v1691 = vmul.f32 %v1563, %v1675
  %v1692 = vmul.f32 %v1564, %v1676
  %v1693 = vmul.f32 %v1565, %v1677
  %v1694 = vmul.f32 %v1566, %v1678
  %v1695 = vmul.f32 %v1567, %v1679
  %v1696 = vmul.f32 %v1568, %v1680
  %v1697 = vmul.f32 %v1569, %v1681
  %v1698 = vmul.f32 %v1570, %v1682
  %v1699 = vmul.f32 %v1571, %v1683
  %v1700 = vmul.f32 %v1572, %v1684
  %v1702 = vlaneseq
  %v1703 = vshrl.u32 %v1702, 7
  %v1704 = vsub.s32 0, %v1703
  %v1705 = vrot.slane %v1491, %v1704
  %v1707 = vmul.f32 %v1685, %v1705
  %v1708 = vmul.f32 %v1686, %v1705
  %v1709 = vmul.f32 %v1687, %v1705
  %v1710 = vmul.f32 %v1688, %v1705
  %v1711 = vmul.f32 %v1689, %v1705
  %v1712 = vmul.f32 %v1690, %v1705
  %v1713 = vmul.f32 %v1691, %v1705
  %v1714 = vmul.f32 %v1692, %v1705
  %v1715 = vmul.f32 %v1693, %v1705
  %v1716 = vmul.f32 %v1694, %v1705
  %v1717 = vmul.f32 %v1695, %v1705
  %v1718 = vmul.f32 %v1696, %v1705
  %v1719 = vmul.f32 %v1697, %v1705
  %v1720 = vmul.f32 %v1698, %v1705
  %v1721 = vmul.f32 %v1699, %v1705
  %v1722 = vmul.f32 %v1700, %v1705
  %v1724 = vlaneseq
  %v1725 = vshrl.u32 %v1724, 7
  %v1726 = vsub.s32 0, %v1725
  %v1727 = vrot.slane %v1492, %v1726
  %v1729 = vadd.f32 %v1707, %v1727
  %v1730 = vadd.f32 %v1708, %v1727
  %v1731 = vadd.f32 %v1709, %v1727
  %v1732 = vadd.f32 %v1710, %v1727
  %v1733 = vadd.f32 %v1711, %v1727
  %v1734 = vadd.f32 %v1712, %v1727
  %v1735 = vadd.f32 %v1713, %v1727
  %v1736 = vadd.f32 %v1714, %v1727
  %v1737 = vadd.f32 %v1715, %v1727
  %v1738 = vadd.f32 %v1716, %v1727
  %v1739 = vadd.f32 %v1717, %v1727
  %v1740 = vadd.f32 %v1718, %v1727
  %v1741 = vadd.f32 %v1719, %v1727
  %v1742 = vadd.f32 %v1720, %v1727
  %v1743 = vadd.f32 %v1721, %v1727
  %v1744 = vadd.f32 %v1722, %v1727
  %v1745 = vtanh.pop %v1729
  %v1746 = vtanh.pop %v1730
  %v1747 = vtanh.pop %v1731
  %v1748 = vtanh.pop %v1732
  %v1749 = vtanh.pop %v1733
  %v1750 = vtanh.pop %v1734
  %v1751 = vtanh.pop %v1735
  %v1752 = vtanh.pop %v1736
  %v1753 = vtanh.pop %v1737
  %v1754 = vtanh.pop %v1738
  %v1755 = vtanh.pop %v1739
  %v1756 = vtanh.pop %v1740
  %v1757 = vtanh.pop %v1741
  %v1758 = vtanh.pop %v1742
  %v1759 = vtanh.pop %v1743
  %v1760 = vtanh.pop %v1744
  %v1761 = vadd.f32 %v1745, %v545
  %v1762 = vadd.f32 %v1746, %v546
  %v1763 = vadd.f32 %v1747, %v547
  %v1764 = vadd.f32 %v1748, %v548
  %v1765 = vadd.f32 %v1749, %v549
  %v1766 = vadd.f32 %v1750, %v550
  %v1767 = vadd.f32 %v1751, %v551
  %v1768 = vadd.f32 %v1752, %v552
  %v1769 = vadd.f32 %v1753, %v553
  %v1770 = vadd.f32 %v1754, %v554
  %v1771 = vadd.f32 %v1755, %v555
  %v1772 = vadd.f32 %v1756, %v556
  %v1773 = vadd.f32 %v1757, %v557
  %v1774 = vadd.f32 %v1758, %v558
  %v1775 = vadd.f32 %v1759, %v559
  %v1776 = vadd.f32 %v1760, %v560
  %1777 = vst.msk [vmem:[%s13] sm:$0xff] %vm597, %v1761
  %1778 = vst.msk [vmem:[%s13 + $0x8] sm:$0xff] %vm597, %v1762
  %1779 = vst.msk [vmem:[%s13 + $0x10] sm:$0xff] %vm597, %v1763
  %1780 = vst.msk [vmem:[%s13 + $0x18] sm:$0xff] %vm597, %v1764
  %1781 = vst.msk [vmem:[%s13 + $0x20] sm:$0xff] %vm597, %v1765
  %1782 = vst.msk [vmem:[%s13 + $0x28] sm:$0xff] %vm597, %v1766
  %1783 = vst.msk [vmem:[%s13 + $0x30] sm:$0xff] %vm597, %v1767
  %1784 = vst.msk [vmem:[%s13 + $0x38] sm:$0xff] %vm597, %v1768
  %1785 = vst.msk [vmem:[%s13 + $0x40] sm:$0xff] %vm597, %v1769
  %1786 = vst.msk [vmem:[%s13 + $0x48] sm:$0xff] %vm597, %v1770
  %1787 = vst.msk [vmem:[%s13 + $0x50] sm:$0xff] %vm597, %v1771
  %1788 = vst.msk [vmem:[%s13 + $0x58] sm:$0xff] %vm597, %v1772
  %1789 = vst.msk [vmem:[%s13 + $0x60] sm:$0xff] %vm597, %v1773
  %1790 = vst.msk [vmem:[%s13 + $0x68] sm:$0xff] %vm597, %v1774
  %1791 = vst.msk [vmem:[%s13 + $0x70] sm:$0xff] %vm597, %v1775
  %1792 = vst.msk [vmem:[%s13 + $0x78] sm:$0xff] %vm597, %v1776
  // Predicated region
  $region54: #{interaction_gnn_block.3} parent=0 // pred_check
    _
  $region55: #{interaction_gnn_block.3} parent=0 // pred_check_branch
    %1794 = sbr.rel (0) target = $region57
  $region56: #{interaction_gnn_block.3} parent=0 // pred_region
    _
  $region57: #{interaction_gnn_block.3} parent=0 // pred_fallthru
    _
  // Predicated region
  $region58: #{interaction_gnn_block.3} parent=0 // pred_check
    _
  $region59: #{interaction_gnn_block.3} parent=0 // pred_check_branch
    %1796 = sbr.rel (0) target = $region61
  $region60: #{interaction_gnn_block.3} parent=0 // pred_region
    _
  $region61: #{interaction_gnn_block.3} parent=0 // pred_fallthru
    _

</llo_original>
